<compile_context>
chip_gen: v6e
topology: v6e:2x2x1
jax: 0.10.0
libtpu: 0.0.40
codegen_flags: <defaults>
</compile_context>

<pallas_src>
import jax
import jax.numpy as jnp
import numpy as np
from jax.experimental import pallas as pl
from jax.experimental.pallas import tpu as pltpu

BN_EPS = 1e-3   # matches nn.BatchNorm2d(out_channels, eps=0.001)
LANES = 128


def _make_conv_stats_kernel(*, kh, kw, c_in, c_pad, th, wo, ho, stride):
    """Pass 1: streamed conv (kh*kw shifted-window MXU matmuls) + BN stats."""
    rows = th * wo
    full_tiles = (ho % th == 0)
    first_rows = float(min(th, ho) * wo)

    def kernel(x_ref, w_ref, y_ref, sum_ref, ssq_ref, ref_ref):
        # x_ref:   (Hp, Wp, C_in)      bf16  padded image (whole image resident)
        # w_ref:   (kh*kw, C_in, c_pad) bf16
        # y_ref:   (th, wo, c_pad)     bf16  conv output tile
        # sum/ssq/ref: (1, c_pad) f32 resident accumulators (shifted sums)
        n = pl.program_id(0)
        t = pl.program_id(1)
        row0 = t * (th * stride)            # first input row of this tile

        acc = jnp.zeros((rows, c_pad), jnp.float32)
        for dy in range(kh):
            for dx in range(kw):
                if stride == 1:
                    win = x_ref[pl.ds(row0 + dy, th), pl.ds(dx, wo)]
                else:
                    # TODO(synk): strided window loads are untested (GoogLeNet
                    # BasicConv2d layers exercised here are stride 1).
                    win = x_ref[pl.ds(row0 + dy, th, stride),
                                pl.ds(dx, wo, stride)]
                acc = acc + jnp.dot(win.reshape(rows, c_in),
                                    w_ref[dy * kw + dx],
                                    preferred_element_type=jnp.float32)

        # bf16 intermediate write (stats stay on the f32 accumulator below).
        y_ref[...] = acc.reshape(th, wo, c_pad).astype(y_ref.dtype)

        if full_tiles:
            valid = None
        else:
            # valid rows are a contiguous prefix of the flattened tile
            flat = jax.lax.broadcasted_iota(jnp.int32, (rows, 1), 0)
            nvalid = jnp.minimum(ho - t * th, th) * wo
            valid = flat < nvalid

        @pl.when(jnp.logical_and(n == 0, t == 0))
        def _():
            # per-channel shift reference from the first tile: keeps the
            # E[(y-ref)^2] - E[y-ref]^2 variance well conditioned.
            a0 = acc if valid is None else jnp.where(valid, acc, 0.0)
            ref_ref[...] = jnp.sum(a0, axis=0, keepdims=True) * (1.0 / first_rows)
            sum_ref[...] = jnp.zeros_like(sum_ref)
            ssq_ref[...] = jnp.zeros_like(ssq_ref)

        centered = acc - ref_ref[...]
        if valid is not None:
            centered = jnp.where(valid, centered, 0.0)
        sum_ref[...] += jnp.sum(centered, axis=0, keepdims=True)
        ssq_ref[...] += jnp.sum(centered * centered, axis=0, keepdims=True)

    return kernel


def _bn_relu_kernel(y_ref, scale_ref, shift_ref, o_ref):
    # Pass 2: folded BatchNorm affine + ReLU; math in f32, bf16 input tile.
    y = y_ref[...].astype(jnp.float32)
    o_ref[...] = jnp.maximum(y * scale_ref[...] + shift_ref[...],
                             0.0).astype(o_ref.dtype)


def _vmem_limit_bytes(est):
    """2x headroom over an accurate estimate, capped at ~80% of physical VMEM."""
    cap = 64 << 20                      # conservative floor (v7x per-core VMEM)
    try:
        info = pltpu.get_tpu_info()
        cap = int(getattr(info, "vmem_capacity_bytes", cap))
    except Exception:
        pass
    lo = 32 << 20
    hi = max(cap * 4 // 5, lo)
    return int(min(max(2 * est, lo), hi))


def _pick_pass2_rows(m2, granule, target=1024):
    """Largest sublane-friendly multiple of `granule` that divides m2."""
    best = m2
    k = 1
    cap = min(m2, max(target, granule))
    while k * granule <= cap:
        b = k * granule
        if m2 % b == 0 and b % 8 == 0:
            best = b
        k += 1
    return best


def basic_conv2d(x_nchw, weight_oihw, gamma, beta, *, stride=1, padding=1,
                 tile_rows=512):
    """Fused Conv2d(bias=False) + BatchNorm2d(train-mode stats) + ReLU."""
    N, C_in, H, W = x_nchw.shape
    C_out, _, kh, kw = weight_oihw.shape
    Ho = (H + 2 * padding - kh) // stride + 1
    Wo = (W + 2 * padding - kw) // stride + 1

    c_pad = ((C_out + LANES - 1) // LANES) * LANES      # lane-dense C_out
    th = max(1, min(Ho, -(-tile_rows // Wo)))           # output rows per tile
    nh = -(-Ho // th)
    Ho_pad = nh * th

    Wp = W + 2 * padding
    # enough padded input rows for the last (possibly ragged) row tile's band
    Hp = max(H + 2 * padding, (Ho_pad - 1) * stride + kh)

    # ---- glue: NCHW -> padded NHWC bf16 (single, non-expanded XLA pass) ----
    x = jnp.transpose(x_nchw, (0, 2, 3, 1))
    x = jnp.pad(x, ((0, 0),
                    (padding, Hp - H - padding),
                    (padding, Wp - W - padding),
                    (0, 0))).astype(jnp.bfloat16)

    # weight (C_out, C_in, kh, kw) -> (kh*kw, C_in, c_pad) bf16
    w = jnp.transpose(weight_oihw, (2, 3, 1, 0)).reshape(kh * kw, C_in, C_out)
    w = jnp.pad(w, ((0, 0), (0, 0), (0, c_pad - C_out))).astype(jnp.bfloat16)

    rows = th * Wo
    conv_kernel = _make_conv_stats_kernel(kh=kh, kw=kw, c_in=C_in, c_pad=c_pad,
                                          th=th, wo=Wo, ho=Ho, stride=stride)

    est1 = (2 * (Hp * Wp * C_in * 2 + kh * kw * C_in * c_pad * 2
                 + rows * c_pad * 2)
            + 3 * 2 * c_pad * 4
            + rows * c_pad * 4 + 2 * rows * C_in * 2)

    # ---- pass 1: streamed conv + per-channel shifted sum / sumsq ----
    conv, csum, cssq, cref = pl.pallas_call(
        conv_kernel,
        out_shape=(
            jax.ShapeDtypeStruct((N, Ho_pad, Wo, c_pad), jnp.bfloat16),
            jax.ShapeDtypeStruct((1, c_pad), jnp.float32),
            jax.ShapeDtypeStruct((1, c_pad), jnp.float32),
            jax.ShapeDtypeStruct((1, c_pad), jnp.float32),
        ),
        grid=(N, nh),
        in_specs=[
            pl.BlockSpec((None, Hp, Wp, C_in), lambda n, t: (n, 0, 0, 0)),
            pl.BlockSpec((kh * kw, C_in, c_pad), lambda n, t: (0, 0, 0)),
        ],
        out_specs=(
            pl.BlockSpec((None, th, Wo, c_pad), lambda n, t: (n, t, 0, 0)),
            pl.BlockSpec((1, c_pad), lambda n, t: (0, 0)),
            pl.BlockSpec((1, c_pad), lambda n, t: (0, 0)),
            pl.BlockSpec((1, c_pad), lambda n, t: (0, 0)),
        ),
        compiler_params=pltpu.CompilerParams(
            # Both axes carry the resident BN-stat accumulators -> sequential.
            # TODO(synk): per-core partial stats ((2, c_pad) outputs keyed on a
            # leading "parallel" axis, reduced in the wrapper) would let v7x's
            # two TensorCores share pass 1.
            dimension_semantics=("arbitrary", "arbitrary"),
            vmem_limit_bytes=_vmem_limit_bytes(est1),
        ),
        cost_estimate=pl.CostEstimate(
            flops=2 * N * Ho_pad * Wo * kh * kw * C_in * c_pad,
            transcendentals=0,
            bytes_accessed=N * Hp * Wp * C_in * 2 + kh * kw * C_in * c_pad * 2
                           + N * Ho_pad * Wo * c_pad * 2 + 3 * c_pad * 4),
    )(x, w)

    # ---- finalize BN stats (tiny per-channel math in plain JAX) ----
    M = N * Ho * Wo                                   # real element count
    gamma_p = jnp.pad(gamma.astype(jnp.float32), (0, c_pad - C_out)).reshape(1, c_pad)
    beta_p = jnp.pad(beta.astype(jnp.float32), (0, c_pad - C_out)).reshape(1, c_pad)
    mean_sh = csum / M                                # E[y - ref]
    mean = cref + mean_sh
    var = jnp.maximum(cssq / M - mean_sh * mean_sh, 0.0)   # biased variance
    scale = gamma_p * jax.lax.rsqrt(var + BN_EPS)
    shift = beta_p - mean * scale

    # ---- pass 2: folded BN affine + ReLU on large lane-dense tiles ----
    M2 = N * Ho_pad * Wo
    bm2 = _pick_pass2_rows(M2, rows, target=1024)
    y2 = conv.reshape(M2, c_pad)                      # free metadata reshape
    est2 = 2 * (bm2 * c_pad * 2 + 2 * bm2 * c_pad * 4) + 2 * 2 * c_pad * 4

    out = pl.pallas_call(
        _bn_relu_kernel,
        out_shape=jax.ShapeDtypeStruct((M2, c_pad), x_nchw.dtype),
        grid=(M2 // bm2,),
        in_specs=[
            pl.BlockSpec((bm2, c_pad), lambda i: (i, 0)),
            pl.BlockSpec((1, c_pad), lambda i: (0, 0)),
            pl.BlockSpec((1, c_pad), lambda i: (0, 0)),
        ],
        out_specs=pl.BlockSpec((bm2, c_pad), lambda i: (i, 0)),
        compiler_params=pltpu.CompilerParams(
            dimension_semantics=("parallel",),
            vmem_limit_bytes=_vmem_limit_bytes(est2),
        ),
        cost_estimate=pl.CostEstimate(
            flops=2 * M2 * c_pad,
            transcendentals=0,
            bytes_accessed=M2 * c_pad * (2 + 4) + 2 * c_pad * 4),
    )(y2, scale, shift)

    out = out.reshape(N, Ho_pad, Wo, c_pad)[:, :Ho, :, :C_out]
    return jnp.transpose(out, (0, 3, 1, 2))           # back to NCHW


def _reference(x, w, gamma, beta, *, stride=1, padding=1):
    y = jax.lax.conv_general_dilated(
        x, w, window_strides=(stride, stride),
        padding=[(padding, padding), (padding, padding)],
        dimension_numbers=("NCHW", "OIHW", "NCHW"))
    mean = jnp.mean(y, axis=(0, 2, 3), keepdims=True)
    var = jnp.mean((y - mean) ** 2, axis=(0, 2, 3), keepdims=True)
    yn = (y - mean) / jnp.sqrt(var + BN_EPS)
    yn = yn * gamma.reshape(1, -1, 1, 1) + beta.reshape(1, -1, 1, 1)
    return jnp.maximum(yn, 0.0)


if __name__ == "__main__":
    # BasicConv2d(in_channels=4, out_channels=8, kernel_size=3, padding=1)
    N, C_in, H, W = 2, 4, 16, 16
    C_out, kh, kw = 8, 3, 3
    stride, padding = 1, 1

    key = jax.random.PRNGKey(0)
    kx, kw_, kg, kb = jax.random.split(key, 4)
    x = jax.random.normal(kx, (N, C_in, H, W), dtype=jnp.float32)
    weight = jax.random.normal(kw_, (C_out, C_in, kh, kw), dtype=jnp.float32) * 0.1
    gamma = 1.0 + 0.1 * jax.random.normal(kg, (C_out,), dtype=jnp.float32)
    beta = 0.1 * jax.random.normal(kb, (C_out,), dtype=jnp.float32)

    out = basic_conv2d(x, weight, gamma, beta, stride=stride, padding=padding)
    out = jax.block_until_ready(out)

    ref = _reference(x, weight, gamma, beta, stride=stride, padding=padding)
    # tolerance accounts for bf16 matmul operands + bf16 inter-pass intermediate
    # (f32 accumulation, f32 BN statistics).
    np.testing.assert_allclose(np.asarray(out), np.asarray(ref),
                               rtol=2e-2, atol=2e-2)
    print("KERNEL_OK")
</pallas_src>

<mosaic_0001>
module attributes {stable_mosaic.version = 11 : i64} {
  func.func @kernel(%arg0: i32, %arg1: i32, %arg2: memref<1x18x18x4xbf16, #tpu.memory_space<vmem>>, %arg3: memref<9x4x128xbf16, #tpu.memory_space<vmem>>, %arg4: memref<1x16x16x128xbf16, #tpu.memory_space<vmem>>, %arg5: memref<1x128xf32, #tpu.memory_space<vmem>>, %arg6: memref<1x128xf32, #tpu.memory_space<vmem>>, %arg7: memref<1x128xf32, #tpu.memory_space<vmem>>) attributes {dimension_semantics = [#tpu.dimension_semantics<arbitrary>, #tpu.dimension_semantics<arbitrary>], iteration_bounds = array<i64: 2, 1>, scalar_prefetch = 0 : i64, scratch_operands = 0 : i64, tpu.core_type = #tpu.core_type<tc>, window_params = [{transform_indices = @transform_0, window_bounds = array<i64: 1, 18, 18, 4>}, {pipeline_mode = #tpu.pipeline_mode<synchronous>, transform_indices = @transform_1, window_bounds = array<i64: 9, 4, 128>}, {transform_indices = @transform_2, window_bounds = array<i64: 1, 16, 16, 128>}, {pipeline_mode = #tpu.pipeline_mode<synchronous>, transform_indices = @transform_3, window_bounds = array<i64: 1, 128>}, {pipeline_mode = #tpu.pipeline_mode<synchronous>, transform_indices = @transform_4, window_bounds = array<i64: 1, 128>}, {pipeline_mode = #tpu.pipeline_mode<synchronous>, transform_indices = @transform_5, window_bounds = array<i64: 1, 128>}]} {
    %c16_i32 = arith.constant 16 : i32
    %0 = arith.muli %arg1, %c16_i32 : i32
    %cst = arith.constant 0.000000e+00 : f32
    %1 = vector.broadcast %cst : f32 to vector<256x128xf32>
    %c0_i32 = arith.constant 0 : i32
    %2 = arith.addi %0, %c0_i32 : i32
    %c0 = arith.constant 0 : index
    %3 = arith.index_cast %2 : i32 to index
    %c0_0 = arith.constant 0 : index
    %c0_1 = arith.constant 0 : index
    %4 = vector.load %arg2[%c0, %3, %c0_0, %c0_1] : memref<1x18x18x4xbf16, #tpu.memory_space<vmem>>, vector<1x16x16x4xbf16>
    %5 = vector.shape_cast %4 : vector<1x16x16x4xbf16> to vector<16x16x4xbf16>
    %6 = vector.shape_cast %5 : vector<16x16x4xbf16> to vector<256x4xbf16>
    %c0_2 = arith.constant 0 : index
    %c0_3 = arith.constant 0 : index
    %c0_4 = arith.constant 0 : index
    %7 = vector.load %arg3[%c0_2, %c0_3, %c0_4] : memref<9x4x128xbf16, #tpu.memory_space<vmem>>, vector<1x4x128xbf16>
    %8 = vector.shape_cast %7 : vector<1x4x128xbf16> to vector<4x128xbf16>
    %cst_5 = arith.constant dense<0.000000e+00> : vector<256x128xf32>
    %9 = tpu.matmul %6, %8, %cst_5 {dimension_numbers = #tpu.dot_dimension_numbers<[1], [0], [0], [1], [0, 0, 1, 1], [], []>} : vector<256x4xbf16>, vector<4x128xbf16>, vector<256x128xf32> -> vector<256x128xf32>
    %10 = arith.addf %1, %9 : vector<256x128xf32>
    %c0_i32_6 = arith.constant 0 : i32
    %11 = arith.addi %0, %c0_i32_6 : i32
    %c0_7 = arith.constant 0 : index
    %12 = arith.index_cast %11 : i32 to index
    %c1 = arith.constant 1 : index
    %c0_8 = arith.constant 0 : index
    %13 = vector.load %arg2[%c0_7, %12, %c1, %c0_8] : memref<1x18x18x4xbf16, #tpu.memory_space<vmem>>, vector<1x16x16x4xbf16>
    %14 = vector.shape_cast %13 : vector<1x16x16x4xbf16> to vector<16x16x4xbf16>
    %15 = vector.shape_cast %14 : vector<16x16x4xbf16> to vector<256x4xbf16>
    %c1_9 = arith.constant 1 : index
    %c0_10 = arith.constant 0 : index
    %c0_11 = arith.constant 0 : index
    %16 = vector.load %arg3[%c1_9, %c0_10, %c0_11] : memref<9x4x128xbf16, #tpu.memory_space<vmem>>, vector<1x4x128xbf16>
    %17 = vector.shape_cast %16 : vector<1x4x128xbf16> to vector<4x128xbf16>
    %cst_12 = arith.constant dense<0.000000e+00> : vector<256x128xf32>
    %18 = tpu.matmul %15, %17, %cst_12 {dimension_numbers = #tpu.dot_dimension_numbers<[1], [0], [0], [1], [0, 0, 1, 1], [], []>} : vector<256x4xbf16>, vector<4x128xbf16>, vector<256x128xf32> -> vector<256x128xf32>
    %19 = arith.addf %10, %18 : vector<256x128xf32>
    %c0_i32_13 = arith.constant 0 : i32
    %20 = arith.addi %0, %c0_i32_13 : i32
    %c0_14 = arith.constant 0 : index
    %21 = arith.index_cast %20 : i32 to index
    %c2 = arith.constant 2 : index
    %c0_15 = arith.constant 0 : index
    %22 = vector.load %arg2[%c0_14, %21, %c2, %c0_15] : memref<1x18x18x4xbf16, #tpu.memory_space<vmem>>, vector<1x16x16x4xbf16>
    %23 = vector.shape_cast %22 : vector<1x16x16x4xbf16> to vector<16x16x4xbf16>
    %24 = vector.shape_cast %23 : vector<16x16x4xbf16> to vector<256x4xbf16>
    %c2_16 = arith.constant 2 : index
    %c0_17 = arith.constant 0 : index
    %c0_18 = arith.constant 0 : index
    %25 = vector.load %arg3[%c2_16, %c0_17, %c0_18] : memref<9x4x128xbf16, #tpu.memory_space<vmem>>, vector<1x4x128xbf16>
    %26 = vector.shape_cast %25 : vector<1x4x128xbf16> to vector<4x128xbf16>
    %cst_19 = arith.constant dense<0.000000e+00> : vector<256x128xf32>
    %27 = tpu.matmul %24, %26, %cst_19 {dimension_numbers = #tpu.dot_dimension_numbers<[1], [0], [0], [1], [0, 0, 1, 1], [], []>} : vector<256x4xbf16>, vector<4x128xbf16>, vector<256x128xf32> -> vector<256x128xf32>
    %28 = arith.addf %19, %27 : vector<256x128xf32>
    %c1_i32 = arith.constant 1 : i32
    %29 = arith.addi %0, %c1_i32 : i32
    %c0_20 = arith.constant 0 : index
    %30 = arith.index_cast %29 : i32 to index
    %c0_21 = arith.constant 0 : index
    %c0_22 = arith.constant 0 : index
    %31 = vector.load %arg2[%c0_20, %30, %c0_21, %c0_22] : memref<1x18x18x4xbf16, #tpu.memory_space<vmem>>, vector<1x16x16x4xbf16>
    %32 = vector.shape_cast %31 : vector<1x16x16x4xbf16> to vector<16x16x4xbf16>
    %33 = vector.shape_cast %32 : vector<16x16x4xbf16> to vector<256x4xbf16>
    %c3 = arith.constant 3 : index
    %c0_23 = arith.constant 0 : index
    %c0_24 = arith.constant 0 : index
    %34 = vector.load %arg3[%c3, %c0_23, %c0_24] : memref<9x4x128xbf16, #tpu.memory_space<vmem>>, vector<1x4x128xbf16>
    %35 = vector.shape_cast %34 : vector<1x4x128xbf16> to vector<4x128xbf16>
    %cst_25 = arith.constant dense<0.000000e+00> : vector<256x128xf32>
    %36 = tpu.matmul %33, %35, %cst_25 {dimension_numbers = #tpu.dot_dimension_numbers<[1], [0], [0], [1], [0, 0, 1, 1], [], []>} : vector<256x4xbf16>, vector<4x128xbf16>, vector<256x128xf32> -> vector<256x128xf32>
    %37 = arith.addf %28, %36 : vector<256x128xf32>
    %c1_i32_26 = arith.constant 1 : i32
    %38 = arith.addi %0, %c1_i32_26 : i32
    %c0_27 = arith.constant 0 : index
    %39 = arith.index_cast %38 : i32 to index
    %c1_28 = arith.constant 1 : index
    %c0_29 = arith.constant 0 : index
    %40 = vector.load %arg2[%c0_27, %39, %c1_28, %c0_29] : memref<1x18x18x4xbf16, #tpu.memory_space<vmem>>, vector<1x16x16x4xbf16>
    %41 = vector.shape_cast %40 : vector<1x16x16x4xbf16> to vector<16x16x4xbf16>
    %42 = vector.shape_cast %41 : vector<16x16x4xbf16> to vector<256x4xbf16>
    %c4 = arith.constant 4 : index
    %c0_30 = arith.constant 0 : index
    %c0_31 = arith.constant 0 : index
    %43 = vector.load %arg3[%c4, %c0_30, %c0_31] : memref<9x4x128xbf16, #tpu.memory_space<vmem>>, vector<1x4x128xbf16>
    %44 = vector.shape_cast %43 : vector<1x4x128xbf16> to vector<4x128xbf16>
    %cst_32 = arith.constant dense<0.000000e+00> : vector<256x128xf32>
    %45 = tpu.matmul %42, %44, %cst_32 {dimension_numbers = #tpu.dot_dimension_numbers<[1], [0], [0], [1], [0, 0, 1, 1], [], []>} : vector<256x4xbf16>, vector<4x128xbf16>, vector<256x128xf32> -> vector<256x128xf32>
    %46 = arith.addf %37, %45 : vector<256x128xf32>
    %c1_i32_33 = arith.constant 1 : i32
    %47 = arith.addi %0, %c1_i32_33 : i32
    %c0_34 = arith.constant 0 : index
    %48 = arith.index_cast %47 : i32 to index
    %c2_35 = arith.constant 2 : index
    %c0_36 = arith.constant 0 : index
    %49 = vector.load %arg2[%c0_34, %48, %c2_35, %c0_36] : memref<1x18x18x4xbf16, #tpu.memory_space<vmem>>, vector<1x16x16x4xbf16>
    %50 = vector.shape_cast %49 : vector<1x16x16x4xbf16> to vector<16x16x4xbf16>
    %51 = vector.shape_cast %50 : vector<16x16x4xbf16> to vector<256x4xbf16>
    %c5 = arith.constant 5 : index
    %c0_37 = arith.constant 0 : index
    %c0_38 = arith.constant 0 : index
    %52 = vector.load %arg3[%c5, %c0_37, %c0_38] : memref<9x4x128xbf16, #tpu.memory_space<vmem>>, vector<1x4x128xbf16>
    %53 = vector.shape_cast %52 : vector<1x4x128xbf16> to vector<4x128xbf16>
    %cst_39 = arith.constant dense<0.000000e+00> : vector<256x128xf32>
    %54 = tpu.matmul %51, %53, %cst_39 {dimension_numbers = #tpu.dot_dimension_numbers<[1], [0], [0], [1], [0, 0, 1, 1], [], []>} : vector<256x4xbf16>, vector<4x128xbf16>, vector<256x128xf32> -> vector<256x128xf32>
    %55 = arith.addf %46, %54 : vector<256x128xf32>
    %c2_i32 = arith.constant 2 : i32
    %56 = arith.addi %0, %c2_i32 : i32
    %c0_40 = arith.constant 0 : index
    %57 = arith.index_cast %56 : i32 to index
    %c0_41 = arith.constant 0 : index
    %c0_42 = arith.constant 0 : index
    %58 = vector.load %arg2[%c0_40, %57, %c0_41, %c0_42] : memref<1x18x18x4xbf16, #tpu.memory_space<vmem>>, vector<1x16x16x4xbf16>
    %59 = vector.shape_cast %58 : vector<1x16x16x4xbf16> to vector<16x16x4xbf16>
    %60 = vector.shape_cast %59 : vector<16x16x4xbf16> to vector<256x4xbf16>
    %c6 = arith.constant 6 : index
    %c0_43 = arith.constant 0 : index
    %c0_44 = arith.constant 0 : index
    %61 = vector.load %arg3[%c6, %c0_43, %c0_44] : memref<9x4x128xbf16, #tpu.memory_space<vmem>>, vector<1x4x128xbf16>
    %62 = vector.shape_cast %61 : vector<1x4x128xbf16> to vector<4x128xbf16>
    %cst_45 = arith.constant dense<0.000000e+00> : vector<256x128xf32>
    %63 = tpu.matmul %60, %62, %cst_45 {dimension_numbers = #tpu.dot_dimension_numbers<[1], [0], [0], [1], [0, 0, 1, 1], [], []>} : vector<256x4xbf16>, vector<4x128xbf16>, vector<256x128xf32> -> vector<256x128xf32>
    %64 = arith.addf %55, %63 : vector<256x128xf32>
    %c2_i32_46 = arith.constant 2 : i32
    %65 = arith.addi %0, %c2_i32_46 : i32
    %c0_47 = arith.constant 0 : index
    %66 = arith.index_cast %65 : i32 to index
    %c1_48 = arith.constant 1 : index
    %c0_49 = arith.constant 0 : index
    %67 = vector.load %arg2[%c0_47, %66, %c1_48, %c0_49] : memref<1x18x18x4xbf16, #tpu.memory_space<vmem>>, vector<1x16x16x4xbf16>
    %68 = vector.shape_cast %67 : vector<1x16x16x4xbf16> to vector<16x16x4xbf16>
    %69 = vector.shape_cast %68 : vector<16x16x4xbf16> to vector<256x4xbf16>
    %c7 = arith.constant 7 : index
    %c0_50 = arith.constant 0 : index
    %c0_51 = arith.constant 0 : index
    %70 = vector.load %arg3[%c7, %c0_50, %c0_51] : memref<9x4x128xbf16, #tpu.memory_space<vmem>>, vector<1x4x128xbf16>
    %71 = vector.shape_cast %70 : vector<1x4x128xbf16> to vector<4x128xbf16>
    %cst_52 = arith.constant dense<0.000000e+00> : vector<256x128xf32>
    %72 = tpu.matmul %69, %71, %cst_52 {dimension_numbers = #tpu.dot_dimension_numbers<[1], [0], [0], [1], [0, 0, 1, 1], [], []>} : vector<256x4xbf16>, vector<4x128xbf16>, vector<256x128xf32> -> vector<256x128xf32>
    %73 = arith.addf %64, %72 : vector<256x128xf32>
    %c2_i32_53 = arith.constant 2 : i32
    %74 = arith.addi %0, %c2_i32_53 : i32
    %c0_54 = arith.constant 0 : index
    %75 = arith.index_cast %74 : i32 to index
    %c2_55 = arith.constant 2 : index
    %c0_56 = arith.constant 0 : index
    %76 = vector.load %arg2[%c0_54, %75, %c2_55, %c0_56] : memref<1x18x18x4xbf16, #tpu.memory_space<vmem>>, vector<1x16x16x4xbf16>
    %77 = vector.shape_cast %76 : vector<1x16x16x4xbf16> to vector<16x16x4xbf16>
    %78 = vector.shape_cast %77 : vector<16x16x4xbf16> to vector<256x4xbf16>
    %c8 = arith.constant 8 : index
    %c0_57 = arith.constant 0 : index
    %c0_58 = arith.constant 0 : index
    %79 = vector.load %arg3[%c8, %c0_57, %c0_58] : memref<9x4x128xbf16, #tpu.memory_space<vmem>>, vector<1x4x128xbf16>
    %80 = vector.shape_cast %79 : vector<1x4x128xbf16> to vector<4x128xbf16>
    %cst_59 = arith.constant dense<0.000000e+00> : vector<256x128xf32>
    %81 = tpu.matmul %78, %80, %cst_59 {dimension_numbers = #tpu.dot_dimension_numbers<[1], [0], [0], [1], [0, 0, 1, 1], [], []>} : vector<256x4xbf16>, vector<4x128xbf16>, vector<256x128xf32> -> vector<256x128xf32>
    %82 = arith.addf %73, %81 : vector<256x128xf32>
    %83 = vector.shape_cast %82 : vector<256x128xf32> to vector<16x16x128xf32>
    %84 = arith.truncf %83 : vector<16x16x128xf32> to vector<16x16x128xbf16>
    %c0_60 = arith.constant 0 : index
    %c0_61 = arith.constant 0 : index
    %c0_62 = arith.constant 0 : index
    %c0_63 = arith.constant 0 : index
    %85 = vector.load %arg4[%c0_60, %c0_61, %c0_62, %c0_63] : memref<1x16x16x128xbf16, #tpu.memory_space<vmem>>, vector<1x16x16x128xbf16>
    %86 = vector.shape_cast %85 : vector<1x16x16x128xbf16> to vector<16x16x128xbf16>
    %87 = vector.shape_cast %84 : vector<16x16x128xbf16> to vector<1x16x16x128xbf16>
    tpu.vector_store %arg4[%c0_60, %c0_61, %c0_62, %c0_63], %87 {strides = array<i32>} : memref<1x16x16x128xbf16, #tpu.memory_space<vmem>>, vector<1x16x16x128xbf16>,
    %c0_i32_64 = arith.constant 0 : i32
    %88 = arith.cmpi eq, %arg0, %c0_i32_64 : i32
    %c0_i32_65 = arith.constant 0 : i32
    %89 = arith.cmpi eq, %arg1, %c0_i32_65 : i32
    %90 = arith.andi %88, %89 : i1
    %91 = arith.extui %90 : i1 to i32
    %c0_i32_66 = arith.constant 0 : i32
    %92 = arith.cmpi ne, %91, %c0_i32_66 : i32
    scf.if %92 {
      %cst_79 = arith.constant dense<0.000000e+00> : vector<128xf32>
      %107 = vector.multi_reduction <add>, %82, %cst_79 [0] : vector<256x128xf32> to vector<128xf32>
      %108 = vector.shape_cast %107 : vector<128xf32> to vector<1x128xf32>
      %cst_80 = arith.constant 3.906250e-03 : f32
      %109 = vector.broadcast %cst_80 : f32 to vector<1x128xf32>
      %110 = arith.mulf %108, %109 : vector<1x128xf32>
      %c0_81 = arith.constant 0 : index
      %c0_82 = arith.constant 0 : index
      %111 = vector.load %arg7[%c0_81, %c0_82] : memref<1x128xf32, #tpu.memory_space<vmem>>, vector<1x128xf32>
      tpu.vector_store %arg7[%c0_81, %c0_82], %110 {strides = array<i32>} : memref<1x128xf32, #tpu.memory_space<vmem>>, vector<1x128xf32>,
      %cst_83 = arith.constant 0.000000e+00 : f32
      %112 = vector.broadcast %cst_83 : f32 to vector<1x128xf32>
      %c0_84 = arith.constant 0 : index
      %c0_85 = arith.constant 0 : index
      %113 = vector.load %arg5[%c0_84, %c0_85] : memref<1x128xf32, #tpu.memory_space<vmem>>, vector<1x128xf32>
      tpu.vector_store %arg5[%c0_84, %c0_85], %112 {strides = array<i32>} : memref<1x128xf32, #tpu.memory_space<vmem>>, vector<1x128xf32>,
      %cst_86 = arith.constant 0.000000e+00 : f32
      %114 = vector.broadcast %cst_86 : f32 to vector<1x128xf32>
      %c0_87 = arith.constant 0 : index
      %c0_88 = arith.constant 0 : index
      %115 = vector.load %arg6[%c0_87, %c0_88] : memref<1x128xf32, #tpu.memory_space<vmem>>, vector<1x128xf32>
      tpu.vector_store %arg6[%c0_87, %c0_88], %114 {strides = array<i32>} : memref<1x128xf32, #tpu.memory_space<vmem>>, vector<1x128xf32>,
    } else {
    }
    %c0_67 = arith.constant 0 : index
    %c0_68 = arith.constant 0 : index
    %93 = vector.load %arg7[%c0_67, %c0_68] : memref<1x128xf32, #tpu.memory_space<vmem>>, vector<1x128xf32>
    %94 = vector.broadcast %93 : vector<1x128xf32> to vector<256x128xf32>
    %95 = arith.subf %82, %94 : vector<256x128xf32>
    %c0_69 = arith.constant 0 : index
    %c0_70 = arith.constant 0 : index
    %96 = vector.load %arg5[%c0_69, %c0_70] : memref<1x128xf32, #tpu.memory_space<vmem>>, vector<1x128xf32>
    %cst_71 = arith.constant dense<0.000000e+00> : vector<128xf32>
    %97 = vector.multi_reduction <add>, %95, %cst_71 [0] : vector<256x128xf32> to vector<128xf32>
    %98 = vector.shape_cast %97 : vector<128xf32> to vector<1x128xf32>
    %99 = arith.addf %96, %98 : vector<1x128xf32>
    %c0_72 = arith.constant 0 : index
    %c0_73 = arith.constant 0 : index
    %100 = vector.load %arg5[%c0_72, %c0_73] : memref<1x128xf32, #tpu.memory_space<vmem>>, vector<1x128xf32>
    tpu.vector_store %arg5[%c0_72, %c0_73], %99 {strides = array<i32>} : memref<1x128xf32, #tpu.memory_space<vmem>>, vector<1x128xf32>,
    %c0_74 = arith.constant 0 : index
    %c0_75 = arith.constant 0 : index
    %101 = vector.load %arg6[%c0_74, %c0_75] : memref<1x128xf32, #tpu.memory_space<vmem>>, vector<1x128xf32>
    %102 = arith.mulf %95, %95 : vector<256x128xf32>
    %cst_76 = arith.constant dense<0.000000e+00> : vector<128xf32>
    %103 = vector.multi_reduction <add>, %102, %cst_76 [0] : vector<256x128xf32> to vector<128xf32>
    %104 = vector.shape_cast %103 : vector<128xf32> to vector<1x128xf32>
    %105 = arith.addf %101, %104 : vector<1x128xf32>
    %c0_77 = arith.constant 0 : index
    %c0_78 = arith.constant 0 : index
    %106 = vector.load %arg6[%c0_77, %c0_78] : memref<1x128xf32, #tpu.memory_space<vmem>>, vector<1x128xf32>
    tpu.vector_store %arg6[%c0_77, %c0_78], %105 {strides = array<i32>} : memref<1x128xf32, #tpu.memory_space<vmem>>, vector<1x128xf32>,
    return
  }
  func.func @transform_0(%arg0: i32, %arg1: i32) -> (i32, i32, i32, i32) {
    %c0_i32 = arith.constant 0 : i32
    %c0_i32_0 = arith.constant 0 : i32
    %c0_i32_1 = arith.constant 0 : i32
    %c0_i32_2 = arith.constant 0 : i32
    return %arg0, %c0_i32, %c0_i32_0, %c0_i32_1 : i32, i32, i32, i32
  }
  func.func @transform_1(%arg0: i32, %arg1: i32) -> (i32, i32, i32) {
    %c0_i32 = arith.constant 0 : i32
    %c0_i32_0 = arith.constant 0 : i32
    %c0_i32_1 = arith.constant 0 : i32
    %c0_i32_2 = arith.constant 0 : i32
    return %c0_i32, %c0_i32_0, %c0_i32_1 : i32, i32, i32
  }
  func.func @transform_2(%arg0: i32, %arg1: i32) -> (i32, i32, i32, i32) {
    %c0_i32 = arith.constant 0 : i32
    %c0_i32_0 = arith.constant 0 : i32
    %c0_i32_1 = arith.constant 0 : i32
    return %arg0, %arg1, %c0_i32, %c0_i32_0 : i32, i32, i32, i32
  }
  func.func @transform_3(%arg0: i32, %arg1: i32) -> (i32, i32) {
    %c0_i32 = arith.constant 0 : i32
    %c0_i32_0 = arith.constant 0 : i32
    %c0_i32_1 = arith.constant 0 : i32
    return %c0_i32, %c0_i32_0 : i32, i32
  }
  func.func @transform_4(%arg0: i32, %arg1: i32) -> (i32, i32) {
    %c0_i32 = arith.constant 0 : i32
    %c0_i32_0 = arith.constant 0 : i32
    %c0_i32_1 = arith.constant 0 : i32
    return %c0_i32, %c0_i32_0 : i32, i32
  }
  func.func @transform_5(%arg0: i32, %arg1: i32) -> (i32, i32) {
    %c0_i32 = arith.constant 0 : i32
    %c0_i32_0 = arith.constant 0 : i32
    %c0_i32_1 = arith.constant 0 : i32
    return %c0_i32, %c0_i32_0 : i32, i32
  }
}

</mosaic_0001>

<llo_original>
// kernel: tpu_custom_call.1
$region0: #{tpu_custom_call.1}
  #allocation0 [shape = 'u32[]', space=smem, size = 0x4, offset = 0x4, fixed_abs, tag = 'smem constant byte address 0x4 - core index']
  #allocation1 [shape = 'u32[144,128]{1,0:T(1,128)}', space=vmem, size = 0x12000, scoped, tag = 'internal scratch']
  %s0 = inlined_call_operand.vmem [shape: bf16[2,18,18,4], index: 0, kind: input, shape index: {}]
  %s1 = inlined_call_operand.vmem [shape: bf16[9,4,128], index: 1, kind: input, shape index: {}]
  %s2 = inlined_call_operand.hbm [shape: bf16[2,16,16,128], index: 2, kind: output, shape index: {0}]
  %s3 = inlined_call_operand.hbm [shape: f32[1,128], index: 3, kind: output, shape index: {1}]
  %s4 = inlined_call_operand.hbm [shape: f32[1,128], index: 4, kind: output, shape index: {2}]
  %s5 = inlined_call_operand.hbm [shape: f32[1,128], index: 5, kind: output, shape index: {3}]
  %6 = xla_tuple %s2, %s3, %s4, %s5
  %s7 = sld [smem:[#allocation0]]
  $region69: #{tpu_custom_call.1} parent=0
    _
  %s9 = ssub.s32 1, %s7
  %s10 = scalar_select 0, %s9, %s7
  $region1: #{tpu_custom_call.1} parent=0
    #allocation2 [shape = 'u8[131072]{0}', space=vmem, size = 0x20000, scoped, tag = 'output window, operand 0']
    #allocation3 [shape = 's32[2]{0}', space=sflag, size = 0x8, scoped, tag = 'scoped memory for tpu_custom_call.1']
    #allocation4 [shape = 'u8[512]{0}', space=vmem, size = 0x400, scoped, tag = 'output window, operand 1, single buffered']
    #allocation5 [shape = 's32[1]{0}', space=sflag, size = 0x4, scoped, tag = 'scoped memory for tpu_custom_call.1']
    #allocation6 [shape = 'u8[512]{0}', space=vmem, size = 0x400, scoped, tag = 'output window, operand 2, single buffered']
    #allocation7 [shape = 'u8[512]{0}', space=vmem, size = 0x400, scoped, tag = 'output window, operand 3, single buffered']
    #allocation8 [shape = 's32[1]{0}', space=sflag, size = 0x4, scoped, tag = 'scoped memory for tpu_custom_call.1']
    %11 = vsyncpa [#allocation3], 0
    %s12 = scalar_lea.sflag [#allocation3], 1
    %13 = vsyncpa %s12, 0
    %14 = vsyncpa [#allocation5], 0
    %15 = vsyncpa [#allocation8], 0
    loop: start=0, step=1, limit=4
    $region2: #{tpu_custom_call.1} parent=1 // loop_pre_header
      _
    $region3: #{tpu_custom_call.1} parent=1 // loop_header
      %s17 = sphi 0, %s21
      %p18 = scmp.ge.s32.totalorder %s17, 4
      %s24 = sphi 0, %s36
      %s25 = sphi 0, %s32
      %s26 = sphi 0, %s24
      %s27 = sphi 0, %s25
      %s28 = sphi 0, %s26
      %s29 = sphi 0, %s27
      %s39 = sphi 0, %s41
      %s42 = sphi 0, %s39
      %s43 = sphi 0, %s42
      %s59 = sphi 0, %s43
      %s63 = sphi 0, %s63
      %s65 = sphi 0, %s63
      %s66 = sphi 0, %s65
      %s80 = sphi 0, %s66
      %s88 = sphi 0, %s90
      %s91 = sphi 0, %s88
      %s92 = sphi 0, %s91
      %s108 = sphi 0, %s92
      %s112 = sphi 0, %s112
      %s114 = sphi 0, %s112
      %s115 = sphi 0, %s114
      %s129 = sphi 0, %s115
      %s133 = sphi 0, %s133
      %s135 = sphi 0, %s133
      %s136 = sphi 0, %s135
      %s150 = sphi 0, %s136
      %s154 = sphi 0, %s154
      %s156 = sphi 0, %s154
      %s157 = sphi 0, %s156
      %s171 = sphi 0, %s157
    $region4: #{tpu_custom_call.1} parent=1 // loop_header_branch
      %20 = sbr.rel (%p18) target = $region8
    $region5: #{tpu_custom_call.1} parent=1 // loop_body
      %s22 = ssub.s32 %s17, 1
      %s23 = ssub.s32 %s17, 2
      %s30 = sadd.s32 1, %s25
      %p31 = scmp.ge.s32.totalorder %s30, 1
      %s32 = scalar_select %p31, 0, %s30
      %s33 = sadd.s32 1, %s24
      %s34 = scalar_select %p31, %s33, %s24
      %p35 = scmp.ge.s32.totalorder %s34, 2
      %s36 = scalar_select %p35, 0, %s34
      %s37 = ssub.s32 %s24, %s36
      %p38 = scmp.eq.s32.totalorder %s37, 0
      %s40 = sadd.s32 %s39, 1
      %s41 = scalar_select %p38, %s39, %s40
      %p44 = pneg %p38
      %p45 = scmp.eq.s32.totalorder %s17, 1
      %p46 = por %p44, %p45
      %p47 = scmp.ne.s32.totalorder %s39, %s42
      %p48 = scmp.eq.s32.totalorder %s17, 0
      %p49 = por %p47, %p48
      %p50 = scmp.ne.s32.totalorder %s39, %s42
      %p51 = scmp.eq.s32.totalorder %s22, 1
      %p52 = por %p50, %p51
      %p53 = scmp.ne.s32.totalorder %s42, %s43
      %p54 = scmp.eq.s32.totalorder %s22, 0
      %p55 = por %p53, %p54
      %p56 = scmp.ne.s32.totalorder %s42, %s43
      %p57 = scmp.eq.s32.totalorder %s23, 1
      %p58 = por %p56, %p57
      %p60 = scmp.ne.s32.totalorder %s43, %s59
      %p61 = scmp.eq.s32.totalorder %s23, 0
      %p62 = por %p60, %p61
      %s64 = sadd.s32 %s63, 1
      %p67 = scmp.eq.s32.totalorder %s17, 1
      %p68 = scmp.ne.s32.totalorder %s63, %s65
      %p69 = scmp.eq.s32.totalorder %s17, 0
      %p70 = por %p68, %p69
      %p71 = scmp.ne.s32.totalorder %s63, %s65
      %p72 = scmp.eq.s32.totalorder %s22, 1
      %p73 = por %p71, %p72
      %p74 = scmp.ne.s32.totalorder %s65, %s66
      %p75 = scmp.eq.s32.totalorder %s22, 0
      %p76 = por %p74, %p75
      %p77 = scmp.ne.s32.totalorder %s65, %s66
      %p78 = scmp.eq.s32.totalorder %s23, 1
      %p79 = por %p77, %p78
      %p81 = scmp.ne.s32.totalorder %s66, %s80
      %p82 = scmp.eq.s32.totalorder %s23, 0
      %p83 = por %p81, %p82
      %s84 = ssub.s32 %s24, %s36
      %s85 = ssub.s32 %s25, %s32
      %s86 = sor.u32 %s84, %s85
      %p87 = scmp.eq.s32.totalorder %s86, 0
      %s89 = sadd.s32 %s88, 1
      %s90 = scalar_select %p87, %s88, %s89
      %p93 = pneg %p87
      %p94 = scmp.eq.s32.totalorder %s17, 1
      %p95 = por %p93, %p94
      %p96 = scmp.ne.s32.totalorder %s88, %s91
      %p97 = scmp.eq.s32.totalorder %s17, 0
      %p98 = por %p96, %p97
      %p99 = scmp.ne.s32.totalorder %s88, %s91
      %p100 = scmp.eq.s32.totalorder %s22, 1
      %p101 = por %p99, %p100
      %p102 = scmp.ne.s32.totalorder %s91, %s92
      %p103 = scmp.eq.s32.totalorder %s22, 0
      %p104 = por %p102, %p103
      %p105 = scmp.ne.s32.totalorder %s91, %s92
      %p106 = scmp.eq.s32.totalorder %s23, 1
      %p107 = por %p105, %p106
      %p109 = scmp.ne.s32.totalorder %s92, %s108
      %p110 = scmp.eq.s32.totalorder %s23, 0
      %p111 = por %p109, %p110
      %s113 = sadd.s32 %s112, 1
      %p116 = scmp.eq.s32.totalorder %s17, 1
      %p117 = scmp.ne.s32.totalorder %s112, %s114
      %p118 = scmp.eq.s32.totalorder %s17, 0
      %p119 = por %p117, %p118
      %p120 = scmp.ne.s32.totalorder %s112, %s114
      %p121 = scmp.eq.s32.totalorder %s22, 1
      %p122 = por %p120, %p121
      %p123 = scmp.ne.s32.totalorder %s114, %s115
      %p124 = scmp.eq.s32.totalorder %s22, 0
      %p125 = por %p123, %p124
      %p126 = scmp.ne.s32.totalorder %s114, %s115
      %p127 = scmp.eq.s32.totalorder %s23, 1
      %p128 = por %p126, %p127
      %p130 = scmp.ne.s32.totalorder %s115, %s129
      %p131 = scmp.eq.s32.totalorder %s23, 0
      %p132 = por %p130, %p131
      %s134 = sadd.s32 %s133, 1
      %p137 = scmp.eq.s32.totalorder %s17, 1
      %p138 = scmp.ne.s32.totalorder %s133, %s135
      %p139 = scmp.eq.s32.totalorder %s17, 0
      %p140 = por %p138, %p139
      %p141 = scmp.ne.s32.totalorder %s133, %s135
      %p142 = scmp.eq.s32.totalorder %s22, 1
      %p143 = por %p141, %p142
      %p144 = scmp.ne.s32.totalorder %s135, %s136
      %p145 = scmp.eq.s32.totalorder %s22, 0
      %p146 = por %p144, %p145
      %p147 = scmp.ne.s32.totalorder %s135, %s136
      %p148 = scmp.eq.s32.totalorder %s23, 1
      %p149 = por %p147, %p148
      %p151 = scmp.ne.s32.totalorder %s136, %s150
      %p152 = scmp.eq.s32.totalorder %s23, 0
      %p153 = por %p151, %p152
      %s155 = sadd.s32 %s154, 1
      %p158 = scmp.eq.s32.totalorder %s17, 1
      %p159 = scmp.ne.s32.totalorder %s154, %s156
      %p160 = scmp.eq.s32.totalorder %s17, 0
      %p161 = por %p159, %p160
      %p162 = scmp.ne.s32.totalorder %s154, %s156
      %p163 = scmp.eq.s32.totalorder %s22, 1
      %p164 = por %p162, %p163
      %p165 = scmp.ne.s32.totalorder %s156, %s157
      %p166 = scmp.eq.s32.totalorder %s22, 0
      %p167 = por %p165, %p166
      %p168 = scmp.ne.s32.totalorder %s156, %s157
      %p169 = scmp.eq.s32.totalorder %s23, 1
      %p170 = por %p168, %p169
      %p172 = scmp.ne.s32.totalorder %s157, %s171
      %p173 = scmp.eq.s32.totalorder %s23, 0
      %p174 = por %p172, %p173
      %p175 = scmp.le.s32.totalorder 1, %s17
      %p176 = scmp.lt.s32.totalorder %s17, 3
      %p177 = pnand %p175, %p176
      %p178 = pneg %p177
      // Predicated region
      $region9: #{tpu_custom_call.1} parent=5 // pred_check
        _
      $region10: #{tpu_custom_call.1} parent=5 // pred_check_branch
        %180 = sbr.rel (%p177) target = $region12
      $region11: #{tpu_custom_call.1} parent=5 // pred_region
        %s181 = ssub.s32 %s17, 1
        // Predicated region
        $region13: #{tpu_custom_call.1} parent=11 // pred_check
          %p182 = pneg %p76
        $region14: #{tpu_custom_call.1} parent=11 // pred_check_branch
          %184 = sbr.rel (%p182) target = $region16
        $region15: #{tpu_custom_call.1} parent=11 // pred_region
          _
        $region16: #{tpu_custom_call.1} parent=11 // pred_fallthru
          _
      $region12: #{tpu_custom_call.1} parent=5 // pred_fallthru
        _
      %p185 = scmp.lt.s32.totalorder %s17, 2
      // Predicated region
      $region17: #{tpu_custom_call.1} parent=5 // pred_check
        %p186 = pneg %p185
      $region18: #{tpu_custom_call.1} parent=5 // pred_check_branch
        %188 = sbr.rel (%p186) target = $region20
      $region19: #{tpu_custom_call.1} parent=5 // pred_region
        // Predicated region
        $region21: #{tpu_custom_call.1} parent=19 // pred_check
          %p189 = pneg %p49
        $region22: #{tpu_custom_call.1} parent=19 // pred_check_branch
          %191 = sbr.rel (%p189) target = $region24
        $region23: #{tpu_custom_call.1} parent=19 // pred_region
          %p192 = scmp.lt.s32.totalorder %s24, 1
          %s193 = scalar_select %p192, %s24, 1
          %s194 = smul.addr %s193, 54
          %s195 = smul.addr %s194, 4
          %s196 = scalar_lea.vmem %s0, %s195
        $region24: #{tpu_custom_call.1} parent=19 // pred_fallthru
          _
      $region20: #{tpu_custom_call.1} parent=5 // pred_fallthru
        _
      %p197 = scmp.le.s32.totalorder 1, %s17
      %p198 = scmp.lt.s32.totalorder %s17, 3
      %p199 = pnand %p197, %p198
      %p200 = pneg %p199
      // Predicated region
      $region25: #{tpu_custom_call.1} parent=5 // pred_check
        _
      $region26: #{tpu_custom_call.1} parent=5 // pred_check_branch
        %202 = sbr.rel (%p199) target = $region28
      $region27: #{tpu_custom_call.1} parent=5 // pred_region
        %s203 = ssub.s32 %s17, 1
        %p204 = scmp.lt.s32.totalorder %s26, 1
        %s205 = scalar_select %p204, %s26, 1
        %s206 = smul.addr %s205, 54
        %s207 = smul.addr %s206, 4
        %s208 = scalar_lea.vmem %s0, %s207
        %p209 = pneg %p55
        %p210 = pneg %p52
        %p211 = pneg %p76
        %p212 = pneg %p73
        %p213 = pneg %p104
        %p214 = pneg %p101
        %s215 = sand.u32 %s91, 1
        %s216 = scalar_lea.sflag [#allocation3], %s215
        %s217 = sand.u32 %s91, 1
        %s218 = smul.addr %s217, 128
        %s219 = scalar_lea.vmem [#allocation2], %s218
        %p220 = pneg %p125
        %p221 = pneg %p122
        %p222 = pneg %p146
        %p223 = pneg %p143
        %p224 = pneg %p167
        %p225 = pneg %p164
        %p226 = scmp.lt.s32.totalorder %s26, 1
        %s227 = scalar_select %p226, %s26, 1
        %s228 = smul.addr %s227, 54
        %s229 = smul.addr %s228, 4
        %s230 = scalar_lea.vmem %s0, %s229
        %s231 = smul.u32 16, %s27
        %s233 = smul.u32 %s27, 16
        %s234 = smul.u32 %s233, 3
        %s235 = smul.addr %s234, 4
        %s236 = scalar_lea.vmem %s230, %s235
        %v237 = vld [vmem:[%s236] sm:$0xf]
        %v238 = vld [vmem:[%s236 + $0x4] sm:$0xf]
        %v239 = vld [vmem:[%s236 + $0xc] sm:$0xf]
        %v240 = vld [vmem:[%s236 + $0x10] sm:$0xf]
        %v241 = vld [vmem:[%s236 + $0x18] sm:$0xf]
        %v242 = vld [vmem:[%s236 + $0x1c] sm:$0xf]
        %v243 = vld [vmem:[%s236 + $0x24] sm:$0xf]
        %v244 = vld [vmem:[%s236 + $0x28] sm:$0xf]
        %v245 = vld [vmem:[%s236 + $0x30] sm:$0xf]
        %v246 = vld [vmem:[%s236 + $0x34] sm:$0xf]
        %v247 = vld [vmem:[%s236 + $0x3c] sm:$0xf]
        %v248 = vld [vmem:[%s236 + $0x40] sm:$0xf]
        %v249 = vld [vmem:[%s236 + $0x48] sm:$0xf]
        %v250 = vld [vmem:[%s236 + $0x4c] sm:$0xf]
        %v251 = vld [vmem:[%s236 + $0x54] sm:$0xf]
        %v252 = vld [vmem:[%s236 + $0x58] sm:$0xf]
        %v253 = vld [vmem:[%s236 + $0x60] sm:$0xf]
        %v254 = vld [vmem:[%s236 + $0x64] sm:$0xf]
        %v255 = vld [vmem:[%s236 + $0x6c] sm:$0xf]
        %v256 = vld [vmem:[%s236 + $0x70] sm:$0xf]
        %v257 = vld [vmem:[%s236 + $0x78] sm:$0xf]
        %v258 = vld [vmem:[%s236 + $0x7c] sm:$0xf]
        %v259 = vld [vmem:[%s236 + $0x84] sm:$0xf]
        %v260 = vld [vmem:[%s236 + $0x88] sm:$0xf]
        %v261 = vld [vmem:[%s236 + $0x90] sm:$0xf]
        %v262 = vld [vmem:[%s236 + $0x94] sm:$0xf]
        %v263 = vld [vmem:[%s236 + $0x9c] sm:$0xf]
        %v264 = vld [vmem:[%s236 + $0xa0] sm:$0xf]
        %v265 = vld [vmem:[%s236 + $0xa8] sm:$0xf]
        %v266 = vld [vmem:[%s236 + $0xac] sm:$0xf]
        %v267 = vld [vmem:[%s236 + $0xb4] sm:$0xf]
        %v268 = vld [vmem:[%s236 + $0xb8] sm:$0xf]
        %v269 = vld [vmem:[%s1] sm:$0x3]
        %v270 = vld [vmem:[%s236 + $0x8] sm:$0x1]
        %v271 = vld [vmem:[%s236 + $0x14] sm:$0x1]
        %v272 = vld [vmem:[%s236 + $0x20] sm:$0x1]
        %v273 = vld [vmem:[%s236 + $0x2c] sm:$0x1]
        %v274 = vld [vmem:[%s236 + $0x38] sm:$0x1]
        %v275 = vld [vmem:[%s236 + $0x44] sm:$0x1]
        %v276 = vld [vmem:[%s236 + $0x50] sm:$0x1]
        %v277 = vld [vmem:[%s236 + $0x5c] sm:$0x1]
        %v278 = vld [vmem:[%s236 + $0x68] sm:$0x1]
        %v279 = vld [vmem:[%s236 + $0x74] sm:$0x1]
        %v280 = vld [vmem:[%s236 + $0x80] sm:$0x1]
        %v281 = vld [vmem:[%s236 + $0x8c] sm:$0x1]
        %v282 = vld [vmem:[%s236 + $0x98] sm:$0x1]
        %v283 = vld [vmem:[%s236 + $0xa4] sm:$0x1]
        %v284 = vld [vmem:[%s236 + $0xb0] sm:$0x1]
        %v285 = vld [vmem:[%s236 + $0xbc] sm:$0x1]
        %vm286 = vsmask.f32 3328
        %vm287 = vsmask.f32 7440
        %vm288 = vmor %vm286, %vm287
        %v290 = vshrl.u32 %v237, 16
        %v292 = vrot.slane %v290, 4
        %v293 = vshll.u32 %v237, 16
        %v295 = vrot.slane %v293, 5
        %v296 = vor.u32 %v292, %v295
        %v297 = vrot.slane %v296, 4
        %v299 = vshll.u32 %v238, 16
        %v301 = vrot.slane %v299, 5
        %v302 = vsel %vm288, %v297, %v301
        %v303 = vshrl.u32 %v238, 16
        %v305 = vrot.slane %v303, 4
        %v306 = vor.u32 %v305, %v301
        %v307 = vrot.slane %v306, 4
        %v309 = vshll.u32 %v270, 16
        %v311 = vrot.slane %v309, 5
        %v312 = vsel %vm288, %v307, %v311
        %v314 = vshrl.u32 %v239, 16
        %v316 = vrot.slane %v314, 4
        %v317 = vshll.u32 %v239, 16
        %v319 = vrot.slane %v317, 5
        %v320 = vor.u32 %v316, %v319
        %v321 = vrot.slane %v320, 4
        %v323 = vshll.u32 %v240, 16
        %v325 = vrot.slane %v323, 5
        %v326 = vsel %vm288, %v321, %v325
        %v327 = vshrl.u32 %v240, 16
        %v329 = vrot.slane %v327, 4
        %v330 = vor.u32 %v329, %v325
        %v331 = vrot.slane %v330, 4
        %v333 = vshll.u32 %v271, 16
        %v335 = vrot.slane %v333, 5
        %v336 = vsel %vm288, %v331, %v335
        %v338 = vshrl.u32 %v241, 16
        %v340 = vrot.slane %v338, 4
        %v341 = vshll.u32 %v241, 16
        %v343 = vrot.slane %v341, 5
        %v344 = vor.u32 %v340, %v343
        %v345 = vrot.slane %v344, 4
        %v347 = vshll.u32 %v242, 16
        %v349 = vrot.slane %v347, 5
        %v350 = vsel %vm288, %v345, %v349
        %v351 = vshrl.u32 %v242, 16
        %v353 = vrot.slane %v351, 4
        %v354 = vor.u32 %v353, %v349
        %v355 = vrot.slane %v354, 4
        %v357 = vshll.u32 %v272, 16
        %v359 = vrot.slane %v357, 5
        %v360 = vsel %vm288, %v355, %v359
        %v362 = vshrl.u32 %v243, 16
        %v364 = vrot.slane %v362, 4
        %v365 = vshll.u32 %v243, 16
        %v367 = vrot.slane %v365, 5
        %v368 = vor.u32 %v364, %v367
        %v369 = vrot.slane %v368, 4
        %v371 = vshll.u32 %v244, 16
        %v373 = vrot.slane %v371, 5
        %v374 = vsel %vm288, %v369, %v373
        %v375 = vshrl.u32 %v244, 16
        %v377 = vrot.slane %v375, 4
        %v378 = vor.u32 %v377, %v373
        %v379 = vrot.slane %v378, 4
        %v381 = vshll.u32 %v273, 16
        %v383 = vrot.slane %v381, 5
        %v384 = vsel %vm288, %v379, %v383
        %v386 = vshrl.u32 %v245, 16
        %v388 = vrot.slane %v386, 4
        %v389 = vshll.u32 %v245, 16
        %v391 = vrot.slane %v389, 5
        %v392 = vor.u32 %v388, %v391
        %v393 = vrot.slane %v392, 4
        %v395 = vshll.u32 %v246, 16
        %v397 = vrot.slane %v395, 5
        %v398 = vsel %vm288, %v393, %v397
        %v399 = vshrl.u32 %v246, 16
        %v401 = vrot.slane %v399, 4
        %v402 = vor.u32 %v401, %v397
        %v403 = vrot.slane %v402, 4
        %v405 = vshll.u32 %v274, 16
        %v407 = vrot.slane %v405, 5
        %v408 = vsel %vm288, %v403, %v407
        %v410 = vshrl.u32 %v247, 16
        %v412 = vrot.slane %v410, 4
        %v413 = vshll.u32 %v247, 16
        %v415 = vrot.slane %v413, 5
        %v416 = vor.u32 %v412, %v415
        %v417 = vrot.slane %v416, 4
        %v419 = vshll.u32 %v248, 16
        %v421 = vrot.slane %v419, 5
        %v422 = vsel %vm288, %v417, %v421
        %v423 = vshrl.u32 %v248, 16
        %v425 = vrot.slane %v423, 4
        %v426 = vor.u32 %v425, %v421
        %v427 = vrot.slane %v426, 4
        %v429 = vshll.u32 %v275, 16
        %v431 = vrot.slane %v429, 5
        %v432 = vsel %vm288, %v427, %v431
        %v434 = vshrl.u32 %v249, 16
        %v436 = vrot.slane %v434, 4
        %v437 = vshll.u32 %v249, 16
        %v439 = vrot.slane %v437, 5
        %v440 = vor.u32 %v436, %v439
        %v441 = vrot.slane %v440, 4
        %v443 = vshll.u32 %v250, 16
        %v445 = vrot.slane %v443, 5
        %v446 = vsel %vm288, %v441, %v445
        %v447 = vshrl.u32 %v250, 16
        %v449 = vrot.slane %v447, 4
        %v450 = vor.u32 %v449, %v445
        %v451 = vrot.slane %v450, 4
        %v453 = vshll.u32 %v276, 16
        %v455 = vrot.slane %v453, 5
        %v456 = vsel %vm288, %v451, %v455
        %v458 = vshrl.u32 %v251, 16
        %v460 = vrot.slane %v458, 4
        %v461 = vshll.u32 %v251, 16
        %v463 = vrot.slane %v461, 5
        %v464 = vor.u32 %v460, %v463
        %v465 = vrot.slane %v464, 4
        %v467 = vshll.u32 %v252, 16
        %v469 = vrot.slane %v467, 5
        %v470 = vsel %vm288, %v465, %v469
        %v471 = vshrl.u32 %v252, 16
        %v473 = vrot.slane %v471, 4
        %v474 = vor.u32 %v473, %v469
        %v475 = vrot.slane %v474, 4
        %v477 = vshll.u32 %v277, 16
        %v479 = vrot.slane %v477, 5
        %v480 = vsel %vm288, %v475, %v479
        %v482 = vshrl.u32 %v253, 16
        %v484 = vrot.slane %v482, 4
        %v485 = vshll.u32 %v253, 16
        %v487 = vrot.slane %v485, 5
        %v488 = vor.u32 %v484, %v487
        %v489 = vrot.slane %v488, 4
        %v491 = vshll.u32 %v254, 16
        %v493 = vrot.slane %v491, 5
        %v494 = vsel %vm288, %v489, %v493
        %v495 = vshrl.u32 %v254, 16
        %v497 = vrot.slane %v495, 4
        %v498 = vor.u32 %v497, %v493
        %v499 = vrot.slane %v498, 4
        %v501 = vshll.u32 %v278, 16
        %v503 = vrot.slane %v501, 5
        %v504 = vsel %vm288, %v499, %v503
        %v506 = vshrl.u32 %v255, 16
        %v508 = vrot.slane %v506, 4
        %v509 = vshll.u32 %v255, 16
        %v511 = vrot.slane %v509, 5
        %v512 = vor.u32 %v508, %v511
        %v513 = vrot.slane %v512, 4
        %v515 = vshll.u32 %v256, 16
        %v517 = vrot.slane %v515, 5
        %v518 = vsel %vm288, %v513, %v517
        %v519 = vshrl.u32 %v256, 16
        %v521 = vrot.slane %v519, 4
        %v522 = vor.u32 %v521, %v517
        %v523 = vrot.slane %v522, 4
        %v525 = vshll.u32 %v279, 16
        %v527 = vrot.slane %v525, 5
        %v528 = vsel %vm288, %v523, %v527
        %v530 = vshrl.u32 %v257, 16
        %v532 = vrot.slane %v530, 4
        %v533 = vshll.u32 %v257, 16
        %v535 = vrot.slane %v533, 5
        %v536 = vor.u32 %v532, %v535
        %v537 = vrot.slane %v536, 4
        %v539 = vshll.u32 %v258, 16
        %v541 = vrot.slane %v539, 5
        %v542 = vsel %vm288, %v537, %v541
        %v543 = vshrl.u32 %v258, 16
        %v545 = vrot.slane %v543, 4
        %v546 = vor.u32 %v545, %v541
        %v547 = vrot.slane %v546, 4
        %v549 = vshll.u32 %v280, 16
        %v551 = vrot.slane %v549, 5
        %v552 = vsel %vm288, %v547, %v551
        %v554 = vshrl.u32 %v259, 16
        %v556 = vrot.slane %v554, 4
        %v557 = vshll.u32 %v259, 16
        %v559 = vrot.slane %v557, 5
        %v560 = vor.u32 %v556, %v559
        %v561 = vrot.slane %v560, 4
        %v563 = vshll.u32 %v260, 16
        %v565 = vrot.slane %v563, 5
        %v566 = vsel %vm288, %v561, %v565
        %v567 = vshrl.u32 %v260, 16
        %v569 = vrot.slane %v567, 4
        %v570 = vor.u32 %v569, %v565
        %v571 = vrot.slane %v570, 4
        %v573 = vshll.u32 %v281, 16
        %v575 = vrot.slane %v573, 5
        %v576 = vsel %vm288, %v571, %v575
        %v578 = vshrl.u32 %v261, 16
        %v580 = vrot.slane %v578, 4
        %v581 = vshll.u32 %v261, 16
        %v583 = vrot.slane %v581, 5
        %v584 = vor.u32 %v580, %v583
        %v585 = vrot.slane %v584, 4
        %v587 = vshll.u32 %v262, 16
        %v589 = vrot.slane %v587, 5
        %v590 = vsel %vm288, %v585, %v589
        %v591 = vshrl.u32 %v262, 16
        %v593 = vrot.slane %v591, 4
        %v594 = vor.u32 %v593, %v589
        %v595 = vrot.slane %v594, 4
        %v597 = vshll.u32 %v282, 16
        %v599 = vrot.slane %v597, 5
        %v600 = vsel %vm288, %v595, %v599
        %v602 = vshrl.u32 %v263, 16
        %v604 = vrot.slane %v602, 4
        %v605 = vshll.u32 %v263, 16
        %v607 = vrot.slane %v605, 5
        %v608 = vor.u32 %v604, %v607
        %v609 = vrot.slane %v608, 4
        %v611 = vshll.u32 %v264, 16
        %v613 = vrot.slane %v611, 5
        %v614 = vsel %vm288, %v609, %v613
        %v615 = vshrl.u32 %v264, 16
        %v617 = vrot.slane %v615, 4
        %v618 = vor.u32 %v617, %v613
        %v619 = vrot.slane %v618, 4
        %v621 = vshll.u32 %v283, 16
        %v623 = vrot.slane %v621, 5
        %v624 = vsel %vm288, %v619, %v623
        %v626 = vshrl.u32 %v265, 16
        %v628 = vrot.slane %v626, 4
        %v629 = vshll.u32 %v265, 16
        %v631 = vrot.slane %v629, 5
        %v632 = vor.u32 %v628, %v631
        %v633 = vrot.slane %v632, 4
        %v635 = vshll.u32 %v266, 16
        %v637 = vrot.slane %v635, 5
        %v638 = vsel %vm288, %v633, %v637
        %v639 = vshrl.u32 %v266, 16
        %v641 = vrot.slane %v639, 4
        %v642 = vor.u32 %v641, %v637
        %v643 = vrot.slane %v642, 4
        %v645 = vshll.u32 %v284, 16
        %v647 = vrot.slane %v645, 5
        %v648 = vsel %vm288, %v643, %v647
        %v650 = vshrl.u32 %v267, 16
        %v652 = vrot.slane %v650, 4
        %v653 = vshll.u32 %v267, 16
        %v655 = vrot.slane %v653, 5
        %v656 = vor.u32 %v652, %v655
        %v657 = vrot.slane %v656, 4
        %v659 = vshll.u32 %v268, 16
        %v661 = vrot.slane %v659, 5
        %v662 = vsel %vm288, %v657, %v661
        %v663 = vshrl.u32 %v268, 16
        %v665 = vrot.slane %v663, 4
        %v666 = vor.u32 %v665, %v661
        %v667 = vrot.slane %v666, 4
        %v669 = vshll.u32 %v285, 16
        %v671 = vrot.slane %v669, 5
        %v672 = vsel %vm288, %v667, %v671
        %s673 = scalar_lea.vmem %s1, 2
        %v674 = vld [vmem:[%s673] sm:$0x3]
        %v675 = vunpack.c.l.b16 %v302
        %v676 = vunpack.c.l.b16 %v312
        %v677 = vunpack.c.l.b16 %v326
        %v678 = vunpack.c.l.b16 %v336
        %v679 = vunpack.c.l.b16 %v350
        %v680 = vunpack.c.l.b16 %v360
        %v681 = vunpack.c.l.b16 %v374
        %v682 = vunpack.c.l.b16 %v384
        %v683 = vunpack.c.l.b16 %v398
        %v684 = vunpack.c.l.b16 %v408
        %v685 = vunpack.c.l.b16 %v422
        %v686 = vunpack.c.l.b16 %v432
        %v687 = vunpack.c.l.b16 %v446
        %v688 = vunpack.c.l.b16 %v456
        %v689 = vunpack.c.l.b16 %v470
        %v690 = vunpack.c.l.b16 %v480
        %v691 = vunpack.c.l.b16 %v494
        %v692 = vunpack.c.l.b16 %v504
        %v693 = vunpack.c.l.b16 %v518
        %v694 = vunpack.c.l.b16 %v528
        %v695 = vunpack.c.l.b16 %v542
        %v696 = vunpack.c.l.b16 %v552
        %v697 = vunpack.c.l.b16 %v566
        %v698 = vunpack.c.l.b16 %v576
        %v699 = vunpack.c.l.b16 %v590
        %v700 = vunpack.c.l.b16 %v600
        %v701 = vunpack.c.l.b16 %v614
        %v702 = vunpack.c.l.b16 %v624
        %v703 = vunpack.c.l.b16 %v638
        %v704 = vunpack.c.l.b16 %v648
        %v705 = vunpack.c.l.b16 %v662
        %v706 = vunpack.c.l.b16 %v672
        %v707 = vpack.c.b16 %v676, %v675
        %v708 = vpack.c.b16 %v678, %v677
        %v709 = vpack.c.b16 %v680, %v679
        %v710 = vpack.c.b16 %v682, %v681
        %v711 = vpack.c.b16 %v684, %v683
        %v712 = vpack.c.b16 %v686, %v685
        %v713 = vpack.c.b16 %v688, %v687
        %v714 = vpack.c.b16 %v690, %v689
        %v715 = vpack.c.b16 %v692, %v691
        %v716 = vpack.c.b16 %v694, %v693
        %v717 = vpack.c.b16 %v696, %v695
        %v718 = vpack.c.b16 %v698, %v697
        %v719 = vpack.c.b16 %v700, %v699
        %v720 = vpack.c.b16 %v702, %v701
        %v721 = vpack.c.b16 %v704, %v703
        %v722 = vpack.c.b16 %v706, %v705
        %vm723 = vcmask 31744
        %v725 = vsel %vm723, %v707, 0
        %v728 = vsel %vm723, %v708, 0
        %v731 = vsel %vm723, %v709, 0
        %v734 = vsel %vm723, %v710, 0
        %v737 = vsel %vm723, %v711, 0
        %v740 = vsel %vm723, %v712, 0
        %v743 = vsel %vm723, %v713, 0
        %v746 = vsel %vm723, %v714, 0
        %v749 = vsel %vm723, %v715, 0
        %v752 = vsel %vm723, %v716, 0
        %v755 = vsel %vm723, %v717, 0
        %v758 = vsel %vm723, %v718, 0
        %v761 = vsel %vm723, %v719, 0
        %v764 = vsel %vm723, %v720, 0
        %v767 = vsel %vm723, %v721, 0
        %v770 = vsel %vm723, %v722, 0
        %vm772 = vcmask 1041408
        %v774 = vsel %vm772, %v674, 0
        %776 = vmatprep.subr.bf16.mxu0 0
        %777 = vmatpush1.bf16.msra.mxu0 0
        %778 = vmatprep.subr.bf16.mxu0 0
        %779 = vmatpush1.bf16.msra.mxu0 0
        %780 = vmatprep.subr.bf16.mxu0 0
        %781 = vmatpush1.bf16.msra.mxu0 0
        %782 = vmatprep.subr.bf16.mxu0 0
        %783 = vmatpush1.bf16.msra.mxu0 0
        %784 = vmatprep.subr.bf16.mxu0 0
        %785 = vmatpush1.bf16.msra.mxu0 0
        %786 = vmatprep.subr.bf16.mxu0 0
        %787 = vmatpush1.bf16.msra.mxu0 0
        %788 = vmatprep.subr.bf16.mxu0 0
        %789 = vmatpush1.bf16.msra.mxu0 0
        %790 = vmatprep.subr.bf16.mxu0 0
        %791 = vmatpush1.bf16.msra.mxu0 %v774
        %792 = vmatprep.subr.bf16.mxu0 0
        %793 = vmatpush2.bf16.msra.mxu0 0
        %794 = vmatprep.subr.bf16.mxu0 0
        %795 = vmatpush2.bf16.msra.mxu0 0
        %796 = vmatprep.subr.bf16.mxu0 0
        %797 = vmatpush2.bf16.msra.mxu0 0
        %798 = vmatprep.subr.bf16.mxu0 0
        %799 = vmatpush2.bf16.msra.mxu0 0
        %800 = vmatprep.subr.bf16.mxu0 0
        %801 = vmatpush2.bf16.msra.mxu0 0
        %802 = vmatprep.subr.bf16.mxu0 0
        %803 = vmatpush2.bf16.msra.mxu0 0
        %804 = vmatprep.subr.bf16.mxu0 0
        %805 = vmatpush2.bf16.msra.mxu0 0
        %806 = vmatprep.subr.bf16.mxu0 0
        %807 = vmatpush2.bf16.msra.mxu0 0
        %808 = vmatprep.mubr.bf16.mxu0 0
        %809 = vmatmul.mubr.bf16.gmra.mxu0 %v725
        %v810 = vpop.f32.mrf.mxu0
        %v811 = vadd.f32 0.0, %v810
        %v812 = vpop.f32.mrf.mxu0
        %v813 = vpop.f32.mrf.mxu0
        %v814 = vadd.f32 0.0, %v813
        %v815 = vpop.f32.mrf.mxu0
        %816 = vmatprep.mubr.bf16.mxu0 0
        %817 = vmatmul.mubr.bf16.gmra.mxu0 %v728
        %v818 = vpop.f32.mrf.mxu0
        %v819 = vadd.f32 0.0, %v818
        %v820 = vpop.f32.mrf.mxu0
        %v821 = vpop.f32.mrf.mxu0
        %v822 = vadd.f32 0.0, %v821
        %v823 = vpop.f32.mrf.mxu0
        %824 = vmatprep.mubr.bf16.mxu0 0
        %825 = vmatmul.mubr.bf16.gmra.mxu0 %v731
        %v826 = vpop.f32.mrf.mxu0
        %v827 = vadd.f32 0.0, %v826
        %v828 = vpop.f32.mrf.mxu0
        %v829 = vpop.f32.mrf.mxu0
        %v830 = vadd.f32 0.0, %v829
        %v831 = vpop.f32.mrf.mxu0
        %832 = vmatprep.mubr.bf16.mxu0 0
        %833 = vmatmul.mubr.bf16.gmra.mxu0 %v734
        %v834 = vpop.f32.mrf.mxu0
        %v835 = vadd.f32 0.0, %v834
        %v836 = vpop.f32.mrf.mxu0
        %v837 = vpop.f32.mrf.mxu0
        %v838 = vadd.f32 0.0, %v837
        %v839 = vpop.f32.mrf.mxu0
        %840 = vmatprep.mubr.bf16.mxu0 0
        %841 = vmatmul.mubr.bf16.gmra.mxu0 %v737
        %v842 = vpop.f32.mrf.mxu0
        %v843 = vadd.f32 0.0, %v842
        %v844 = vpop.f32.mrf.mxu0
        %v845 = vpop.f32.mrf.mxu0
        %v846 = vadd.f32 0.0, %v845
        %v847 = vpop.f32.mrf.mxu0
        %848 = vmatprep.mubr.bf16.mxu0 0
        %849 = vmatmul.mubr.bf16.gmra.mxu0 %v740
        %v850 = vpop.f32.mrf.mxu0
        %v851 = vadd.f32 0.0, %v850
        %v852 = vpop.f32.mrf.mxu0
        %v853 = vpop.f32.mrf.mxu0
        %v854 = vadd.f32 0.0, %v853
        %v855 = vpop.f32.mrf.mxu0
        %856 = vmatprep.mubr.bf16.mxu0 0
        %857 = vmatmul.mubr.bf16.gmra.mxu0 %v743
        %v858 = vpop.f32.mrf.mxu0
        %v859 = vadd.f32 0.0, %v858
        %v860 = vpop.f32.mrf.mxu0
        %v861 = vpop.f32.mrf.mxu0
        %v862 = vadd.f32 0.0, %v861
        %v863 = vpop.f32.mrf.mxu0
        %864 = vmatprep.mubr.bf16.mxu0 0
        %865 = vmatmul.mubr.bf16.gmra.mxu0 %v746
        %v866 = vpop.f32.mrf.mxu0
        %v867 = vadd.f32 0.0, %v866
        %v868 = vpop.f32.mrf.mxu0
        %v869 = vpop.f32.mrf.mxu0
        %v870 = vadd.f32 0.0, %v869
        %v871 = vpop.f32.mrf.mxu0
        %872 = vmatprep.mubr.bf16.mxu0 0
        %873 = vmatmul.mubr.bf16.gmra.mxu0 %v749
        %v874 = vpop.f32.mrf.mxu0
        %v875 = vadd.f32 0.0, %v874
        %v876 = vpop.f32.mrf.mxu0
        %v877 = vpop.f32.mrf.mxu0
        %v878 = vadd.f32 0.0, %v877
        %v879 = vpop.f32.mrf.mxu0
        %880 = vmatprep.mubr.bf16.mxu0 0
        %881 = vmatmul.mubr.bf16.gmra.mxu0 %v752
        %v882 = vpop.f32.mrf.mxu0
        %v883 = vadd.f32 0.0, %v882
        %v884 = vpop.f32.mrf.mxu0
        %v885 = vpop.f32.mrf.mxu0
        %v886 = vadd.f32 0.0, %v885
        %v887 = vpop.f32.mrf.mxu0
        %888 = vmatprep.mubr.bf16.mxu0 0
        %889 = vmatmul.mubr.bf16.gmra.mxu0 %v755
        %v890 = vpop.f32.mrf.mxu0
        %v891 = vadd.f32 0.0, %v890
        %v892 = vpop.f32.mrf.mxu0
        %v893 = vpop.f32.mrf.mxu0
        %v894 = vadd.f32 0.0, %v893
        %v895 = vpop.f32.mrf.mxu0
        %896 = vmatprep.mubr.bf16.mxu0 0
        %897 = vmatmul.mubr.bf16.gmra.mxu0 %v758
        %v898 = vpop.f32.mrf.mxu0
        %v899 = vadd.f32 0.0, %v898
        %v900 = vpop.f32.mrf.mxu0
        %v901 = vpop.f32.mrf.mxu0
        %v902 = vadd.f32 0.0, %v901
        %v903 = vpop.f32.mrf.mxu0
        %904 = vmatprep.mubr.bf16.mxu0 0
        %905 = vmatmul.mubr.bf16.gmra.mxu0 %v761
        %v906 = vpop.f32.mrf.mxu0
        %v907 = vadd.f32 0.0, %v906
        %v908 = vpop.f32.mrf.mxu0
        %v909 = vpop.f32.mrf.mxu0
        %v910 = vadd.f32 0.0, %v909
        %v911 = vpop.f32.mrf.mxu0
        %912 = vmatprep.mubr.bf16.mxu0 0
        %913 = vmatmul.mubr.bf16.gmra.mxu0 %v764
        %v914 = vpop.f32.mrf.mxu0
        %v915 = vadd.f32 0.0, %v914
        %v916 = vpop.f32.mrf.mxu0
        %v917 = vpop.f32.mrf.mxu0
        %v918 = vadd.f32 0.0, %v917
        %v919 = vpop.f32.mrf.mxu0
        %920 = vmatprep.mubr.bf16.mxu0 0
        %921 = vmatmul.mubr.bf16.gmra.mxu0 %v767
        %v922 = vpop.f32.mrf.mxu0
        %v923 = vadd.f32 0.0, %v922
        %v924 = vpop.f32.mrf.mxu0
        %v925 = vpop.f32.mrf.mxu0
        %v926 = vadd.f32 0.0, %v925
        %v927 = vpop.f32.mrf.mxu0
        %928 = vmatprep.mubr.bf16.mxu0 0
        %929 = vmatmul.mubr.bf16.gmra.mxu0 %v770
        %v930 = vpop.f32.mrf.mxu0
        %v931 = vadd.f32 0.0, %v930
        %v932 = vpop.f32.mrf.mxu0
        %v933 = vpop.f32.mrf.mxu0
        %v934 = vadd.f32 0.0, %v933
        %v935 = vpop.f32.mrf.mxu0
        %936 = vdwg.mxu0
        %v969 = vunpack.c.l.b16 %v237
        %v970 = vunpack.c.l.b16 %v238
        %v971 = vunpack.c.l.b16 %v239
        %v972 = vunpack.c.l.b16 %v240
        %v973 = vunpack.c.l.b16 %v241
        %v974 = vunpack.c.l.b16 %v242
        %v975 = vunpack.c.l.b16 %v243
        %v976 = vunpack.c.l.b16 %v244
        %v977 = vunpack.c.l.b16 %v245
        %v978 = vunpack.c.l.b16 %v246
        %v979 = vunpack.c.l.b16 %v247
        %v980 = vunpack.c.l.b16 %v248
        %v981 = vunpack.c.l.b16 %v249
        %v982 = vunpack.c.l.b16 %v250
        %v983 = vunpack.c.l.b16 %v251
        %v984 = vunpack.c.l.b16 %v252
        %v985 = vunpack.c.l.b16 %v253
        %v986 = vunpack.c.l.b16 %v254
        %v987 = vunpack.c.l.b16 %v255
        %v988 = vunpack.c.l.b16 %v256
        %v989 = vunpack.c.l.b16 %v257
        %v990 = vunpack.c.l.b16 %v258
        %v991 = vunpack.c.l.b16 %v259
        %v992 = vunpack.c.l.b16 %v260
        %v993 = vunpack.c.l.b16 %v261
        %v994 = vunpack.c.l.b16 %v262
        %v995 = vunpack.c.l.b16 %v263
        %v996 = vunpack.c.l.b16 %v264
        %v997 = vunpack.c.l.b16 %v265
        %v998 = vunpack.c.l.b16 %v266
        %v999 = vunpack.c.l.b16 %v267
        %v1000 = vunpack.c.l.b16 %v268
        %v1001 = vpack.c.b16 %v970, %v969
        %v1002 = vpack.c.b16 %v972, %v971
        %v1003 = vpack.c.b16 %v974, %v973
        %v1004 = vpack.c.b16 %v976, %v975
        %v1005 = vpack.c.b16 %v978, %v977
        %v1006 = vpack.c.b16 %v980, %v979
        %v1007 = vpack.c.b16 %v982, %v981
        %v1008 = vpack.c.b16 %v984, %v983
        %v1009 = vpack.c.b16 %v986, %v985
        %v1010 = vpack.c.b16 %v988, %v987
        %v1011 = vpack.c.b16 %v990, %v989
        %v1012 = vpack.c.b16 %v992, %v991
        %v1013 = vpack.c.b16 %v994, %v993
        %v1014 = vpack.c.b16 %v996, %v995
        %v1015 = vpack.c.b16 %v998, %v997
        %v1016 = vpack.c.b16 %v1000, %v999
        %v1018 = vsel %vm723, %v1001, 0
        %v1021 = vsel %vm723, %v1002, 0
        %v1024 = vsel %vm723, %v1003, 0
        %v1027 = vsel %vm723, %v1004, 0
        %v1030 = vsel %vm723, %v1005, 0
        %v1033 = vsel %vm723, %v1006, 0
        %v1036 = vsel %vm723, %v1007, 0
        %v1039 = vsel %vm723, %v1008, 0
        %v1042 = vsel %vm723, %v1009, 0
        %v1045 = vsel %vm723, %v1010, 0
        %v1048 = vsel %vm723, %v1011, 0
        %v1051 = vsel %vm723, %v1012, 0
        %v1054 = vsel %vm723, %v1013, 0
        %v1057 = vsel %vm723, %v1014, 0
        %v1060 = vsel %vm723, %v1015, 0
        %v1063 = vsel %vm723, %v1016, 0
        %v1066 = vsel %vm772, %v269, 0
        %1068 = vmatprep.subr.bf16.mxu0 0
        %1069 = vmatpush1.bf16.msra.mxu0 0
        %1070 = vmatprep.subr.bf16.mxu0 0
        %1071 = vmatpush1.bf16.msra.mxu0 0
        %1072 = vmatprep.subr.bf16.mxu0 0
        %1073 = vmatpush1.bf16.msra.mxu0 0
        %1074 = vmatprep.subr.bf16.mxu0 0
        %1075 = vmatpush1.bf16.msra.mxu0 0
        %1076 = vmatprep.subr.bf16.mxu0 0
        %1077 = vmatpush1.bf16.msra.mxu0 0
        %1078 = vmatprep.subr.bf16.mxu0 0
        %1079 = vmatpush1.bf16.msra.mxu0 0
        %1080 = vmatprep.subr.bf16.mxu0 0
        %1081 = vmatpush1.bf16.msra.mxu0 0
        %1082 = vmatprep.subr.bf16.mxu0 0
        %1083 = vmatpush1.bf16.msra.mxu0 %v1066
        %1084 = vmatprep.subr.bf16.mxu0 0
        %1085 = vmatpush2.bf16.msra.mxu0 0
        %1086 = vmatprep.subr.bf16.mxu0 0
        %1087 = vmatpush2.bf16.msra.mxu0 0
        %1088 = vmatprep.subr.bf16.mxu0 0
        %1089 = vmatpush2.bf16.msra.mxu0 0
        %1090 = vmatprep.subr.bf16.mxu0 0
        %1091 = vmatpush2.bf16.msra.mxu0 0
        %1092 = vmatprep.subr.bf16.mxu0 0
        %1093 = vmatpush2.bf16.msra.mxu0 0
        %1094 = vmatprep.subr.bf16.mxu0 0
        %1095 = vmatpush2.bf16.msra.mxu0 0
        %1096 = vmatprep.subr.bf16.mxu0 0
        %1097 = vmatpush2.bf16.msra.mxu0 0
        %1098 = vmatprep.subr.bf16.mxu0 0
        %1099 = vmatpush2.bf16.msra.mxu0 0
        %1100 = vmatprep.mubr.bf16.mxu0 0
        %1101 = vmatmul.mubr.bf16.gmra.mxu0 %v1018
        %v1102 = vpop.f32.mrf.mxu0
        %v1103 = vadd.f32 %v811, %v1102
        %v1104 = vpop.f32.mrf.mxu0
        %v1105 = vpop.f32.mrf.mxu0
        %v1106 = vadd.f32 %v814, %v1105
        %v1107 = vpop.f32.mrf.mxu0
        %1108 = vmatprep.mubr.bf16.mxu0 0
        %1109 = vmatmul.mubr.bf16.gmra.mxu0 %v1021
        %v1110 = vpop.f32.mrf.mxu0
        %v1111 = vadd.f32 %v819, %v1110
        %v1112 = vpop.f32.mrf.mxu0
        %v1113 = vpop.f32.mrf.mxu0
        %v1114 = vadd.f32 %v822, %v1113
        %v1115 = vpop.f32.mrf.mxu0
        %1116 = vmatprep.mubr.bf16.mxu0 0
        %1117 = vmatmul.mubr.bf16.gmra.mxu0 %v1024
        %v1118 = vpop.f32.mrf.mxu0
        %v1119 = vadd.f32 %v827, %v1118
        %v1120 = vpop.f32.mrf.mxu0
        %v1121 = vpop.f32.mrf.mxu0
        %v1122 = vadd.f32 %v830, %v1121
        %v1123 = vpop.f32.mrf.mxu0
        %1124 = vmatprep.mubr.bf16.mxu0 0
        %1125 = vmatmul.mubr.bf16.gmra.mxu0 %v1027
        %v1126 = vpop.f32.mrf.mxu0
        %v1127 = vadd.f32 %v835, %v1126
        %v1128 = vpop.f32.mrf.mxu0
        %v1129 = vpop.f32.mrf.mxu0
        %v1130 = vadd.f32 %v838, %v1129
        %v1131 = vpop.f32.mrf.mxu0
        %1132 = vmatprep.mubr.bf16.mxu0 0
        %1133 = vmatmul.mubr.bf16.gmra.mxu0 %v1030
        %v1134 = vpop.f32.mrf.mxu0
        %v1135 = vadd.f32 %v843, %v1134
        %v1136 = vpop.f32.mrf.mxu0
        %v1137 = vpop.f32.mrf.mxu0
        %v1138 = vadd.f32 %v846, %v1137
        %v1139 = vpop.f32.mrf.mxu0
        %1140 = vmatprep.mubr.bf16.mxu0 0
        %1141 = vmatmul.mubr.bf16.gmra.mxu0 %v1033
        %v1142 = vpop.f32.mrf.mxu0
        %v1143 = vadd.f32 %v851, %v1142
        %v1144 = vpop.f32.mrf.mxu0
        %v1145 = vpop.f32.mrf.mxu0
        %v1146 = vadd.f32 %v854, %v1145
        %v1147 = vpop.f32.mrf.mxu0
        %1148 = vmatprep.mubr.bf16.mxu0 0
        %1149 = vmatmul.mubr.bf16.gmra.mxu0 %v1036
        %v1150 = vpop.f32.mrf.mxu0
        %v1151 = vadd.f32 %v859, %v1150
        %v1152 = vpop.f32.mrf.mxu0
        %v1153 = vpop.f32.mrf.mxu0
        %v1154 = vadd.f32 %v862, %v1153
        %v1155 = vpop.f32.mrf.mxu0
        %1156 = vmatprep.mubr.bf16.mxu0 0
        %1157 = vmatmul.mubr.bf16.gmra.mxu0 %v1039
        %v1158 = vpop.f32.mrf.mxu0
        %v1159 = vadd.f32 %v867, %v1158
        %v1160 = vpop.f32.mrf.mxu0
        %v1161 = vpop.f32.mrf.mxu0
        %v1162 = vadd.f32 %v870, %v1161
        %v1163 = vpop.f32.mrf.mxu0
        %1164 = vmatprep.mubr.bf16.mxu0 0
        %1165 = vmatmul.mubr.bf16.gmra.mxu0 %v1042
        %v1166 = vpop.f32.mrf.mxu0
        %v1167 = vadd.f32 %v875, %v1166
        %v1168 = vpop.f32.mrf.mxu0
        %v1169 = vpop.f32.mrf.mxu0
        %v1170 = vadd.f32 %v878, %v1169
        %v1171 = vpop.f32.mrf.mxu0
        %1172 = vmatprep.mubr.bf16.mxu0 0
        %1173 = vmatmul.mubr.bf16.gmra.mxu0 %v1045
        %v1174 = vpop.f32.mrf.mxu0
        %v1175 = vadd.f32 %v883, %v1174
        %v1176 = vpop.f32.mrf.mxu0
        %v1177 = vpop.f32.mrf.mxu0
        %v1178 = vadd.f32 %v886, %v1177
        %v1179 = vpop.f32.mrf.mxu0
        %1180 = vmatprep.mubr.bf16.mxu0 0
        %1181 = vmatmul.mubr.bf16.gmra.mxu0 %v1048
        %v1182 = vpop.f32.mrf.mxu0
        %v1183 = vadd.f32 %v891, %v1182
        %v1184 = vpop.f32.mrf.mxu0
        %v1185 = vpop.f32.mrf.mxu0
        %v1186 = vadd.f32 %v894, %v1185
        %v1187 = vpop.f32.mrf.mxu0
        %1188 = vmatprep.mubr.bf16.mxu0 0
        %1189 = vmatmul.mubr.bf16.gmra.mxu0 %v1051
        %v1190 = vpop.f32.mrf.mxu0
        %v1191 = vadd.f32 %v899, %v1190
        %v1192 = vpop.f32.mrf.mxu0
        %v1193 = vpop.f32.mrf.mxu0
        %v1194 = vadd.f32 %v902, %v1193
        %v1195 = vpop.f32.mrf.mxu0
        %1196 = vmatprep.mubr.bf16.mxu0 0
        %1197 = vmatmul.mubr.bf16.gmra.mxu0 %v1054
        %v1198 = vpop.f32.mrf.mxu0
        %v1199 = vadd.f32 %v907, %v1198
        %v1200 = vpop.f32.mrf.mxu0
        %v1201 = vpop.f32.mrf.mxu0
        %v1202 = vadd.f32 %v910, %v1201
        %v1203 = vpop.f32.mrf.mxu0
        %1204 = vmatprep.mubr.bf16.mxu0 0
        %1205 = vmatmul.mubr.bf16.gmra.mxu0 %v1057
        %v1206 = vpop.f32.mrf.mxu0
        %v1207 = vadd.f32 %v915, %v1206
        %v1208 = vpop.f32.mrf.mxu0
        %v1209 = vpop.f32.mrf.mxu0
        %v1210 = vadd.f32 %v918, %v1209
        %v1211 = vpop.f32.mrf.mxu0
        %1212 = vmatprep.mubr.bf16.mxu0 0
        %1213 = vmatmul.mubr.bf16.gmra.mxu0 %v1060
        %v1214 = vpop.f32.mrf.mxu0
        %v1215 = vadd.f32 %v923, %v1214
        %v1216 = vpop.f32.mrf.mxu0
        %v1217 = vpop.f32.mrf.mxu0
        %v1218 = vadd.f32 %v926, %v1217
        %v1219 = vpop.f32.mrf.mxu0
        %1220 = vmatprep.mubr.bf16.mxu0 0
        %1221 = vmatmul.mubr.bf16.gmra.mxu0 %v1063
        %v1222 = vpop.f32.mrf.mxu0
        %v1223 = vadd.f32 %v931, %v1222
        %v1224 = vpop.f32.mrf.mxu0
        %v1225 = vpop.f32.mrf.mxu0
        %v1226 = vadd.f32 %v934, %v1225
        %v1227 = vpop.f32.mrf.mxu0
        %1228 = vdwg.mxu0
        %v1229 = vld [vmem:[%s236] sm:$0xe]
        %v1230 = vld [vmem:[%s236 + $0xc] sm:$0xe]
        %v1231 = vld [vmem:[%s236 + $0x18] sm:$0xe]
        %v1232 = vld [vmem:[%s236 + $0x24] sm:$0xe]
        %v1233 = vld [vmem:[%s236 + $0x30] sm:$0xe]
        %v1234 = vld [vmem:[%s236 + $0x3c] sm:$0xe]
        %v1235 = vld [vmem:[%s236 + $0x48] sm:$0xe]
        %v1236 = vld [vmem:[%s236 + $0x54] sm:$0xe]
        %v1237 = vld [vmem:[%s236 + $0x60] sm:$0xe]
        %v1238 = vld [vmem:[%s236 + $0x6c] sm:$0xe]
        %v1239 = vld [vmem:[%s236 + $0x78] sm:$0xe]
        %v1240 = vld [vmem:[%s236 + $0x84] sm:$0xe]
        %v1241 = vld [vmem:[%s236 + $0x90] sm:$0xe]
        %v1242 = vld [vmem:[%s236 + $0x9c] sm:$0xe]
        %v1243 = vld [vmem:[%s236 + $0xa8] sm:$0xe]
        %v1244 = vld [vmem:[%s236 + $0xb4] sm:$0xe]
        %vm1277 = vcmask 1042432
        %vm1278 = vcmask 1046532
        %vm1279 = vmor %vm1277, %vm1278
        %v1280 = vrot.slane %v1229, 5
        %v1281 = vrot.slane %v1280, 4
        %v1282 = vrot.slane %v238, 5
        %v1283 = vsel %vm1279, %v1281, %v1282
        %v1284 = vrot.slane %v1282, 4
        %v1285 = vrot.slane %v270, 5
        %v1286 = vsel %vm1279, %v1284, %v1285
        %v1287 = vrot.slane %v1230, 5
        %v1288 = vrot.slane %v1287, 4
        %v1289 = vrot.slane %v240, 5
        %v1290 = vsel %vm1279, %v1288, %v1289
        %v1291 = vrot.slane %v1289, 4
        %v1292 = vrot.slane %v271, 5
        %v1293 = vsel %vm1279, %v1291, %v1292
        %v1294 = vrot.slane %v1231, 5
        %v1295 = vrot.slane %v1294, 4
        %v1296 = vrot.slane %v242, 5
        %v1297 = vsel %vm1279, %v1295, %v1296
        %v1298 = vrot.slane %v1296, 4
        %v1299 = vrot.slane %v272, 5
        %v1300 = vsel %vm1279, %v1298, %v1299
        %v1301 = vrot.slane %v1232, 5
        %v1302 = vrot.slane %v1301, 4
        %v1303 = vrot.slane %v244, 5
        %v1304 = vsel %vm1279, %v1302, %v1303
        %v1305 = vrot.slane %v1303, 4
        %v1306 = vrot.slane %v273, 5
        %v1307 = vsel %vm1279, %v1305, %v1306
        %v1308 = vrot.slane %v1233, 5
        %v1309 = vrot.slane %v1308, 4
        %v1310 = vrot.slane %v246, 5
        %v1311 = vsel %vm1279, %v1309, %v1310
        %v1312 = vrot.slane %v1310, 4
        %v1313 = vrot.slane %v274, 5
        %v1314 = vsel %vm1279, %v1312, %v1313
        %v1315 = vrot.slane %v1234, 5
        %v1316 = vrot.slane %v1315, 4
        %v1317 = vrot.slane %v248, 5
        %v1318 = vsel %vm1279, %v1316, %v1317
        %v1319 = vrot.slane %v1317, 4
        %v1320 = vrot.slane %v275, 5
        %v1321 = vsel %vm1279, %v1319, %v1320
        %v1322 = vrot.slane %v1235, 5
        %v1323 = vrot.slane %v1322, 4
        %v1324 = vrot.slane %v250, 5
        %v1325 = vsel %vm1279, %v1323, %v1324
        %v1326 = vrot.slane %v1324, 4
        %v1327 = vrot.slane %v276, 5
        %v1328 = vsel %vm1279, %v1326, %v1327
        %v1329 = vrot.slane %v1236, 5
        %v1330 = vrot.slane %v1329, 4
        %v1331 = vrot.slane %v252, 5
        %v1332 = vsel %vm1279, %v1330, %v1331
        %v1333 = vrot.slane %v1331, 4
        %v1334 = vrot.slane %v277, 5
        %v1335 = vsel %vm1279, %v1333, %v1334
        %v1336 = vrot.slane %v1237, 5
        %v1337 = vrot.slane %v1336, 4
        %v1338 = vrot.slane %v254, 5
        %v1339 = vsel %vm1279, %v1337, %v1338
        %v1340 = vrot.slane %v1338, 4
        %v1341 = vrot.slane %v278, 5
        %v1342 = vsel %vm1279, %v1340, %v1341
        %v1343 = vrot.slane %v1238, 5
        %v1344 = vrot.slane %v1343, 4
        %v1345 = vrot.slane %v256, 5
        %v1346 = vsel %vm1279, %v1344, %v1345
        %v1347 = vrot.slane %v1345, 4
        %v1348 = vrot.slane %v279, 5
        %v1349 = vsel %vm1279, %v1347, %v1348
        %v1350 = vrot.slane %v1239, 5
        %v1351 = vrot.slane %v1350, 4
        %v1352 = vrot.slane %v258, 5
        %v1353 = vsel %vm1279, %v1351, %v1352
        %v1354 = vrot.slane %v1352, 4
        %v1355 = vrot.slane %v280, 5
        %v1356 = vsel %vm1279, %v1354, %v1355
        %v1357 = vrot.slane %v1240, 5
        %v1358 = vrot.slane %v1357, 4
        %v1359 = vrot.slane %v260, 5
        %v1360 = vsel %vm1279, %v1358, %v1359
        %v1361 = vrot.slane %v1359, 4
        %v1362 = vrot.slane %v281, 5
        %v1363 = vsel %vm1279, %v1361, %v1362
        %v1364 = vrot.slane %v1241, 5
        %v1365 = vrot.slane %v1364, 4
        %v1366 = vrot.slane %v262, 5
        %v1367 = vsel %vm1279, %v1365, %v1366
        %v1368 = vrot.slane %v1366, 4
        %v1369 = vrot.slane %v282, 5
        %v1370 = vsel %vm1279, %v1368, %v1369
        %v1371 = vrot.slane %v1242, 5
        %v1372 = vrot.slane %v1371, 4
        %v1373 = vrot.slane %v264, 5
        %v1374 = vsel %vm1279, %v1372, %v1373
        %v1375 = vrot.slane %v1373, 4
        %v1376 = vrot.slane %v283, 5
        %v1377 = vsel %vm1279, %v1375, %v1376
        %v1378 = vrot.slane %v1243, 5
        %v1379 = vrot.slane %v1378, 4
        %v1380 = vrot.slane %v266, 5
        %v1381 = vsel %vm1279, %v1379, %v1380
        %v1382 = vrot.slane %v1380, 4
        %v1383 = vrot.slane %v284, 5
        %v1384 = vsel %vm1279, %v1382, %v1383
        %v1385 = vrot.slane %v1244, 5
        %v1386 = vrot.slane %v1385, 4
        %v1387 = vrot.slane %v268, 5
        %v1388 = vsel %vm1279, %v1386, %v1387
        %v1389 = vrot.slane %v1387, 4
        %v1390 = vrot.slane %v285, 5
        %v1391 = vsel %vm1279, %v1389, %v1390
        %s1392 = scalar_lea.vmem %s1, 4
        %v1393 = vld [vmem:[%s1392] sm:$0x3]
        %v1394 = vunpack.c.l.b16 %v1283
        %v1395 = vunpack.c.l.b16 %v1286
        %v1396 = vunpack.c.l.b16 %v1290
        %v1397 = vunpack.c.l.b16 %v1293
        %v1398 = vunpack.c.l.b16 %v1297
        %v1399 = vunpack.c.l.b16 %v1300
        %v1400 = vunpack.c.l.b16 %v1304
        %v1401 = vunpack.c.l.b16 %v1307
        %v1402 = vunpack.c.l.b16 %v1311
        %v1403 = vunpack.c.l.b16 %v1314
        %v1404 = vunpack.c.l.b16 %v1318
        %v1405 = vunpack.c.l.b16 %v1321
        %v1406 = vunpack.c.l.b16 %v1325
        %v1407 = vunpack.c.l.b16 %v1328
        %v1408 = vunpack.c.l.b16 %v1332
        %v1409 = vunpack.c.l.b16 %v1335
        %v1410 = vunpack.c.l.b16 %v1339
        %v1411 = vunpack.c.l.b16 %v1342
        %v1412 = vunpack.c.l.b16 %v1346
        %v1413 = vunpack.c.l.b16 %v1349
        %v1414 = vunpack.c.l.b16 %v1353
        %v1415 = vunpack.c.l.b16 %v1356
        %v1416 = vunpack.c.l.b16 %v1360
        %v1417 = vunpack.c.l.b16 %v1363
        %v1418 = vunpack.c.l.b16 %v1367
        %v1419 = vunpack.c.l.b16 %v1370
        %v1420 = vunpack.c.l.b16 %v1374
        %v1421 = vunpack.c.l.b16 %v1377
        %v1422 = vunpack.c.l.b16 %v1381
        %v1423 = vunpack.c.l.b16 %v1384
        %v1424 = vunpack.c.l.b16 %v1388
        %v1425 = vunpack.c.l.b16 %v1391
        %v1426 = vpack.c.b16 %v1395, %v1394
        %v1427 = vpack.c.b16 %v1397, %v1396
        %v1428 = vpack.c.b16 %v1399, %v1398
        %v1429 = vpack.c.b16 %v1401, %v1400
        %v1430 = vpack.c.b16 %v1403, %v1402
        %v1431 = vpack.c.b16 %v1405, %v1404
        %v1432 = vpack.c.b16 %v1407, %v1406
        %v1433 = vpack.c.b16 %v1409, %v1408
        %v1434 = vpack.c.b16 %v1411, %v1410
        %v1435 = vpack.c.b16 %v1413, %v1412
        %v1436 = vpack.c.b16 %v1415, %v1414
        %v1437 = vpack.c.b16 %v1417, %v1416
        %v1438 = vpack.c.b16 %v1419, %v1418
        %v1439 = vpack.c.b16 %v1421, %v1420
        %v1440 = vpack.c.b16 %v1423, %v1422
        %v1441 = vpack.c.b16 %v1425, %v1424
        %v1443 = vsel %vm723, %v1426, 0
        %v1446 = vsel %vm723, %v1427, 0
        %v1449 = vsel %vm723, %v1428, 0
        %v1452 = vsel %vm723, %v1429, 0
        %v1455 = vsel %vm723, %v1430, 0
        %v1458 = vsel %vm723, %v1431, 0
        %v1461 = vsel %vm723, %v1432, 0
        %v1464 = vsel %vm723, %v1433, 0
        %v1467 = vsel %vm723, %v1434, 0
        %v1470 = vsel %vm723, %v1435, 0
        %v1473 = vsel %vm723, %v1436, 0
        %v1476 = vsel %vm723, %v1437, 0
        %v1479 = vsel %vm723, %v1438, 0
        %v1482 = vsel %vm723, %v1439, 0
        %v1485 = vsel %vm723, %v1440, 0
        %v1488 = vsel %vm723, %v1441, 0
        %v1491 = vsel %vm772, %v1393, 0
        %1493 = vmatprep.subr.bf16.mxu0 0
        %1494 = vmatpush1.bf16.msra.mxu0 0
        %1495 = vmatprep.subr.bf16.mxu0 0
        %1496 = vmatpush1.bf16.msra.mxu0 0
        %1497 = vmatprep.subr.bf16.mxu0 0
        %1498 = vmatpush1.bf16.msra.mxu0 0
        %1499 = vmatprep.subr.bf16.mxu0 0
        %1500 = vmatpush1.bf16.msra.mxu0 0
        %1501 = vmatprep.subr.bf16.mxu0 0
        %1502 = vmatpush1.bf16.msra.mxu0 0
        %1503 = vmatprep.subr.bf16.mxu0 0
        %1504 = vmatpush1.bf16.msra.mxu0 0
        %1505 = vmatprep.subr.bf16.mxu0 0
        %1506 = vmatpush1.bf16.msra.mxu0 0
        %1507 = vmatprep.subr.bf16.mxu0 0
        %1508 = vmatpush1.bf16.msra.mxu0 %v1491
        %1509 = vmatprep.subr.bf16.mxu0 0
        %1510 = vmatpush2.bf16.msra.mxu0 0
        %1511 = vmatprep.subr.bf16.mxu0 0
        %1512 = vmatpush2.bf16.msra.mxu0 0
        %1513 = vmatprep.subr.bf16.mxu0 0
        %1514 = vmatpush2.bf16.msra.mxu0 0
        %1515 = vmatprep.subr.bf16.mxu0 0
        %1516 = vmatpush2.bf16.msra.mxu0 0
        %1517 = vmatprep.subr.bf16.mxu0 0
        %1518 = vmatpush2.bf16.msra.mxu0 0
        %1519 = vmatprep.subr.bf16.mxu0 0
        %1520 = vmatpush2.bf16.msra.mxu0 0
        %1521 = vmatprep.subr.bf16.mxu0 0
        %1522 = vmatpush2.bf16.msra.mxu0 0
        %1523 = vmatprep.subr.bf16.mxu0 0
        %1524 = vmatpush2.bf16.msra.mxu0 0
        %1525 = vmatprep.mubr.bf16.mxu0 0
        %1526 = vmatmul.mubr.bf16.gmra.mxu0 %v1443
        %v1527 = vpop.f32.mrf.mxu0
        %v1528 = vadd.f32 0.0, %v1527
        %v1529 = vpop.f32.mrf.mxu0
        %v1530 = vpop.f32.mrf.mxu0
        %v1531 = vadd.f32 0.0, %v1530
        %v1532 = vpop.f32.mrf.mxu0
        %1533 = vmatprep.mubr.bf16.mxu0 0
        %1534 = vmatmul.mubr.bf16.gmra.mxu0 %v1446
        %v1535 = vpop.f32.mrf.mxu0
        %v1536 = vadd.f32 0.0, %v1535
        %v1537 = vpop.f32.mrf.mxu0
        %v1538 = vpop.f32.mrf.mxu0
        %v1539 = vadd.f32 0.0, %v1538
        %v1540 = vpop.f32.mrf.mxu0
        %1541 = vmatprep.mubr.bf16.mxu0 0
        %1542 = vmatmul.mubr.bf16.gmra.mxu0 %v1449
        %v1543 = vpop.f32.mrf.mxu0
        %v1544 = vadd.f32 0.0, %v1543
        %v1545 = vpop.f32.mrf.mxu0
        %v1546 = vpop.f32.mrf.mxu0
        %v1547 = vadd.f32 0.0, %v1546
        %v1548 = vpop.f32.mrf.mxu0
        %1549 = vmatprep.mubr.bf16.mxu0 0
        %1550 = vmatmul.mubr.bf16.gmra.mxu0 %v1452
        %v1551 = vpop.f32.mrf.mxu0
        %v1552 = vadd.f32 0.0, %v1551
        %v1553 = vpop.f32.mrf.mxu0
        %v1554 = vpop.f32.mrf.mxu0
        %v1555 = vadd.f32 0.0, %v1554
        %v1556 = vpop.f32.mrf.mxu0
        %1557 = vmatprep.mubr.bf16.mxu0 0
        %1558 = vmatmul.mubr.bf16.gmra.mxu0 %v1455
        %v1559 = vpop.f32.mrf.mxu0
        %v1560 = vadd.f32 0.0, %v1559
        %v1561 = vpop.f32.mrf.mxu0
        %v1562 = vpop.f32.mrf.mxu0
        %v1563 = vadd.f32 0.0, %v1562
        %v1564 = vpop.f32.mrf.mxu0
        %1565 = vmatprep.mubr.bf16.mxu0 0
        %1566 = vmatmul.mubr.bf16.gmra.mxu0 %v1458
        %v1567 = vpop.f32.mrf.mxu0
        %v1568 = vadd.f32 0.0, %v1567
        %v1569 = vpop.f32.mrf.mxu0
        %v1570 = vpop.f32.mrf.mxu0
        %v1571 = vadd.f32 0.0, %v1570
        %v1572 = vpop.f32.mrf.mxu0
        %1573 = vmatprep.mubr.bf16.mxu0 0
        %1574 = vmatmul.mubr.bf16.gmra.mxu0 %v1461
        %v1575 = vpop.f32.mrf.mxu0
        %v1576 = vadd.f32 0.0, %v1575
        %v1577 = vpop.f32.mrf.mxu0
        %v1578 = vpop.f32.mrf.mxu0
        %v1579 = vadd.f32 0.0, %v1578
        %v1580 = vpop.f32.mrf.mxu0
        %1581 = vmatprep.mubr.bf16.mxu0 0
        %1582 = vmatmul.mubr.bf16.gmra.mxu0 %v1464
        %v1583 = vpop.f32.mrf.mxu0
        %v1584 = vadd.f32 0.0, %v1583
        %v1585 = vpop.f32.mrf.mxu0
        %v1586 = vpop.f32.mrf.mxu0
        %v1587 = vadd.f32 0.0, %v1586
        %v1588 = vpop.f32.mrf.mxu0
        %1589 = vmatprep.mubr.bf16.mxu0 0
        %1590 = vmatmul.mubr.bf16.gmra.mxu0 %v1467
        %v1591 = vpop.f32.mrf.mxu0
        %v1592 = vadd.f32 0.0, %v1591
        %v1593 = vpop.f32.mrf.mxu0
        %v1594 = vpop.f32.mrf.mxu0
        %v1595 = vadd.f32 0.0, %v1594
        %v1596 = vpop.f32.mrf.mxu0
        %1597 = vmatprep.mubr.bf16.mxu0 0
        %1598 = vmatmul.mubr.bf16.gmra.mxu0 %v1470
        %v1599 = vpop.f32.mrf.mxu0
        %v1600 = vadd.f32 0.0, %v1599
        %v1601 = vpop.f32.mrf.mxu0
        %v1602 = vpop.f32.mrf.mxu0
        %v1603 = vadd.f32 0.0, %v1602
        %v1604 = vpop.f32.mrf.mxu0
        %1605 = vmatprep.mubr.bf16.mxu0 0
        %1606 = vmatmul.mubr.bf16.gmra.mxu0 %v1473
        %v1607 = vpop.f32.mrf.mxu0
        %v1608 = vadd.f32 0.0, %v1607
        %v1609 = vpop.f32.mrf.mxu0
        %v1610 = vpop.f32.mrf.mxu0
        %v1611 = vadd.f32 0.0, %v1610
        %v1612 = vpop.f32.mrf.mxu0
        %1613 = vmatprep.mubr.bf16.mxu0 0
        %1614 = vmatmul.mubr.bf16.gmra.mxu0 %v1476
        %v1615 = vpop.f32.mrf.mxu0
        %v1616 = vadd.f32 0.0, %v1615
        %v1617 = vpop.f32.mrf.mxu0
        %v1618 = vpop.f32.mrf.mxu0
        %v1619 = vadd.f32 0.0, %v1618
        %v1620 = vpop.f32.mrf.mxu0
        %1621 = vmatprep.mubr.bf16.mxu0 0
        %1622 = vmatmul.mubr.bf16.gmra.mxu0 %v1479
        %v1623 = vpop.f32.mrf.mxu0
        %v1624 = vadd.f32 0.0, %v1623
        %v1625 = vpop.f32.mrf.mxu0
        %v1626 = vpop.f32.mrf.mxu0
        %v1627 = vadd.f32 0.0, %v1626
        %v1628 = vpop.f32.mrf.mxu0
        %1629 = vmatprep.mubr.bf16.mxu0 0
        %1630 = vmatmul.mubr.bf16.gmra.mxu0 %v1482
        %v1631 = vpop.f32.mrf.mxu0
        %v1632 = vadd.f32 0.0, %v1631
        %v1633 = vpop.f32.mrf.mxu0
        %v1634 = vpop.f32.mrf.mxu0
        %v1635 = vadd.f32 0.0, %v1634
        %v1636 = vpop.f32.mrf.mxu0
        %1637 = vmatprep.mubr.bf16.mxu0 0
        %1638 = vmatmul.mubr.bf16.gmra.mxu0 %v1485
        %v1639 = vpop.f32.mrf.mxu0
        %v1640 = vadd.f32 0.0, %v1639
        %v1641 = vpop.f32.mrf.mxu0
        %v1642 = vpop.f32.mrf.mxu0
        %v1643 = vadd.f32 0.0, %v1642
        %v1644 = vpop.f32.mrf.mxu0
        %1645 = vmatprep.mubr.bf16.mxu0 0
        %1646 = vmatmul.mubr.bf16.gmra.mxu0 %v1488
        %v1647 = vpop.f32.mrf.mxu0
        %v1648 = vadd.f32 0.0, %v1647
        %v1649 = vpop.f32.mrf.mxu0
        %v1650 = vpop.f32.mrf.mxu0
        %v1651 = vadd.f32 0.0, %v1650
        %v1652 = vpop.f32.mrf.mxu0
        %1653 = vdwg.mxu0
        %v1654 = vadd.f32 %v1103, %v1528
        %v1655 = vadd.f32 %v1106, %v1531
        %v1656 = vadd.f32 %v1111, %v1536
        %v1657 = vadd.f32 %v1114, %v1539
        %v1658 = vadd.f32 %v1119, %v1544
        %v1659 = vadd.f32 %v1122, %v1547
        %v1660 = vadd.f32 %v1127, %v1552
        %v1661 = vadd.f32 %v1130, %v1555
        %v1662 = vadd.f32 %v1135, %v1560
        %v1663 = vadd.f32 %v1138, %v1563
        %v1664 = vadd.f32 %v1143, %v1568
        %v1665 = vadd.f32 %v1146, %v1571
        %v1666 = vadd.f32 %v1151, %v1576
        %v1667 = vadd.f32 %v1154, %v1579
        %v1668 = vadd.f32 %v1159, %v1584
        %v1669 = vadd.f32 %v1162, %v1587
        %v1670 = vadd.f32 %v1167, %v1592
        %v1671 = vadd.f32 %v1170, %v1595
        %v1672 = vadd.f32 %v1175, %v1600
        %v1673 = vadd.f32 %v1178, %v1603
        %v1674 = vadd.f32 %v1183, %v1608
        %v1675 = vadd.f32 %v1186, %v1611
        %v1676 = vadd.f32 %v1191, %v1616
        %v1677 = vadd.f32 %v1194, %v1619
        %v1678 = vadd.f32 %v1199, %v1624
        %v1679 = vadd.f32 %v1202, %v1627
        %v1680 = vadd.f32 %v1207, %v1632
        %v1681 = vadd.f32 %v1210, %v1635
        %v1682 = vadd.f32 %v1215, %v1640
        %v1683 = vadd.f32 %v1218, %v1643
        %v1684 = vadd.f32 %v1223, %v1648
        %v1685 = vadd.f32 %v1226, %v1651
        %s1686 = sadd.s32 %s233, 1
        %s1687 = smul.u32 %s1686, 3
        %s1688 = smul.addr %s1687, 4
        %s1689 = scalar_lea.vmem %s230, %s1688
        %v1690 = vld [vmem:[%s1689] sm:$0xf]
        %v1691 = vld [vmem:[%s1689 + $0x4] sm:$0xf]
        %v1692 = vld [vmem:[%s1689 + $0xc] sm:$0xf]
        %v1693 = vld [vmem:[%s1689 + $0x10] sm:$0xf]
        %v1694 = vld [vmem:[%s1689 + $0x18] sm:$0xf]
        %v1695 = vld [vmem:[%s1689 + $0x1c] sm:$0xf]
        %v1696 = vld [vmem:[%s1689 + $0x24] sm:$0xf]
        %v1697 = vld [vmem:[%s1689 + $0x28] sm:$0xf]
        %v1698 = vld [vmem:[%s1689 + $0x30] sm:$0xf]
        %v1699 = vld [vmem:[%s1689 + $0x34] sm:$0xf]
        %v1700 = vld [vmem:[%s1689 + $0x3c] sm:$0xf]
        %v1701 = vld [vmem:[%s1689 + $0x40] sm:$0xf]
        %v1702 = vld [vmem:[%s1689 + $0x48] sm:$0xf]
        %v1703 = vld [vmem:[%s1689 + $0x4c] sm:$0xf]
        %v1704 = vld [vmem:[%s1689 + $0x54] sm:$0xf]
        %v1705 = vld [vmem:[%s1689 + $0x58] sm:$0xf]
        %v1706 = vld [vmem:[%s1689 + $0x60] sm:$0xf]
        %v1707 = vld [vmem:[%s1689 + $0x64] sm:$0xf]
        %v1708 = vld [vmem:[%s1689 + $0x6c] sm:$0xf]
        %v1709 = vld [vmem:[%s1689 + $0x70] sm:$0xf]
        %v1710 = vld [vmem:[%s1689 + $0x78] sm:$0xf]
        %v1711 = vld [vmem:[%s1689 + $0x7c] sm:$0xf]
        %v1712 = vld [vmem:[%s1689 + $0x84] sm:$0xf]
        %v1713 = vld [vmem:[%s1689 + $0x88] sm:$0xf]
        %v1714 = vld [vmem:[%s1689 + $0x90] sm:$0xf]
        %v1715 = vld [vmem:[%s1689 + $0x94] sm:$0xf]
        %v1716 = vld [vmem:[%s1689 + $0x9c] sm:$0xf]
        %v1717 = vld [vmem:[%s1689 + $0xa0] sm:$0xf]
        %v1718 = vld [vmem:[%s1689 + $0xa8] sm:$0xf]
        %v1719 = vld [vmem:[%s1689 + $0xac] sm:$0xf]
        %v1720 = vld [vmem:[%s1689 + $0xb4] sm:$0xf]
        %v1721 = vld [vmem:[%s1689 + $0xb8] sm:$0xf]
        %s1722 = scalar_lea.vmem %s1, 6
        %v1723 = vld [vmem:[%s1722] sm:$0x3]
        %v1756 = vunpack.c.l.b16 %v1690
        %v1757 = vunpack.c.l.b16 %v1691
        %v1758 = vunpack.c.l.b16 %v1692
        %v1759 = vunpack.c.l.b16 %v1693
        %v1760 = vunpack.c.l.b16 %v1694
        %v1761 = vunpack.c.l.b16 %v1695
        %v1762 = vunpack.c.l.b16 %v1696
        %v1763 = vunpack.c.l.b16 %v1697
        %v1764 = vunpack.c.l.b16 %v1698
        %v1765 = vunpack.c.l.b16 %v1699
        %v1766 = vunpack.c.l.b16 %v1700
        %v1767 = vunpack.c.l.b16 %v1701
        %v1768 = vunpack.c.l.b16 %v1702
        %v1769 = vunpack.c.l.b16 %v1703
        %v1770 = vunpack.c.l.b16 %v1704
        %v1771 = vunpack.c.l.b16 %v1705
        %v1772 = vunpack.c.l.b16 %v1706
        %v1773 = vunpack.c.l.b16 %v1707
        %v1774 = vunpack.c.l.b16 %v1708
        %v1775 = vunpack.c.l.b16 %v1709
        %v1776 = vunpack.c.l.b16 %v1710
        %v1777 = vunpack.c.l.b16 %v1711
        %v1778 = vunpack.c.l.b16 %v1712
        %v1779 = vunpack.c.l.b16 %v1713
        %v1780 = vunpack.c.l.b16 %v1714
        %v1781 = vunpack.c.l.b16 %v1715
        %v1782 = vunpack.c.l.b16 %v1716
        %v1783 = vunpack.c.l.b16 %v1717
        %v1784 = vunpack.c.l.b16 %v1718
        %v1785 = vunpack.c.l.b16 %v1719
        %v1786 = vunpack.c.l.b16 %v1720
        %v1787 = vunpack.c.l.b16 %v1721
        %v1788 = vpack.c.b16 %v1757, %v1756
        %v1789 = vpack.c.b16 %v1759, %v1758
        %v1790 = vpack.c.b16 %v1761, %v1760
        %v1791 = vpack.c.b16 %v1763, %v1762
        %v1792 = vpack.c.b16 %v1765, %v1764
        %v1793 = vpack.c.b16 %v1767, %v1766
        %v1794 = vpack.c.b16 %v1769, %v1768
        %v1795 = vpack.c.b16 %v1771, %v1770
        %v1796 = vpack.c.b16 %v1773, %v1772
        %v1797 = vpack.c.b16 %v1775, %v1774
        %v1798 = vpack.c.b16 %v1777, %v1776
        %v1799 = vpack.c.b16 %v1779, %v1778
        %v1800 = vpack.c.b16 %v1781, %v1780
        %v1801 = vpack.c.b16 %v1783, %v1782
        %v1802 = vpack.c.b16 %v1785, %v1784
        %v1803 = vpack.c.b16 %v1787, %v1786
        %v1805 = vsel %vm723, %v1788, 0
        %v1808 = vsel %vm723, %v1789, 0
        %v1811 = vsel %vm723, %v1790, 0
        %v1814 = vsel %vm723, %v1791, 0
        %v1817 = vsel %vm723, %v1792, 0
        %v1820 = vsel %vm723, %v1793, 0
        %v1823 = vsel %vm723, %v1794, 0
        %v1826 = vsel %vm723, %v1795, 0
        %v1829 = vsel %vm723, %v1796, 0
        %v1832 = vsel %vm723, %v1797, 0
        %v1835 = vsel %vm723, %v1798, 0
        %v1838 = vsel %vm723, %v1799, 0
        %v1841 = vsel %vm723, %v1800, 0
        %v1844 = vsel %vm723, %v1801, 0
        %v1847 = vsel %vm723, %v1802, 0
        %v1850 = vsel %vm723, %v1803, 0
        %v1853 = vsel %vm772, %v1723, 0
        %1855 = vmatprep.subr.bf16.mxu0 0
        %1856 = vmatpush1.bf16.msra.mxu0 0
        %1857 = vmatprep.subr.bf16.mxu0 0
        %1858 = vmatpush1.bf16.msra.mxu0 0
        %1859 = vmatprep.subr.bf16.mxu0 0
        %1860 = vmatpush1.bf16.msra.mxu0 0
        %1861 = vmatprep.subr.bf16.mxu0 0
        %1862 = vmatpush1.bf16.msra.mxu0 0
        %1863 = vmatprep.subr.bf16.mxu0 0
        %1864 = vmatpush1.bf16.msra.mxu0 0
        %1865 = vmatprep.subr.bf16.mxu0 0
        %1866 = vmatpush1.bf16.msra.mxu0 0
        %1867 = vmatprep.subr.bf16.mxu0 0
        %1868 = vmatpush1.bf16.msra.mxu0 0
        %1869 = vmatprep.subr.bf16.mxu0 0
        %1870 = vmatpush1.bf16.msra.mxu0 %v1853
        %1871 = vmatprep.subr.bf16.mxu0 0
        %1872 = vmatpush2.bf16.msra.mxu0 0
        %1873 = vmatprep.subr.bf16.mxu0 0
        %1874 = vmatpush2.bf16.msra.mxu0 0
        %1875 = vmatprep.subr.bf16.mxu0 0
        %1876 = vmatpush2.bf16.msra.mxu0 0
        %1877 = vmatprep.subr.bf16.mxu0 0
        %1878 = vmatpush2.bf16.msra.mxu0 0
        %1879 = vmatprep.subr.bf16.mxu0 0
        %1880 = vmatpush2.bf16.msra.mxu0 0
        %1881 = vmatprep.subr.bf16.mxu0 0
        %1882 = vmatpush2.bf16.msra.mxu0 0
        %1883 = vmatprep.subr.bf16.mxu0 0
        %1884 = vmatpush2.bf16.msra.mxu0 0
        %1885 = vmatprep.subr.bf16.mxu0 0
        %1886 = vmatpush2.bf16.msra.mxu0 0
        %1887 = vmatprep.mubr.bf16.mxu0 0
        %1888 = vmatmul.mubr.bf16.gmra.mxu0 %v1805
        %v1889 = vpop.f32.mrf.mxu0
        %v1890 = vadd.f32 0.0, %v1889
        %v1891 = vpop.f32.mrf.mxu0
        %v1892 = vpop.f32.mrf.mxu0
        %v1893 = vadd.f32 0.0, %v1892
        %v1894 = vpop.f32.mrf.mxu0
        %1895 = vmatprep.mubr.bf16.mxu0 0
        %1896 = vmatmul.mubr.bf16.gmra.mxu0 %v1808
        %v1897 = vpop.f32.mrf.mxu0
        %v1898 = vadd.f32 0.0, %v1897
        %v1899 = vpop.f32.mrf.mxu0
        %v1900 = vpop.f32.mrf.mxu0
        %v1901 = vadd.f32 0.0, %v1900
        %v1902 = vpop.f32.mrf.mxu0
        %1903 = vmatprep.mubr.bf16.mxu0 0
        %1904 = vmatmul.mubr.bf16.gmra.mxu0 %v1811
        %v1905 = vpop.f32.mrf.mxu0
        %v1906 = vadd.f32 0.0, %v1905
        %v1907 = vpop.f32.mrf.mxu0
        %v1908 = vpop.f32.mrf.mxu0
        %v1909 = vadd.f32 0.0, %v1908
        %v1910 = vpop.f32.mrf.mxu0
        %1911 = vmatprep.mubr.bf16.mxu0 0
        %1912 = vmatmul.mubr.bf16.gmra.mxu0 %v1814
        %v1913 = vpop.f32.mrf.mxu0
        %v1914 = vadd.f32 0.0, %v1913
        %v1915 = vpop.f32.mrf.mxu0
        %v1916 = vpop.f32.mrf.mxu0
        %v1917 = vadd.f32 0.0, %v1916
        %v1918 = vpop.f32.mrf.mxu0
        %1919 = vmatprep.mubr.bf16.mxu0 0
        %1920 = vmatmul.mubr.bf16.gmra.mxu0 %v1817
        %v1921 = vpop.f32.mrf.mxu0
        %v1922 = vadd.f32 0.0, %v1921
        %v1923 = vpop.f32.mrf.mxu0
        %v1924 = vpop.f32.mrf.mxu0
        %v1925 = vadd.f32 0.0, %v1924
        %v1926 = vpop.f32.mrf.mxu0
        %1927 = vmatprep.mubr.bf16.mxu0 0
        %1928 = vmatmul.mubr.bf16.gmra.mxu0 %v1820
        %v1929 = vpop.f32.mrf.mxu0
        %v1930 = vadd.f32 0.0, %v1929
        %v1931 = vpop.f32.mrf.mxu0
        %v1932 = vpop.f32.mrf.mxu0
        %v1933 = vadd.f32 0.0, %v1932
        %v1934 = vpop.f32.mrf.mxu0
        %1935 = vmatprep.mubr.bf16.mxu0 0
        %1936 = vmatmul.mubr.bf16.gmra.mxu0 %v1823
        %v1937 = vpop.f32.mrf.mxu0
        %v1938 = vadd.f32 0.0, %v1937
        %v1939 = vpop.f32.mrf.mxu0
        %v1940 = vpop.f32.mrf.mxu0
        %v1941 = vadd.f32 0.0, %v1940
        %v1942 = vpop.f32.mrf.mxu0
        %1943 = vmatprep.mubr.bf16.mxu0 0
        %1944 = vmatmul.mubr.bf16.gmra.mxu0 %v1826
        %v1945 = vpop.f32.mrf.mxu0
        %v1946 = vadd.f32 0.0, %v1945
        %v1947 = vpop.f32.mrf.mxu0
        %v1948 = vpop.f32.mrf.mxu0
        %v1949 = vadd.f32 0.0, %v1948
        %v1950 = vpop.f32.mrf.mxu0
        %1951 = vmatprep.mubr.bf16.mxu0 0
        %1952 = vmatmul.mubr.bf16.gmra.mxu0 %v1829
        %v1953 = vpop.f32.mrf.mxu0
        %v1954 = vadd.f32 0.0, %v1953
        %v1955 = vpop.f32.mrf.mxu0
        %v1956 = vpop.f32.mrf.mxu0
        %v1957 = vadd.f32 0.0, %v1956
        %v1958 = vpop.f32.mrf.mxu0
        %1959 = vmatprep.mubr.bf16.mxu0 0
        %1960 = vmatmul.mubr.bf16.gmra.mxu0 %v1832
        %v1961 = vpop.f32.mrf.mxu0
        %v1962 = vadd.f32 0.0, %v1961
        %v1963 = vpop.f32.mrf.mxu0
        %v1964 = vpop.f32.mrf.mxu0
        %v1965 = vadd.f32 0.0, %v1964
        %v1966 = vpop.f32.mrf.mxu0
        %1967 = vmatprep.mubr.bf16.mxu0 0
        %1968 = vmatmul.mubr.bf16.gmra.mxu0 %v1835
        %v1969 = vpop.f32.mrf.mxu0
        %v1970 = vadd.f32 0.0, %v1969
        %v1971 = vpop.f32.mrf.mxu0
        %v1972 = vpop.f32.mrf.mxu0
        %v1973 = vadd.f32 0.0, %v1972
        %v1974 = vpop.f32.mrf.mxu0
        %1975 = vmatprep.mubr.bf16.mxu0 0
        %1976 = vmatmul.mubr.bf16.gmra.mxu0 %v1838
        %v1977 = vpop.f32.mrf.mxu0
        %v1978 = vadd.f32 0.0, %v1977
        %v1979 = vpop.f32.mrf.mxu0
        %v1980 = vpop.f32.mrf.mxu0
        %v1981 = vadd.f32 0.0, %v1980
        %v1982 = vpop.f32.mrf.mxu0
        %1983 = vmatprep.mubr.bf16.mxu0 0
        %1984 = vmatmul.mubr.bf16.gmra.mxu0 %v1841
        %v1985 = vpop.f32.mrf.mxu0
        %v1986 = vadd.f32 0.0, %v1985
        %v1987 = vpop.f32.mrf.mxu0
        %v1988 = vpop.f32.mrf.mxu0
        %v1989 = vadd.f32 0.0, %v1988
        %v1990 = vpop.f32.mrf.mxu0
        %1991 = vmatprep.mubr.bf16.mxu0 0
        %1992 = vmatmul.mubr.bf16.gmra.mxu0 %v1844
        %v1993 = vpop.f32.mrf.mxu0
        %v1994 = vadd.f32 0.0, %v1993
        %v1995 = vpop.f32.mrf.mxu0
        %v1996 = vpop.f32.mrf.mxu0
        %v1997 = vadd.f32 0.0, %v1996
        %v1998 = vpop.f32.mrf.mxu0
        %1999 = vmatprep.mubr.bf16.mxu0 0
        %2000 = vmatmul.mubr.bf16.gmra.mxu0 %v1847
        %v2001 = vpop.f32.mrf.mxu0
        %v2002 = vadd.f32 0.0, %v2001
        %v2003 = vpop.f32.mrf.mxu0
        %v2004 = vpop.f32.mrf.mxu0
        %v2005 = vadd.f32 0.0, %v2004
        %v2006 = vpop.f32.mrf.mxu0
        %2007 = vmatprep.mubr.bf16.mxu0 0
        %2008 = vmatmul.mubr.bf16.gmra.mxu0 %v1850
        %v2009 = vpop.f32.mrf.mxu0
        %v2010 = vadd.f32 0.0, %v2009
        %v2011 = vpop.f32.mrf.mxu0
        %v2012 = vpop.f32.mrf.mxu0
        %v2013 = vadd.f32 0.0, %v2012
        %v2014 = vpop.f32.mrf.mxu0
        %2015 = vdwg.mxu0
        %v2016 = vadd.f32 %v1654, %v1890
        %v2017 = vadd.f32 %v1655, %v1893
        %v2018 = vadd.f32 %v1656, %v1898
        %v2019 = vadd.f32 %v1657, %v1901
        %v2020 = vadd.f32 %v1658, %v1906
        %v2021 = vadd.f32 %v1659, %v1909
        %v2022 = vadd.f32 %v1660, %v1914
        %v2023 = vadd.f32 %v1661, %v1917
        %v2024 = vadd.f32 %v1662, %v1922
        %v2025 = vadd.f32 %v1663, %v1925
        %v2026 = vadd.f32 %v1664, %v1930
        %v2027 = vadd.f32 %v1665, %v1933
        %v2028 = vadd.f32 %v1666, %v1938
        %v2029 = vadd.f32 %v1667, %v1941
        %v2030 = vadd.f32 %v1668, %v1946
        %v2031 = vadd.f32 %v1669, %v1949
        %v2032 = vadd.f32 %v1670, %v1954
        %v2033 = vadd.f32 %v1671, %v1957
        %v2034 = vadd.f32 %v1672, %v1962
        %v2035 = vadd.f32 %v1673, %v1965
        %v2036 = vadd.f32 %v1674, %v1970
        %v2037 = vadd.f32 %v1675, %v1973
        %v2038 = vadd.f32 %v1676, %v1978
        %v2039 = vadd.f32 %v1677, %v1981
        %v2040 = vadd.f32 %v1678, %v1986
        %v2041 = vadd.f32 %v1679, %v1989
        %v2042 = vadd.f32 %v1680, %v1994
        %v2043 = vadd.f32 %v1681, %v1997
        %v2044 = vadd.f32 %v1682, %v2002
        %v2045 = vadd.f32 %v1683, %v2005
        %v2046 = vadd.f32 %v1684, %v2010
        %v2047 = vadd.f32 %v1685, %v2013
        %v2048 = vld [vmem:[%s1689] sm:$0xf]
        %v2049 = vld [vmem:[%s1689 + $0x4] sm:$0xf]
        %v2050 = vld [vmem:[%s1689 + $0x8] sm:$0x1]
        %v2051 = vld [vmem:[%s1689 + $0xc] sm:$0xf]
        %v2052 = vld [vmem:[%s1689 + $0x10] sm:$0xf]
        %v2053 = vld [vmem:[%s1689 + $0x14] sm:$0x1]
        %v2054 = vld [vmem:[%s1689 + $0x18] sm:$0xf]
        %v2055 = vld [vmem:[%s1689 + $0x1c] sm:$0xf]
        %v2056 = vld [vmem:[%s1689 + $0x20] sm:$0x1]
        %v2057 = vld [vmem:[%s1689 + $0x24] sm:$0xf]
        %v2058 = vld [vmem:[%s1689 + $0x28] sm:$0xf]
        %v2059 = vld [vmem:[%s1689 + $0x2c] sm:$0x1]
        %v2060 = vld [vmem:[%s1689 + $0x30] sm:$0xf]
        %v2061 = vld [vmem:[%s1689 + $0x34] sm:$0xf]
        %v2062 = vld [vmem:[%s1689 + $0x38] sm:$0x1]
        %v2063 = vld [vmem:[%s1689 + $0x3c] sm:$0xf]
        %v2064 = vld [vmem:[%s1689 + $0x40] sm:$0xf]
        %v2065 = vld [vmem:[%s1689 + $0x44] sm:$0x1]
        %v2066 = vld [vmem:[%s1689 + $0x48] sm:$0xf]
        %v2067 = vld [vmem:[%s1689 + $0x4c] sm:$0xf]
        %v2068 = vld [vmem:[%s1689 + $0x50] sm:$0x1]
        %v2069 = vld [vmem:[%s1689 + $0x54] sm:$0xf]
        %v2070 = vld [vmem:[%s1689 + $0x58] sm:$0xf]
        %v2071 = vld [vmem:[%s1689 + $0x5c] sm:$0x1]
        %v2072 = vld [vmem:[%s1689 + $0x60] sm:$0xf]
        %v2073 = vld [vmem:[%s1689 + $0x64] sm:$0xf]
        %v2074 = vld [vmem:[%s1689 + $0x68] sm:$0x1]
        %v2075 = vld [vmem:[%s1689 + $0x6c] sm:$0xf]
        %v2076 = vld [vmem:[%s1689 + $0x70] sm:$0xf]
        %v2077 = vld [vmem:[%s1689 + $0x74] sm:$0x1]
        %v2078 = vld [vmem:[%s1689 + $0x78] sm:$0xf]
        %v2079 = vld [vmem:[%s1689 + $0x7c] sm:$0xf]
        %v2080 = vld [vmem:[%s1689 + $0x80] sm:$0x1]
        %v2081 = vld [vmem:[%s1689 + $0x84] sm:$0xf]
        %v2082 = vld [vmem:[%s1689 + $0x88] sm:$0xf]
        %v2083 = vld [vmem:[%s1689 + $0x8c] sm:$0x1]
        %v2084 = vld [vmem:[%s1689 + $0x90] sm:$0xf]
        %v2085 = vld [vmem:[%s1689 + $0x94] sm:$0xf]
        %v2086 = vld [vmem:[%s1689 + $0x98] sm:$0x1]
        %v2087 = vld [vmem:[%s1689 + $0x9c] sm:$0xf]
        %v2088 = vld [vmem:[%s1689 + $0xa0] sm:$0xf]
        %v2089 = vld [vmem:[%s1689 + $0xa4] sm:$0x1]
        %v2090 = vld [vmem:[%s1689 + $0xa8] sm:$0xf]
        %v2091 = vld [vmem:[%s1689 + $0xac] sm:$0xf]
        %v2092 = vld [vmem:[%s1689 + $0xb0] sm:$0x1]
        %v2093 = vld [vmem:[%s1689 + $0xb4] sm:$0xf]
        %v2094 = vld [vmem:[%s1689 + $0xb8] sm:$0xf]
        %v2095 = vld [vmem:[%s1689 + $0xbc] sm:$0x1]
        %v2097 = vshrl.u32 %v2048, 16
        %v2099 = vrot.slane %v2097, 4
        %v2100 = vshll.u32 %v2048, 16
        %v2102 = vrot.slane %v2100, 5
        %v2103 = vor.u32 %v2099, %v2102
        %v2104 = vrot.slane %v2103, 4
        %v2106 = vshll.u32 %v2049, 16
        %v2108 = vrot.slane %v2106, 5
        %v2109 = vsel %vm288, %v2104, %v2108
        %v2110 = vshrl.u32 %v2049, 16
        %v2112 = vrot.slane %v2110, 4
        %v2113 = vor.u32 %v2112, %v2108
        %v2114 = vrot.slane %v2113, 4
        %v2116 = vshll.u32 %v2050, 16
        %v2118 = vrot.slane %v2116, 5
        %v2119 = vsel %vm288, %v2114, %v2118
        %v2121 = vshrl.u32 %v2051, 16
        %v2123 = vrot.slane %v2121, 4
        %v2124 = vshll.u32 %v2051, 16
        %v2126 = vrot.slane %v2124, 5
        %v2127 = vor.u32 %v2123, %v2126
        %v2128 = vrot.slane %v2127, 4
        %v2130 = vshll.u32 %v2052, 16
        %v2132 = vrot.slane %v2130, 5
        %v2133 = vsel %vm288, %v2128, %v2132
        %v2134 = vshrl.u32 %v2052, 16
        %v2136 = vrot.slane %v2134, 4
        %v2137 = vor.u32 %v2136, %v2132
        %v2138 = vrot.slane %v2137, 4
        %v2140 = vshll.u32 %v2053, 16
        %v2142 = vrot.slane %v2140, 5
        %v2143 = vsel %vm288, %v2138, %v2142
        %v2145 = vshrl.u32 %v2054, 16
        %v2147 = vrot.slane %v2145, 4
        %v2148 = vshll.u32 %v2054, 16
        %v2150 = vrot.slane %v2148, 5
        %v2151 = vor.u32 %v2147, %v2150
        %v2152 = vrot.slane %v2151, 4
        %v2154 = vshll.u32 %v2055, 16
        %v2156 = vrot.slane %v2154, 5
        %v2157 = vsel %vm288, %v2152, %v2156
        %v2158 = vshrl.u32 %v2055, 16
        %v2160 = vrot.slane %v2158, 4
        %v2161 = vor.u32 %v2160, %v2156
        %v2162 = vrot.slane %v2161, 4
        %v2164 = vshll.u32 %v2056, 16
        %v2166 = vrot.slane %v2164, 5
        %v2167 = vsel %vm288, %v2162, %v2166
        %v2169 = vshrl.u32 %v2057, 16
        %v2171 = vrot.slane %v2169, 4
        %v2172 = vshll.u32 %v2057, 16
        %v2174 = vrot.slane %v2172, 5
        %v2175 = vor.u32 %v2171, %v2174
        %v2176 = vrot.slane %v2175, 4
        %v2178 = vshll.u32 %v2058, 16
        %v2180 = vrot.slane %v2178, 5
        %v2181 = vsel %vm288, %v2176, %v2180
        %v2182 = vshrl.u32 %v2058, 16
        %v2184 = vrot.slane %v2182, 4
        %v2185 = vor.u32 %v2184, %v2180
        %v2186 = vrot.slane %v2185, 4
        %v2188 = vshll.u32 %v2059, 16
        %v2190 = vrot.slane %v2188, 5
        %v2191 = vsel %vm288, %v2186, %v2190
        %v2193 = vshrl.u32 %v2060, 16
        %v2195 = vrot.slane %v2193, 4
        %v2196 = vshll.u32 %v2060, 16
        %v2198 = vrot.slane %v2196, 5
        %v2199 = vor.u32 %v2195, %v2198
        %v2200 = vrot.slane %v2199, 4
        %v2202 = vshll.u32 %v2061, 16
        %v2204 = vrot.slane %v2202, 5
        %v2205 = vsel %vm288, %v2200, %v2204
        %v2206 = vshrl.u32 %v2061, 16
        %v2208 = vrot.slane %v2206, 4
        %v2209 = vor.u32 %v2208, %v2204
        %v2210 = vrot.slane %v2209, 4
        %v2212 = vshll.u32 %v2062, 16
        %v2214 = vrot.slane %v2212, 5
        %v2215 = vsel %vm288, %v2210, %v2214
        %v2217 = vshrl.u32 %v2063, 16
        %v2219 = vrot.slane %v2217, 4
        %v2220 = vshll.u32 %v2063, 16
        %v2222 = vrot.slane %v2220, 5
        %v2223 = vor.u32 %v2219, %v2222
        %v2224 = vrot.slane %v2223, 4
        %v2226 = vshll.u32 %v2064, 16
        %v2228 = vrot.slane %v2226, 5
        %v2229 = vsel %vm288, %v2224, %v2228
        %v2230 = vshrl.u32 %v2064, 16
        %v2232 = vrot.slane %v2230, 4
        %v2233 = vor.u32 %v2232, %v2228
        %v2234 = vrot.slane %v2233, 4
        %v2236 = vshll.u32 %v2065, 16
        %v2238 = vrot.slane %v2236, 5
        %v2239 = vsel %vm288, %v2234, %v2238
        %v2241 = vshrl.u32 %v2066, 16
        %v2243 = vrot.slane %v2241, 4
        %v2244 = vshll.u32 %v2066, 16
        %v2246 = vrot.slane %v2244, 5
        %v2247 = vor.u32 %v2243, %v2246
        %v2248 = vrot.slane %v2247, 4
        %v2250 = vshll.u32 %v2067, 16
        %v2252 = vrot.slane %v2250, 5
        %v2253 = vsel %vm288, %v2248, %v2252
        %v2254 = vshrl.u32 %v2067, 16
        %v2256 = vrot.slane %v2254, 4
        %v2257 = vor.u32 %v2256, %v2252
        %v2258 = vrot.slane %v2257, 4
        %v2260 = vshll.u32 %v2068, 16
        %v2262 = vrot.slane %v2260, 5
        %v2263 = vsel %vm288, %v2258, %v2262
        %v2265 = vshrl.u32 %v2069, 16
        %v2267 = vrot.slane %v2265, 4
        %v2268 = vshll.u32 %v2069, 16
        %v2270 = vrot.slane %v2268, 5
        %v2271 = vor.u32 %v2267, %v2270
        %v2272 = vrot.slane %v2271, 4
        %v2274 = vshll.u32 %v2070, 16
        %v2276 = vrot.slane %v2274, 5
        %v2277 = vsel %vm288, %v2272, %v2276
        %v2278 = vshrl.u32 %v2070, 16
        %v2280 = vrot.slane %v2278, 4
        %v2281 = vor.u32 %v2280, %v2276
        %v2282 = vrot.slane %v2281, 4
        %v2284 = vshll.u32 %v2071, 16
        %v2286 = vrot.slane %v2284, 5
        %v2287 = vsel %vm288, %v2282, %v2286
        %v2289 = vshrl.u32 %v2072, 16
        %v2291 = vrot.slane %v2289, 4
        %v2292 = vshll.u32 %v2072, 16
        %v2294 = vrot.slane %v2292, 5
        %v2295 = vor.u32 %v2291, %v2294
        %v2296 = vrot.slane %v2295, 4
        %v2298 = vshll.u32 %v2073, 16
        %v2300 = vrot.slane %v2298, 5
        %v2301 = vsel %vm288, %v2296, %v2300
        %v2302 = vshrl.u32 %v2073, 16
        %v2304 = vrot.slane %v2302, 4
        %v2305 = vor.u32 %v2304, %v2300
        %v2306 = vrot.slane %v2305, 4
        %v2308 = vshll.u32 %v2074, 16
        %v2310 = vrot.slane %v2308, 5
        %v2311 = vsel %vm288, %v2306, %v2310
        %v2313 = vshrl.u32 %v2075, 16
        %v2315 = vrot.slane %v2313, 4
        %v2316 = vshll.u32 %v2075, 16
        %v2318 = vrot.slane %v2316, 5
        %v2319 = vor.u32 %v2315, %v2318
        %v2320 = vrot.slane %v2319, 4
        %v2322 = vshll.u32 %v2076, 16
        %v2324 = vrot.slane %v2322, 5
        %v2325 = vsel %vm288, %v2320, %v2324
        %v2326 = vshrl.u32 %v2076, 16
        %v2328 = vrot.slane %v2326, 4
        %v2329 = vor.u32 %v2328, %v2324
        %v2330 = vrot.slane %v2329, 4
        %v2332 = vshll.u32 %v2077, 16
        %v2334 = vrot.slane %v2332, 5
        %v2335 = vsel %vm288, %v2330, %v2334
        %v2337 = vshrl.u32 %v2078, 16
        %v2339 = vrot.slane %v2337, 4
        %v2340 = vshll.u32 %v2078, 16
        %v2342 = vrot.slane %v2340, 5
        %v2343 = vor.u32 %v2339, %v2342
        %v2344 = vrot.slane %v2343, 4
        %v2346 = vshll.u32 %v2079, 16
        %v2348 = vrot.slane %v2346, 5
        %v2349 = vsel %vm288, %v2344, %v2348
        %v2350 = vshrl.u32 %v2079, 16
        %v2352 = vrot.slane %v2350, 4
        %v2353 = vor.u32 %v2352, %v2348
        %v2354 = vrot.slane %v2353, 4
        %v2356 = vshll.u32 %v2080, 16
        %v2358 = vrot.slane %v2356, 5
        %v2359 = vsel %vm288, %v2354, %v2358
        %v2361 = vshrl.u32 %v2081, 16
        %v2363 = vrot.slane %v2361, 4
        %v2364 = vshll.u32 %v2081, 16
        %v2366 = vrot.slane %v2364, 5
        %v2367 = vor.u32 %v2363, %v2366
        %v2368 = vrot.slane %v2367, 4
        %v2370 = vshll.u32 %v2082, 16
        %v2372 = vrot.slane %v2370, 5
        %v2373 = vsel %vm288, %v2368, %v2372
        %v2374 = vshrl.u32 %v2082, 16
        %v2376 = vrot.slane %v2374, 4
        %v2377 = vor.u32 %v2376, %v2372
        %v2378 = vrot.slane %v2377, 4
        %v2380 = vshll.u32 %v2083, 16
        %v2382 = vrot.slane %v2380, 5
        %v2383 = vsel %vm288, %v2378, %v2382
        %v2385 = vshrl.u32 %v2084, 16
        %v2387 = vrot.slane %v2385, 4
        %v2388 = vshll.u32 %v2084, 16
        %v2390 = vrot.slane %v2388, 5
        %v2391 = vor.u32 %v2387, %v2390
        %v2392 = vrot.slane %v2391, 4
        %v2394 = vshll.u32 %v2085, 16
        %v2396 = vrot.slane %v2394, 5
        %v2397 = vsel %vm288, %v2392, %v2396
        %v2398 = vshrl.u32 %v2085, 16
        %v2400 = vrot.slane %v2398, 4
        %v2401 = vor.u32 %v2400, %v2396
        %v2402 = vrot.slane %v2401, 4
        %v2404 = vshll.u32 %v2086, 16
        %v2406 = vrot.slane %v2404, 5
        %v2407 = vsel %vm288, %v2402, %v2406
        %v2409 = vshrl.u32 %v2087, 16
        %v2411 = vrot.slane %v2409, 4
        %v2412 = vshll.u32 %v2087, 16
        %v2414 = vrot.slane %v2412, 5
        %v2415 = vor.u32 %v2411, %v2414
        %v2416 = vrot.slane %v2415, 4
        %v2418 = vshll.u32 %v2088, 16
        %v2420 = vrot.slane %v2418, 5
        %v2421 = vsel %vm288, %v2416, %v2420
        %v2422 = vshrl.u32 %v2088, 16
        %v2424 = vrot.slane %v2422, 4
        %v2425 = vor.u32 %v2424, %v2420
        %v2426 = vrot.slane %v2425, 4
        %v2428 = vshll.u32 %v2089, 16
        %v2430 = vrot.slane %v2428, 5
        %v2431 = vsel %vm288, %v2426, %v2430
        %v2433 = vshrl.u32 %v2090, 16
        %v2435 = vrot.slane %v2433, 4
        %v2436 = vshll.u32 %v2090, 16
        %v2438 = vrot.slane %v2436, 5
        %v2439 = vor.u32 %v2435, %v2438
        %v2440 = vrot.slane %v2439, 4
        %v2442 = vshll.u32 %v2091, 16
        %v2444 = vrot.slane %v2442, 5
        %v2445 = vsel %vm288, %v2440, %v2444
        %v2446 = vshrl.u32 %v2091, 16
        %v2448 = vrot.slane %v2446, 4
        %v2449 = vor.u32 %v2448, %v2444
        %v2450 = vrot.slane %v2449, 4
        %v2452 = vshll.u32 %v2092, 16
        %v2454 = vrot.slane %v2452, 5
        %v2455 = vsel %vm288, %v2450, %v2454
        %v2457 = vshrl.u32 %v2093, 16
        %v2459 = vrot.slane %v2457, 4
        %v2460 = vshll.u32 %v2093, 16
        %v2462 = vrot.slane %v2460, 5
        %v2463 = vor.u32 %v2459, %v2462
        %v2464 = vrot.slane %v2463, 4
        %v2466 = vshll.u32 %v2094, 16
        %v2468 = vrot.slane %v2466, 5
        %v2469 = vsel %vm288, %v2464, %v2468
        %v2470 = vshrl.u32 %v2094, 16
        %v2472 = vrot.slane %v2470, 4
        %v2473 = vor.u32 %v2472, %v2468
        %v2474 = vrot.slane %v2473, 4
        %v2476 = vshll.u32 %v2095, 16
        %v2478 = vrot.slane %v2476, 5
        %v2479 = vsel %vm288, %v2474, %v2478
        %s2480 = scalar_lea.vmem %s1, 8
        %v2481 = vld [vmem:[%s2480] sm:$0x3]
        %v2482 = vunpack.c.l.b16 %v2109
        %v2483 = vunpack.c.l.b16 %v2119
        %v2484 = vunpack.c.l.b16 %v2133
        %v2485 = vunpack.c.l.b16 %v2143
        %v2486 = vunpack.c.l.b16 %v2157
        %v2487 = vunpack.c.l.b16 %v2167
        %v2488 = vunpack.c.l.b16 %v2181
        %v2489 = vunpack.c.l.b16 %v2191
        %v2490 = vunpack.c.l.b16 %v2205
        %v2491 = vunpack.c.l.b16 %v2215
        %v2492 = vunpack.c.l.b16 %v2229
        %v2493 = vunpack.c.l.b16 %v2239
        %v2494 = vunpack.c.l.b16 %v2253
        %v2495 = vunpack.c.l.b16 %v2263
        %v2496 = vunpack.c.l.b16 %v2277
        %v2497 = vunpack.c.l.b16 %v2287
        %v2498 = vunpack.c.l.b16 %v2301
        %v2499 = vunpack.c.l.b16 %v2311
        %v2500 = vunpack.c.l.b16 %v2325
        %v2501 = vunpack.c.l.b16 %v2335
        %v2502 = vunpack.c.l.b16 %v2349
        %v2503 = vunpack.c.l.b16 %v2359
        %v2504 = vunpack.c.l.b16 %v2373
        %v2505 = vunpack.c.l.b16 %v2383
        %v2506 = vunpack.c.l.b16 %v2397
        %v2507 = vunpack.c.l.b16 %v2407
        %v2508 = vunpack.c.l.b16 %v2421
        %v2509 = vunpack.c.l.b16 %v2431
        %v2510 = vunpack.c.l.b16 %v2445
        %v2511 = vunpack.c.l.b16 %v2455
        %v2512 = vunpack.c.l.b16 %v2469
        %v2513 = vunpack.c.l.b16 %v2479
        %v2514 = vpack.c.b16 %v2483, %v2482
        %v2515 = vpack.c.b16 %v2485, %v2484
        %v2516 = vpack.c.b16 %v2487, %v2486
        %v2517 = vpack.c.b16 %v2489, %v2488
        %v2518 = vpack.c.b16 %v2491, %v2490
        %v2519 = vpack.c.b16 %v2493, %v2492
        %v2520 = vpack.c.b16 %v2495, %v2494
        %v2521 = vpack.c.b16 %v2497, %v2496
        %v2522 = vpack.c.b16 %v2499, %v2498
        %v2523 = vpack.c.b16 %v2501, %v2500
        %v2524 = vpack.c.b16 %v2503, %v2502
        %v2525 = vpack.c.b16 %v2505, %v2504
        %v2526 = vpack.c.b16 %v2507, %v2506
        %v2527 = vpack.c.b16 %v2509, %v2508
        %v2528 = vpack.c.b16 %v2511, %v2510
        %v2529 = vpack.c.b16 %v2513, %v2512
        %v2531 = vsel %vm723, %v2514, 0
        %v2534 = vsel %vm723, %v2515, 0
        %v2537 = vsel %vm723, %v2516, 0
        %v2540 = vsel %vm723, %v2517, 0
        %v2543 = vsel %vm723, %v2518, 0
        %v2546 = vsel %vm723, %v2519, 0
        %v2549 = vsel %vm723, %v2520, 0
        %v2552 = vsel %vm723, %v2521, 0
        %v2555 = vsel %vm723, %v2522, 0
        %v2558 = vsel %vm723, %v2523, 0
        %v2561 = vsel %vm723, %v2524, 0
        %v2564 = vsel %vm723, %v2525, 0
        %v2567 = vsel %vm723, %v2526, 0
        %v2570 = vsel %vm723, %v2527, 0
        %v2573 = vsel %vm723, %v2528, 0
        %v2576 = vsel %vm723, %v2529, 0
        %v2579 = vsel %vm772, %v2481, 0
        %2581 = vmatprep.subr.bf16.mxu0 0
        %2582 = vmatpush1.bf16.msra.mxu0 0
        %2583 = vmatprep.subr.bf16.mxu0 0
        %2584 = vmatpush1.bf16.msra.mxu0 0
        %2585 = vmatprep.subr.bf16.mxu0 0
        %2586 = vmatpush1.bf16.msra.mxu0 0
        %2587 = vmatprep.subr.bf16.mxu0 0
        %2588 = vmatpush1.bf16.msra.mxu0 0
        %2589 = vmatprep.subr.bf16.mxu0 0
        %2590 = vmatpush1.bf16.msra.mxu0 0
        %2591 = vmatprep.subr.bf16.mxu0 0
        %2592 = vmatpush1.bf16.msra.mxu0 0
        %2593 = vmatprep.subr.bf16.mxu0 0
        %2594 = vmatpush1.bf16.msra.mxu0 0
        %2595 = vmatprep.subr.bf16.mxu0 0
        %2596 = vmatpush1.bf16.msra.mxu0 %v2579
        %2597 = vmatprep.subr.bf16.mxu0 0
        %2598 = vmatpush2.bf16.msra.mxu0 0
        %2599 = vmatprep.subr.bf16.mxu0 0
        %2600 = vmatpush2.bf16.msra.mxu0 0
        %2601 = vmatprep.subr.bf16.mxu0 0
        %2602 = vmatpush2.bf16.msra.mxu0 0
        %2603 = vmatprep.subr.bf16.mxu0 0
        %2604 = vmatpush2.bf16.msra.mxu0 0
        %2605 = vmatprep.subr.bf16.mxu0 0
        %2606 = vmatpush2.bf16.msra.mxu0 0
        %2607 = vmatprep.subr.bf16.mxu0 0
        %2608 = vmatpush2.bf16.msra.mxu0 0
        %2609 = vmatprep.subr.bf16.mxu0 0
        %2610 = vmatpush2.bf16.msra.mxu0 0
        %2611 = vmatprep.subr.bf16.mxu0 0
        %2612 = vmatpush2.bf16.msra.mxu0 0
        %2613 = vmatprep.mubr.bf16.mxu0 0
        %2614 = vmatmul.mubr.bf16.gmra.mxu0 %v2531
        %v2615 = vpop.f32.mrf.mxu0
        %v2616 = vadd.f32 0.0, %v2615
        %v2617 = vpop.f32.mrf.mxu0
        %v2618 = vpop.f32.mrf.mxu0
        %v2619 = vadd.f32 0.0, %v2618
        %v2620 = vpop.f32.mrf.mxu0
        %2621 = vmatprep.mubr.bf16.mxu0 0
        %2622 = vmatmul.mubr.bf16.gmra.mxu0 %v2534
        %v2623 = vpop.f32.mrf.mxu0
        %v2624 = vadd.f32 0.0, %v2623
        %v2625 = vpop.f32.mrf.mxu0
        %v2626 = vpop.f32.mrf.mxu0
        %v2627 = vadd.f32 0.0, %v2626
        %v2628 = vpop.f32.mrf.mxu0
        %2629 = vmatprep.mubr.bf16.mxu0 0
        %2630 = vmatmul.mubr.bf16.gmra.mxu0 %v2537
        %v2631 = vpop.f32.mrf.mxu0
        %v2632 = vadd.f32 0.0, %v2631
        %v2633 = vpop.f32.mrf.mxu0
        %v2634 = vpop.f32.mrf.mxu0
        %v2635 = vadd.f32 0.0, %v2634
        %v2636 = vpop.f32.mrf.mxu0
        %2637 = vmatprep.mubr.bf16.mxu0 0
        %2638 = vmatmul.mubr.bf16.gmra.mxu0 %v2540
        %v2639 = vpop.f32.mrf.mxu0
        %v2640 = vadd.f32 0.0, %v2639
        %v2641 = vpop.f32.mrf.mxu0
        %v2642 = vpop.f32.mrf.mxu0
        %v2643 = vadd.f32 0.0, %v2642
        %v2644 = vpop.f32.mrf.mxu0
        %2645 = vmatprep.mubr.bf16.mxu0 0
        %2646 = vmatmul.mubr.bf16.gmra.mxu0 %v2543
        %v2647 = vpop.f32.mrf.mxu0
        %v2648 = vadd.f32 0.0, %v2647
        %v2649 = vpop.f32.mrf.mxu0
        %v2650 = vpop.f32.mrf.mxu0
        %v2651 = vadd.f32 0.0, %v2650
        %v2652 = vpop.f32.mrf.mxu0
        %2653 = vmatprep.mubr.bf16.mxu0 0
        %2654 = vmatmul.mubr.bf16.gmra.mxu0 %v2546
        %v2655 = vpop.f32.mrf.mxu0
        %v2656 = vadd.f32 0.0, %v2655
        %v2657 = vpop.f32.mrf.mxu0
        %v2658 = vpop.f32.mrf.mxu0
        %v2659 = vadd.f32 0.0, %v2658
        %v2660 = vpop.f32.mrf.mxu0
        %2661 = vmatprep.mubr.bf16.mxu0 0
        %2662 = vmatmul.mubr.bf16.gmra.mxu0 %v2549
        %v2663 = vpop.f32.mrf.mxu0
        %v2664 = vadd.f32 0.0, %v2663
        %v2665 = vpop.f32.mrf.mxu0
        %v2666 = vpop.f32.mrf.mxu0
        %v2667 = vadd.f32 0.0, %v2666
        %v2668 = vpop.f32.mrf.mxu0
        %2669 = vmatprep.mubr.bf16.mxu0 0
        %2670 = vmatmul.mubr.bf16.gmra.mxu0 %v2552
        %v2671 = vpop.f32.mrf.mxu0
        %v2672 = vadd.f32 0.0, %v2671
        %v2673 = vpop.f32.mrf.mxu0
        %v2674 = vpop.f32.mrf.mxu0
        %v2675 = vadd.f32 0.0, %v2674
        %v2676 = vpop.f32.mrf.mxu0
        %2677 = vmatprep.mubr.bf16.mxu0 0
        %2678 = vmatmul.mubr.bf16.gmra.mxu0 %v2555
        %v2679 = vpop.f32.mrf.mxu0
        %v2680 = vadd.f32 0.0, %v2679
        %v2681 = vpop.f32.mrf.mxu0
        %v2682 = vpop.f32.mrf.mxu0
        %v2683 = vadd.f32 0.0, %v2682
        %v2684 = vpop.f32.mrf.mxu0
        %2685 = vmatprep.mubr.bf16.mxu0 0
        %2686 = vmatmul.mubr.bf16.gmra.mxu0 %v2558
        %v2687 = vpop.f32.mrf.mxu0
        %v2688 = vadd.f32 0.0, %v2687
        %v2689 = vpop.f32.mrf.mxu0
        %v2690 = vpop.f32.mrf.mxu0
        %v2691 = vadd.f32 0.0, %v2690
        %v2692 = vpop.f32.mrf.mxu0
        %2693 = vmatprep.mubr.bf16.mxu0 0
        %2694 = vmatmul.mubr.bf16.gmra.mxu0 %v2561
        %v2695 = vpop.f32.mrf.mxu0
        %v2696 = vadd.f32 0.0, %v2695
        %v2697 = vpop.f32.mrf.mxu0
        %v2698 = vpop.f32.mrf.mxu0
        %v2699 = vadd.f32 0.0, %v2698
        %v2700 = vpop.f32.mrf.mxu0
        %2701 = vmatprep.mubr.bf16.mxu0 0
        %2702 = vmatmul.mubr.bf16.gmra.mxu0 %v2564
        %v2703 = vpop.f32.mrf.mxu0
        %v2704 = vadd.f32 0.0, %v2703
        %v2705 = vpop.f32.mrf.mxu0
        %v2706 = vpop.f32.mrf.mxu0
        %v2707 = vadd.f32 0.0, %v2706
        %v2708 = vpop.f32.mrf.mxu0
        %2709 = vmatprep.mubr.bf16.mxu0 0
        %2710 = vmatmul.mubr.bf16.gmra.mxu0 %v2567
        %v2711 = vpop.f32.mrf.mxu0
        %v2712 = vadd.f32 0.0, %v2711
        %v2713 = vpop.f32.mrf.mxu0
        %v2714 = vpop.f32.mrf.mxu0
        %v2715 = vadd.f32 0.0, %v2714
        %v2716 = vpop.f32.mrf.mxu0
        %2717 = vmatprep.mubr.bf16.mxu0 0
        %2718 = vmatmul.mubr.bf16.gmra.mxu0 %v2570
        %v2719 = vpop.f32.mrf.mxu0
        %v2720 = vadd.f32 0.0, %v2719
        %v2721 = vpop.f32.mrf.mxu0
        %v2722 = vpop.f32.mrf.mxu0
        %v2723 = vadd.f32 0.0, %v2722
        %v2724 = vpop.f32.mrf.mxu0
        %2725 = vmatprep.mubr.bf16.mxu0 0
        %2726 = vmatmul.mubr.bf16.gmra.mxu0 %v2573
        %v2727 = vpop.f32.mrf.mxu0
        %v2728 = vadd.f32 0.0, %v2727
        %v2729 = vpop.f32.mrf.mxu0
        %v2730 = vpop.f32.mrf.mxu0
        %v2731 = vadd.f32 0.0, %v2730
        %v2732 = vpop.f32.mrf.mxu0
        %2733 = vmatprep.mubr.bf16.mxu0 0
        %2734 = vmatmul.mubr.bf16.gmra.mxu0 %v2576
        %v2735 = vpop.f32.mrf.mxu0
        %v2736 = vadd.f32 0.0, %v2735
        %v2737 = vpop.f32.mrf.mxu0
        %v2738 = vpop.f32.mrf.mxu0
        %v2739 = vadd.f32 0.0, %v2738
        %v2740 = vpop.f32.mrf.mxu0
        %2741 = vdwg.mxu0
        %v2742 = vadd.f32 %v2016, %v2616
        %v2743 = vadd.f32 %v2017, %v2619
        %v2744 = vadd.f32 %v2018, %v2624
        %v2745 = vadd.f32 %v2019, %v2627
        %v2746 = vadd.f32 %v2020, %v2632
        %v2747 = vadd.f32 %v2021, %v2635
        %v2748 = vadd.f32 %v2022, %v2640
        %v2749 = vadd.f32 %v2023, %v2643
        %v2750 = vadd.f32 %v2024, %v2648
        %v2751 = vadd.f32 %v2025, %v2651
        %v2752 = vadd.f32 %v2026, %v2656
        %v2753 = vadd.f32 %v2027, %v2659
        %v2754 = vadd.f32 %v2028, %v2664
        %v2755 = vadd.f32 %v2029, %v2667
        %v2756 = vadd.f32 %v2030, %v2672
        %v2757 = vadd.f32 %v2031, %v2675
        %v2758 = vadd.f32 %v2032, %v2680
        %v2759 = vadd.f32 %v2033, %v2683
        %v2760 = vadd.f32 %v2034, %v2688
        %v2761 = vadd.f32 %v2035, %v2691
        %v2762 = vadd.f32 %v2036, %v2696
        %v2763 = vadd.f32 %v2037, %v2699
        %v2764 = vadd.f32 %v2038, %v2704
        %v2765 = vadd.f32 %v2039, %v2707
        %v2766 = vadd.f32 %v2040, %v2712
        %v2767 = vadd.f32 %v2041, %v2715
        %v2768 = vadd.f32 %v2042, %v2720
        %v2769 = vadd.f32 %v2043, %v2723
        %v2770 = vadd.f32 %v2044, %v2728
        %v2771 = vadd.f32 %v2045, %v2731
        %v2772 = vadd.f32 %v2046, %v2736
        %v2773 = vadd.f32 %v2047, %v2739
        %v2774 = vld [vmem:[%s1689] sm:$0xe]
        %v2775 = vld [vmem:[%s1689 + $0xc] sm:$0xe]
        %v2776 = vld [vmem:[%s1689 + $0x18] sm:$0xe]
        %v2777 = vld [vmem:[%s1689 + $0x24] sm:$0xe]
        %v2778 = vld [vmem:[%s1689 + $0x30] sm:$0xe]
        %v2779 = vld [vmem:[%s1689 + $0x3c] sm:$0xe]
        %v2780 = vld [vmem:[%s1689 + $0x48] sm:$0xe]
        %v2781 = vld [vmem:[%s1689 + $0x54] sm:$0xe]
        %v2782 = vld [vmem:[%s1689 + $0x60] sm:$0xe]
        %v2783 = vld [vmem:[%s1689 + $0x6c] sm:$0xe]
        %v2784 = vld [vmem:[%s1689 + $0x78] sm:$0xe]
        %v2785 = vld [vmem:[%s1689 + $0x84] sm:$0xe]
        %v2786 = vld [vmem:[%s1689 + $0x90] sm:$0xe]
        %v2787 = vld [vmem:[%s1689 + $0x9c] sm:$0xe]
        %v2788 = vld [vmem:[%s1689 + $0xa8] sm:$0xe]
        %v2789 = vld [vmem:[%s1689 + $0xb4] sm:$0xe]
        %v2838 = vrot.slane %v2774, 5
        %v2839 = vrot.slane %v2838, 4
        %v2840 = vrot.slane %v2049, 5
        %v2841 = vsel %vm1279, %v2839, %v2840
        %v2842 = vrot.slane %v2840, 4
        %v2843 = vrot.slane %v2050, 5
        %v2844 = vsel %vm1279, %v2842, %v2843
        %v2845 = vrot.slane %v2775, 5
        %v2846 = vrot.slane %v2845, 4
        %v2847 = vrot.slane %v2052, 5
        %v2848 = vsel %vm1279, %v2846, %v2847
        %v2849 = vrot.slane %v2847, 4
        %v2850 = vrot.slane %v2053, 5
        %v2851 = vsel %vm1279, %v2849, %v2850
        %v2852 = vrot.slane %v2776, 5
        %v2853 = vrot.slane %v2852, 4
        %v2854 = vrot.slane %v2055, 5
        %v2855 = vsel %vm1279, %v2853, %v2854
        %v2856 = vrot.slane %v2854, 4
        %v2857 = vrot.slane %v2056, 5
        %v2858 = vsel %vm1279, %v2856, %v2857
        %v2859 = vrot.slane %v2777, 5
        %v2860 = vrot.slane %v2859, 4
        %v2861 = vrot.slane %v2058, 5
        %v2862 = vsel %vm1279, %v2860, %v2861
        %v2863 = vrot.slane %v2861, 4
        %v2864 = vrot.slane %v2059, 5
        %v2865 = vsel %vm1279, %v2863, %v2864
        %v2866 = vrot.slane %v2778, 5
        %v2867 = vrot.slane %v2866, 4
        %v2868 = vrot.slane %v2061, 5
        %v2869 = vsel %vm1279, %v2867, %v2868
        %v2870 = vrot.slane %v2868, 4
        %v2871 = vrot.slane %v2062, 5
        %v2872 = vsel %vm1279, %v2870, %v2871
        %v2873 = vrot.slane %v2779, 5
        %v2874 = vrot.slane %v2873, 4
        %v2875 = vrot.slane %v2064, 5
        %v2876 = vsel %vm1279, %v2874, %v2875
        %v2877 = vrot.slane %v2875, 4
        %v2878 = vrot.slane %v2065, 5
        %v2879 = vsel %vm1279, %v2877, %v2878
        %v2880 = vrot.slane %v2780, 5
        %v2881 = vrot.slane %v2880, 4
        %v2882 = vrot.slane %v2067, 5
        %v2883 = vsel %vm1279, %v2881, %v2882
        %v2884 = vrot.slane %v2882, 4
        %v2885 = vrot.slane %v2068, 5
        %v2886 = vsel %vm1279, %v2884, %v2885
        %v2887 = vrot.slane %v2781, 5
        %v2888 = vrot.slane %v2887, 4
        %v2889 = vrot.slane %v2070, 5
        %v2890 = vsel %vm1279, %v2888, %v2889
        %v2891 = vrot.slane %v2889, 4
        %v2892 = vrot.slane %v2071, 5
        %v2893 = vsel %vm1279, %v2891, %v2892
        %v2894 = vrot.slane %v2782, 5
        %v2895 = vrot.slane %v2894, 4
        %v2896 = vrot.slane %v2073, 5
        %v2897 = vsel %vm1279, %v2895, %v2896
        %v2898 = vrot.slane %v2896, 4
        %v2899 = vrot.slane %v2074, 5
        %v2900 = vsel %vm1279, %v2898, %v2899
        %v2901 = vrot.slane %v2783, 5
        %v2902 = vrot.slane %v2901, 4
        %v2903 = vrot.slane %v2076, 5
        %v2904 = vsel %vm1279, %v2902, %v2903
        %v2905 = vrot.slane %v2903, 4
        %v2906 = vrot.slane %v2077, 5
        %v2907 = vsel %vm1279, %v2905, %v2906
        %v2908 = vrot.slane %v2784, 5
        %v2909 = vrot.slane %v2908, 4
        %v2910 = vrot.slane %v2079, 5
        %v2911 = vsel %vm1279, %v2909, %v2910
        %v2912 = vrot.slane %v2910, 4
        %v2913 = vrot.slane %v2080, 5
        %v2914 = vsel %vm1279, %v2912, %v2913
        %v2915 = vrot.slane %v2785, 5
        %v2916 = vrot.slane %v2915, 4
        %v2917 = vrot.slane %v2082, 5
        %v2918 = vsel %vm1279, %v2916, %v2917
        %v2919 = vrot.slane %v2917, 4
        %v2920 = vrot.slane %v2083, 5
        %v2921 = vsel %vm1279, %v2919, %v2920
        %v2922 = vrot.slane %v2786, 5
        %v2923 = vrot.slane %v2922, 4
        %v2924 = vrot.slane %v2085, 5
        %v2925 = vsel %vm1279, %v2923, %v2924
        %v2926 = vrot.slane %v2924, 4
        %v2927 = vrot.slane %v2086, 5
        %v2928 = vsel %vm1279, %v2926, %v2927
        %v2929 = vrot.slane %v2787, 5
        %v2930 = vrot.slane %v2929, 4
        %v2931 = vrot.slane %v2088, 5
        %v2932 = vsel %vm1279, %v2930, %v2931
        %v2933 = vrot.slane %v2931, 4
        %v2934 = vrot.slane %v2089, 5
        %v2935 = vsel %vm1279, %v2933, %v2934
        %v2936 = vrot.slane %v2788, 5
        %v2937 = vrot.slane %v2936, 4
        %v2938 = vrot.slane %v2091, 5
        %v2939 = vsel %vm1279, %v2937, %v2938
        %v2940 = vrot.slane %v2938, 4
        %v2941 = vrot.slane %v2092, 5
        %v2942 = vsel %vm1279, %v2940, %v2941
        %v2943 = vrot.slane %v2789, 5
        %v2944 = vrot.slane %v2943, 4
        %v2945 = vrot.slane %v2094, 5
        %v2946 = vsel %vm1279, %v2944, %v2945
        %v2947 = vrot.slane %v2945, 4
        %v2948 = vrot.slane %v2095, 5
        %v2949 = vsel %vm1279, %v2947, %v2948
        %s2950 = scalar_lea.vmem %s1, 10
        %v2951 = vld [vmem:[%s2950] sm:$0x3]
        %v2952 = vunpack.c.l.b16 %v2841
        %v2953 = vunpack.c.l.b16 %v2844
        %v2954 = vunpack.c.l.b16 %v2848
        %v2955 = vunpack.c.l.b16 %v2851
        %v2956 = vunpack.c.l.b16 %v2855
        %v2957 = vunpack.c.l.b16 %v2858
        %v2958 = vunpack.c.l.b16 %v2862
        %v2959 = vunpack.c.l.b16 %v2865
        %v2960 = vunpack.c.l.b16 %v2869
        %v2961 = vunpack.c.l.b16 %v2872
        %v2962 = vunpack.c.l.b16 %v2876
        %v2963 = vunpack.c.l.b16 %v2879
        %v2964 = vunpack.c.l.b16 %v2883
        %v2965 = vunpack.c.l.b16 %v2886
        %v2966 = vunpack.c.l.b16 %v2890
        %v2967 = vunpack.c.l.b16 %v2893
        %v2968 = vunpack.c.l.b16 %v2897
        %v2969 = vunpack.c.l.b16 %v2900
        %v2970 = vunpack.c.l.b16 %v2904
        %v2971 = vunpack.c.l.b16 %v2907
        %v2972 = vunpack.c.l.b16 %v2911
        %v2973 = vunpack.c.l.b16 %v2914
        %v2974 = vunpack.c.l.b16 %v2918
        %v2975 = vunpack.c.l.b16 %v2921
        %v2976 = vunpack.c.l.b16 %v2925
        %v2977 = vunpack.c.l.b16 %v2928
        %v2978 = vunpack.c.l.b16 %v2932
        %v2979 = vunpack.c.l.b16 %v2935
        %v2980 = vunpack.c.l.b16 %v2939
        %v2981 = vunpack.c.l.b16 %v2942
        %v2982 = vunpack.c.l.b16 %v2946
        %v2983 = vunpack.c.l.b16 %v2949
        %v2984 = vpack.c.b16 %v2953, %v2952
        %v2985 = vpack.c.b16 %v2955, %v2954
        %v2986 = vpack.c.b16 %v2957, %v2956
        %v2987 = vpack.c.b16 %v2959, %v2958
        %v2988 = vpack.c.b16 %v2961, %v2960
        %v2989 = vpack.c.b16 %v2963, %v2962
        %v2990 = vpack.c.b16 %v2965, %v2964
        %v2991 = vpack.c.b16 %v2967, %v2966
        %v2992 = vpack.c.b16 %v2969, %v2968
        %v2993 = vpack.c.b16 %v2971, %v2970
        %v2994 = vpack.c.b16 %v2973, %v2972
        %v2995 = vpack.c.b16 %v2975, %v2974
        %v2996 = vpack.c.b16 %v2977, %v2976
        %v2997 = vpack.c.b16 %v2979, %v2978
        %v2998 = vpack.c.b16 %v2981, %v2980
        %v2999 = vpack.c.b16 %v2983, %v2982
        %v3001 = vsel %vm723, %v2984, 0
        %v3004 = vsel %vm723, %v2985, 0
        %v3007 = vsel %vm723, %v2986, 0
        %v3010 = vsel %vm723, %v2987, 0
        %v3013 = vsel %vm723, %v2988, 0
        %v3016 = vsel %vm723, %v2989, 0
        %v3019 = vsel %vm723, %v2990, 0
        %v3022 = vsel %vm723, %v2991, 0
        %v3025 = vsel %vm723, %v2992, 0
        %v3028 = vsel %vm723, %v2993, 0
        %v3031 = vsel %vm723, %v2994, 0
        %v3034 = vsel %vm723, %v2995, 0
        %v3037 = vsel %vm723, %v2996, 0
        %v3040 = vsel %vm723, %v2997, 0
        %v3043 = vsel %vm723, %v2998, 0
        %v3046 = vsel %vm723, %v2999, 0
        %v3049 = vsel %vm772, %v2951, 0
        %3051 = vmatprep.subr.bf16.mxu0 0
        %3052 = vmatpush1.bf16.msra.mxu0 0
        %3053 = vmatprep.subr.bf16.mxu0 0
        %3054 = vmatpush1.bf16.msra.mxu0 0
        %3055 = vmatprep.subr.bf16.mxu0 0
        %3056 = vmatpush1.bf16.msra.mxu0 0
        %3057 = vmatprep.subr.bf16.mxu0 0
        %3058 = vmatpush1.bf16.msra.mxu0 0
        %3059 = vmatprep.subr.bf16.mxu0 0
        %3060 = vmatpush1.bf16.msra.mxu0 0
        %3061 = vmatprep.subr.bf16.mxu0 0
        %3062 = vmatpush1.bf16.msra.mxu0 0
        %3063 = vmatprep.subr.bf16.mxu0 0
        %3064 = vmatpush1.bf16.msra.mxu0 0
        %3065 = vmatprep.subr.bf16.mxu0 0
        %3066 = vmatpush1.bf16.msra.mxu0 %v3049
        %3067 = vmatprep.subr.bf16.mxu0 0
        %3068 = vmatpush2.bf16.msra.mxu0 0
        %3069 = vmatprep.subr.bf16.mxu0 0
        %3070 = vmatpush2.bf16.msra.mxu0 0
        %3071 = vmatprep.subr.bf16.mxu0 0
        %3072 = vmatpush2.bf16.msra.mxu0 0
        %3073 = vmatprep.subr.bf16.mxu0 0
        %3074 = vmatpush2.bf16.msra.mxu0 0
        %3075 = vmatprep.subr.bf16.mxu0 0
        %3076 = vmatpush2.bf16.msra.mxu0 0
        %3077 = vmatprep.subr.bf16.mxu0 0
        %3078 = vmatpush2.bf16.msra.mxu0 0
        %3079 = vmatprep.subr.bf16.mxu0 0
        %3080 = vmatpush2.bf16.msra.mxu0 0
        %3081 = vmatprep.subr.bf16.mxu0 0
        %3082 = vmatpush2.bf16.msra.mxu0 0
        %3083 = vmatprep.mubr.bf16.mxu0 0
        %3084 = vmatmul.mubr.bf16.gmra.mxu0 %v3001
        %v3085 = vpop.f32.mrf.mxu0
        %v3086 = vadd.f32 0.0, %v3085
        %v3087 = vpop.f32.mrf.mxu0
        %v3088 = vpop.f32.mrf.mxu0
        %v3089 = vadd.f32 0.0, %v3088
        %v3090 = vpop.f32.mrf.mxu0
        %3091 = vmatprep.mubr.bf16.mxu0 0
        %3092 = vmatmul.mubr.bf16.gmra.mxu0 %v3004
        %v3093 = vpop.f32.mrf.mxu0
        %v3094 = vadd.f32 0.0, %v3093
        %v3095 = vpop.f32.mrf.mxu0
        %v3096 = vpop.f32.mrf.mxu0
        %v3097 = vadd.f32 0.0, %v3096
        %v3098 = vpop.f32.mrf.mxu0
        %3099 = vmatprep.mubr.bf16.mxu0 0
        %3100 = vmatmul.mubr.bf16.gmra.mxu0 %v3007
        %v3101 = vpop.f32.mrf.mxu0
        %v3102 = vadd.f32 0.0, %v3101
        %v3103 = vpop.f32.mrf.mxu0
        %v3104 = vpop.f32.mrf.mxu0
        %v3105 = vadd.f32 0.0, %v3104
        %v3106 = vpop.f32.mrf.mxu0
        %3107 = vmatprep.mubr.bf16.mxu0 0
        %3108 = vmatmul.mubr.bf16.gmra.mxu0 %v3010
        %v3109 = vpop.f32.mrf.mxu0
        %v3110 = vadd.f32 0.0, %v3109
        %v3111 = vpop.f32.mrf.mxu0
        %v3112 = vpop.f32.mrf.mxu0
        %v3113 = vadd.f32 0.0, %v3112
        %v3114 = vpop.f32.mrf.mxu0
        %3115 = vmatprep.mubr.bf16.mxu0 0
        %3116 = vmatmul.mubr.bf16.gmra.mxu0 %v3013
        %v3117 = vpop.f32.mrf.mxu0
        %v3118 = vadd.f32 0.0, %v3117
        %v3119 = vpop.f32.mrf.mxu0
        %v3120 = vpop.f32.mrf.mxu0
        %v3121 = vadd.f32 0.0, %v3120
        %v3122 = vpop.f32.mrf.mxu0
        %3123 = vmatprep.mubr.bf16.mxu0 0
        %3124 = vmatmul.mubr.bf16.gmra.mxu0 %v3016
        %v3125 = vpop.f32.mrf.mxu0
        %v3126 = vadd.f32 0.0, %v3125
        %v3127 = vpop.f32.mrf.mxu0
        %v3128 = vpop.f32.mrf.mxu0
        %v3129 = vadd.f32 0.0, %v3128
        %v3130 = vpop.f32.mrf.mxu0
        %3131 = vmatprep.mubr.bf16.mxu0 0
        %3132 = vmatmul.mubr.bf16.gmra.mxu0 %v3019
        %v3133 = vpop.f32.mrf.mxu0
        %v3134 = vadd.f32 0.0, %v3133
        %v3135 = vpop.f32.mrf.mxu0
        %v3136 = vpop.f32.mrf.mxu0
        %v3137 = vadd.f32 0.0, %v3136
        %v3138 = vpop.f32.mrf.mxu0
        %3139 = vmatprep.mubr.bf16.mxu0 0
        %3140 = vmatmul.mubr.bf16.gmra.mxu0 %v3022
        %v3141 = vpop.f32.mrf.mxu0
        %v3142 = vadd.f32 0.0, %v3141
        %v3143 = vpop.f32.mrf.mxu0
        %v3144 = vpop.f32.mrf.mxu0
        %v3145 = vadd.f32 0.0, %v3144
        %v3146 = vpop.f32.mrf.mxu0
        %3147 = vmatprep.mubr.bf16.mxu0 0
        %3148 = vmatmul.mubr.bf16.gmra.mxu0 %v3025
        %v3149 = vpop.f32.mrf.mxu0
        %v3150 = vadd.f32 0.0, %v3149
        %v3151 = vpop.f32.mrf.mxu0
        %v3152 = vpop.f32.mrf.mxu0
        %v3153 = vadd.f32 0.0, %v3152
        %v3154 = vpop.f32.mrf.mxu0
        %3155 = vmatprep.mubr.bf16.mxu0 0
        %3156 = vmatmul.mubr.bf16.gmra.mxu0 %v3028
        %v3157 = vpop.f32.mrf.mxu0
        %v3158 = vadd.f32 0.0, %v3157
        %v3159 = vpop.f32.mrf.mxu0
        %v3160 = vpop.f32.mrf.mxu0
        %v3161 = vadd.f32 0.0, %v3160
        %v3162 = vpop.f32.mrf.mxu0
        %3163 = vmatprep.mubr.bf16.mxu0 0
        %3164 = vmatmul.mubr.bf16.gmra.mxu0 %v3031
        %v3165 = vpop.f32.mrf.mxu0
        %v3166 = vadd.f32 0.0, %v3165
        %v3167 = vpop.f32.mrf.mxu0
        %v3168 = vpop.f32.mrf.mxu0
        %v3169 = vadd.f32 0.0, %v3168
        %v3170 = vpop.f32.mrf.mxu0
        %3171 = vmatprep.mubr.bf16.mxu0 0
        %3172 = vmatmul.mubr.bf16.gmra.mxu0 %v3034
        %v3173 = vpop.f32.mrf.mxu0
        %v3174 = vadd.f32 0.0, %v3173
        %v3175 = vpop.f32.mrf.mxu0
        %v3176 = vpop.f32.mrf.mxu0
        %v3177 = vadd.f32 0.0, %v3176
        %v3178 = vpop.f32.mrf.mxu0
        %3179 = vmatprep.mubr.bf16.mxu0 0
        %3180 = vmatmul.mubr.bf16.gmra.mxu0 %v3037
        %v3181 = vpop.f32.mrf.mxu0
        %v3182 = vadd.f32 0.0, %v3181
        %v3183 = vpop.f32.mrf.mxu0
        %v3184 = vpop.f32.mrf.mxu0
        %v3185 = vadd.f32 0.0, %v3184
        %v3186 = vpop.f32.mrf.mxu0
        %3187 = vmatprep.mubr.bf16.mxu0 0
        %3188 = vmatmul.mubr.bf16.gmra.mxu0 %v3040
        %v3189 = vpop.f32.mrf.mxu0
        %v3190 = vadd.f32 0.0, %v3189
        %v3191 = vpop.f32.mrf.mxu0
        %v3192 = vpop.f32.mrf.mxu0
        %v3193 = vadd.f32 0.0, %v3192
        %v3194 = vpop.f32.mrf.mxu0
        %3195 = vmatprep.mubr.bf16.mxu0 0
        %3196 = vmatmul.mubr.bf16.gmra.mxu0 %v3043
        %v3197 = vpop.f32.mrf.mxu0
        %v3198 = vadd.f32 0.0, %v3197
        %v3199 = vpop.f32.mrf.mxu0
        %v3200 = vpop.f32.mrf.mxu0
        %v3201 = vadd.f32 0.0, %v3200
        %v3202 = vpop.f32.mrf.mxu0
        %3203 = vmatprep.mubr.bf16.mxu0 0
        %3204 = vmatmul.mubr.bf16.gmra.mxu0 %v3046
        %v3205 = vpop.f32.mrf.mxu0
        %v3206 = vadd.f32 0.0, %v3205
        %v3207 = vpop.f32.mrf.mxu0
        %v3208 = vpop.f32.mrf.mxu0
        %v3209 = vadd.f32 0.0, %v3208
        %v3210 = vpop.f32.mrf.mxu0
        %3211 = vdwg.mxu0
        %v3212 = vadd.f32 %v2742, %v3086
        %v3213 = vadd.f32 %v2743, %v3089
        %v3214 = vadd.f32 %v2744, %v3094
        %v3215 = vadd.f32 %v2745, %v3097
        %v3216 = vadd.f32 %v2746, %v3102
        %v3217 = vadd.f32 %v2747, %v3105
        %v3218 = vadd.f32 %v2748, %v3110
        %v3219 = vadd.f32 %v2749, %v3113
        %v3220 = vadd.f32 %v2750, %v3118
        %v3221 = vadd.f32 %v2751, %v3121
        %v3222 = vadd.f32 %v2752, %v3126
        %v3223 = vadd.f32 %v2753, %v3129
        %v3224 = vadd.f32 %v2754, %v3134
        %v3225 = vadd.f32 %v2755, %v3137
        %v3226 = vadd.f32 %v2756, %v3142
        %v3227 = vadd.f32 %v2757, %v3145
        %v3228 = vadd.f32 %v2758, %v3150
        %v3229 = vadd.f32 %v2759, %v3153
        %v3230 = vadd.f32 %v2760, %v3158
        %v3231 = vadd.f32 %v2761, %v3161
        %v3232 = vadd.f32 %v2762, %v3166
        %v3233 = vadd.f32 %v2763, %v3169
        %v3234 = vadd.f32 %v2764, %v3174
        %v3235 = vadd.f32 %v2765, %v3177
        %v3236 = vadd.f32 %v2766, %v3182
        %v3237 = vadd.f32 %v2767, %v3185
        %v3238 = vadd.f32 %v2768, %v3190
        %v3239 = vadd.f32 %v2769, %v3193
        %v3240 = vadd.f32 %v2770, %v3198
        %v3241 = vadd.f32 %v2771, %v3201
        %v3242 = vadd.f32 %v2772, %v3206
        %v3243 = vadd.f32 %v2773, %v3209
        %s3244 = sadd.s32 %s233, 2
        %s3245 = smul.u32 %s3244, 3
        %s3246 = smul.addr %s3245, 4
        %s3247 = scalar_lea.vmem %s230, %s3246
        %v3248 = vld [vmem:[%s3247] sm:$0xf]
        %v3249 = vld [vmem:[%s3247 + $0x4] sm:$0xf]
        %v3250 = vld [vmem:[%s3247 + $0xc] sm:$0xf]
        %v3251 = vld [vmem:[%s3247 + $0x10] sm:$0xf]
        %v3252 = vld [vmem:[%s3247 + $0x18] sm:$0xf]
        %v3253 = vld [vmem:[%s3247 + $0x1c] sm:$0xf]
        %v3254 = vld [vmem:[%s3247 + $0x24] sm:$0xf]
        %v3255 = vld [vmem:[%s3247 + $0x28] sm:$0xf]
        %v3256 = vld [vmem:[%s3247 + $0x30] sm:$0xf]
        %v3257 = vld [vmem:[%s3247 + $0x34] sm:$0xf]
        %v3258 = vld [vmem:[%s3247 + $0x3c] sm:$0xf]
        %v3259 = vld [vmem:[%s3247 + $0x40] sm:$0xf]
        %v3260 = vld [vmem:[%s3247 + $0x48] sm:$0xf]
        %v3261 = vld [vmem:[%s3247 + $0x4c] sm:$0xf]
        %v3262 = vld [vmem:[%s3247 + $0x54] sm:$0xf]
        %v3263 = vld [vmem:[%s3247 + $0x58] sm:$0xf]
        %v3264 = vld [vmem:[%s3247 + $0x60] sm:$0xf]
        %v3265 = vld [vmem:[%s3247 + $0x64] sm:$0xf]
        %v3266 = vld [vmem:[%s3247 + $0x6c] sm:$0xf]
        %v3267 = vld [vmem:[%s3247 + $0x70] sm:$0xf]
        %v3268 = vld [vmem:[%s3247 + $0x78] sm:$0xf]
        %v3269 = vld [vmem:[%s3247 + $0x7c] sm:$0xf]
        %v3270 = vld [vmem:[%s3247 + $0x84] sm:$0xf]
        %v3271 = vld [vmem:[%s3247 + $0x88] sm:$0xf]
        %v3272 = vld [vmem:[%s3247 + $0x90] sm:$0xf]
        %v3273 = vld [vmem:[%s3247 + $0x94] sm:$0xf]
        %v3274 = vld [vmem:[%s3247 + $0x9c] sm:$0xf]
        %v3275 = vld [vmem:[%s3247 + $0xa0] sm:$0xf]
        %v3276 = vld [vmem:[%s3247 + $0xa8] sm:$0xf]
        %v3277 = vld [vmem:[%s3247 + $0xac] sm:$0xf]
        %v3278 = vld [vmem:[%s3247 + $0xb4] sm:$0xf]
        %v3279 = vld [vmem:[%s3247 + $0xb8] sm:$0xf]
        %s3280 = scalar_lea.vmem %s1, 12
        %v3281 = vld [vmem:[%s3280] sm:$0x3]
        %v3314 = vunpack.c.l.b16 %v3248
        %v3315 = vunpack.c.l.b16 %v3249
        %v3316 = vunpack.c.l.b16 %v3250
        %v3317 = vunpack.c.l.b16 %v3251
        %v3318 = vunpack.c.l.b16 %v3252
        %v3319 = vunpack.c.l.b16 %v3253
        %v3320 = vunpack.c.l.b16 %v3254
        %v3321 = vunpack.c.l.b16 %v3255
        %v3322 = vunpack.c.l.b16 %v3256
        %v3323 = vunpack.c.l.b16 %v3257
        %v3324 = vunpack.c.l.b16 %v3258
        %v3325 = vunpack.c.l.b16 %v3259
        %v3326 = vunpack.c.l.b16 %v3260
        %v3327 = vunpack.c.l.b16 %v3261
        %v3328 = vunpack.c.l.b16 %v3262
        %v3329 = vunpack.c.l.b16 %v3263
        %v3330 = vunpack.c.l.b16 %v3264
        %v3331 = vunpack.c.l.b16 %v3265
        %v3332 = vunpack.c.l.b16 %v3266
        %v3333 = vunpack.c.l.b16 %v3267
        %v3334 = vunpack.c.l.b16 %v3268
        %v3335 = vunpack.c.l.b16 %v3269
        %v3336 = vunpack.c.l.b16 %v3270
        %v3337 = vunpack.c.l.b16 %v3271
        %v3338 = vunpack.c.l.b16 %v3272
        %v3339 = vunpack.c.l.b16 %v3273
        %v3340 = vunpack.c.l.b16 %v3274
        %v3341 = vunpack.c.l.b16 %v3275
        %v3342 = vunpack.c.l.b16 %v3276
        %v3343 = vunpack.c.l.b16 %v3277
        %v3344 = vunpack.c.l.b16 %v3278
        %v3345 = vunpack.c.l.b16 %v3279
        %v3346 = vpack.c.b16 %v3315, %v3314
        %v3347 = vpack.c.b16 %v3317, %v3316
        %v3348 = vpack.c.b16 %v3319, %v3318
        %v3349 = vpack.c.b16 %v3321, %v3320
        %v3350 = vpack.c.b16 %v3323, %v3322
        %v3351 = vpack.c.b16 %v3325, %v3324
        %v3352 = vpack.c.b16 %v3327, %v3326
        %v3353 = vpack.c.b16 %v3329, %v3328
        %v3354 = vpack.c.b16 %v3331, %v3330
        %v3355 = vpack.c.b16 %v3333, %v3332
        %v3356 = vpack.c.b16 %v3335, %v3334
        %v3357 = vpack.c.b16 %v3337, %v3336
        %v3358 = vpack.c.b16 %v3339, %v3338
        %v3359 = vpack.c.b16 %v3341, %v3340
        %v3360 = vpack.c.b16 %v3343, %v3342
        %v3361 = vpack.c.b16 %v3345, %v3344
        %v3363 = vsel %vm723, %v3346, 0
        %v3366 = vsel %vm723, %v3347, 0
        %v3369 = vsel %vm723, %v3348, 0
        %v3372 = vsel %vm723, %v3349, 0
        %v3375 = vsel %vm723, %v3350, 0
        %v3378 = vsel %vm723, %v3351, 0
        %v3381 = vsel %vm723, %v3352, 0
        %v3384 = vsel %vm723, %v3353, 0
        %v3387 = vsel %vm723, %v3354, 0
        %v3390 = vsel %vm723, %v3355, 0
        %v3393 = vsel %vm723, %v3356, 0
        %v3396 = vsel %vm723, %v3357, 0
        %v3399 = vsel %vm723, %v3358, 0
        %v3402 = vsel %vm723, %v3359, 0
        %v3405 = vsel %vm723, %v3360, 0
        %v3408 = vsel %vm723, %v3361, 0
        %v3411 = vsel %vm772, %v3281, 0
        %3413 = vmatprep.subr.bf16.mxu0 0
        %3414 = vmatpush1.bf16.msra.mxu0 0
        %3415 = vmatprep.subr.bf16.mxu0 0
        %3416 = vmatpush1.bf16.msra.mxu0 0
        %3417 = vmatprep.subr.bf16.mxu0 0
        %3418 = vmatpush1.bf16.msra.mxu0 0
        %3419 = vmatprep.subr.bf16.mxu0 0
        %3420 = vmatpush1.bf16.msra.mxu0 0
        %3421 = vmatprep.subr.bf16.mxu0 0
        %3422 = vmatpush1.bf16.msra.mxu0 0
        %3423 = vmatprep.subr.bf16.mxu0 0
        %3424 = vmatpush1.bf16.msra.mxu0 0
        %3425 = vmatprep.subr.bf16.mxu0 0
        %3426 = vmatpush1.bf16.msra.mxu0 0
        %3427 = vmatprep.subr.bf16.mxu0 0
        %3428 = vmatpush1.bf16.msra.mxu0 %v3411
        %3429 = vmatprep.subr.bf16.mxu0 0
        %3430 = vmatpush2.bf16.msra.mxu0 0
        %3431 = vmatprep.subr.bf16.mxu0 0
        %3432 = vmatpush2.bf16.msra.mxu0 0
        %3433 = vmatprep.subr.bf16.mxu0 0
        %3434 = vmatpush2.bf16.msra.mxu0 0
        %3435 = vmatprep.subr.bf16.mxu0 0
        %3436 = vmatpush2.bf16.msra.mxu0 0
        %3437 = vmatprep.subr.bf16.mxu0 0
        %3438 = vmatpush2.bf16.msra.mxu0 0
        %3439 = vmatprep.subr.bf16.mxu0 0
        %3440 = vmatpush2.bf16.msra.mxu0 0
        %3441 = vmatprep.subr.bf16.mxu0 0
        %3442 = vmatpush2.bf16.msra.mxu0 0
        %3443 = vmatprep.subr.bf16.mxu0 0
        %3444 = vmatpush2.bf16.msra.mxu0 0
        %3445 = vmatprep.mubr.bf16.mxu0 0
        %3446 = vmatmul.mubr.bf16.gmra.mxu0 %v3363
        %v3447 = vpop.f32.mrf.mxu0
        %v3448 = vadd.f32 0.0, %v3447
        %v3449 = vpop.f32.mrf.mxu0
        %v3450 = vpop.f32.mrf.mxu0
        %v3451 = vadd.f32 0.0, %v3450
        %v3452 = vpop.f32.mrf.mxu0
        %3453 = vmatprep.mubr.bf16.mxu0 0
        %3454 = vmatmul.mubr.bf16.gmra.mxu0 %v3366
        %v3455 = vpop.f32.mrf.mxu0
        %v3456 = vadd.f32 0.0, %v3455
        %v3457 = vpop.f32.mrf.mxu0
        %v3458 = vpop.f32.mrf.mxu0
        %v3459 = vadd.f32 0.0, %v3458
        %v3460 = vpop.f32.mrf.mxu0
        %3461 = vmatprep.mubr.bf16.mxu0 0
        %3462 = vmatmul.mubr.bf16.gmra.mxu0 %v3369
        %v3463 = vpop.f32.mrf.mxu0
        %v3464 = vadd.f32 0.0, %v3463
        %v3465 = vpop.f32.mrf.mxu0
        %v3466 = vpop.f32.mrf.mxu0
        %v3467 = vadd.f32 0.0, %v3466
        %v3468 = vpop.f32.mrf.mxu0
        %3469 = vmatprep.mubr.bf16.mxu0 0
        %3470 = vmatmul.mubr.bf16.gmra.mxu0 %v3372
        %v3471 = vpop.f32.mrf.mxu0
        %v3472 = vadd.f32 0.0, %v3471
        %v3473 = vpop.f32.mrf.mxu0
        %v3474 = vpop.f32.mrf.mxu0
        %v3475 = vadd.f32 0.0, %v3474
        %v3476 = vpop.f32.mrf.mxu0
        %3477 = vmatprep.mubr.bf16.mxu0 0
        %3478 = vmatmul.mubr.bf16.gmra.mxu0 %v3375
        %v3479 = vpop.f32.mrf.mxu0
        %v3480 = vadd.f32 0.0, %v3479
        %v3481 = vpop.f32.mrf.mxu0
        %v3482 = vpop.f32.mrf.mxu0
        %v3483 = vadd.f32 0.0, %v3482
        %v3484 = vpop.f32.mrf.mxu0
        %3485 = vmatprep.mubr.bf16.mxu0 0
        %3486 = vmatmul.mubr.bf16.gmra.mxu0 %v3378
        %v3487 = vpop.f32.mrf.mxu0
        %v3488 = vadd.f32 0.0, %v3487
        %v3489 = vpop.f32.mrf.mxu0
        %v3490 = vpop.f32.mrf.mxu0
        %v3491 = vadd.f32 0.0, %v3490
        %v3492 = vpop.f32.mrf.mxu0
        %3493 = vmatprep.mubr.bf16.mxu0 0
        %3494 = vmatmul.mubr.bf16.gmra.mxu0 %v3381
        %v3495 = vpop.f32.mrf.mxu0
        %v3496 = vadd.f32 0.0, %v3495
        %v3497 = vpop.f32.mrf.mxu0
        %v3498 = vpop.f32.mrf.mxu0
        %v3499 = vadd.f32 0.0, %v3498
        %v3500 = vpop.f32.mrf.mxu0
        %3501 = vmatprep.mubr.bf16.mxu0 0
        %3502 = vmatmul.mubr.bf16.gmra.mxu0 %v3384
        %v3503 = vpop.f32.mrf.mxu0
        %v3504 = vadd.f32 0.0, %v3503
        %v3505 = vpop.f32.mrf.mxu0
        %v3506 = vpop.f32.mrf.mxu0
        %v3507 = vadd.f32 0.0, %v3506
        %v3508 = vpop.f32.mrf.mxu0
        %3509 = vmatprep.mubr.bf16.mxu0 0
        %3510 = vmatmul.mubr.bf16.gmra.mxu0 %v3387
        %v3511 = vpop.f32.mrf.mxu0
        %v3512 = vadd.f32 0.0, %v3511
        %v3513 = vpop.f32.mrf.mxu0
        %v3514 = vpop.f32.mrf.mxu0
        %v3515 = vadd.f32 0.0, %v3514
        %v3516 = vpop.f32.mrf.mxu0
        %3517 = vmatprep.mubr.bf16.mxu0 0
        %3518 = vmatmul.mubr.bf16.gmra.mxu0 %v3390
        %v3519 = vpop.f32.mrf.mxu0
        %v3520 = vadd.f32 0.0, %v3519
        %v3521 = vpop.f32.mrf.mxu0
        %v3522 = vpop.f32.mrf.mxu0
        %v3523 = vadd.f32 0.0, %v3522
        %v3524 = vpop.f32.mrf.mxu0
        %3525 = vmatprep.mubr.bf16.mxu0 0
        %3526 = vmatmul.mubr.bf16.gmra.mxu0 %v3393
        %v3527 = vpop.f32.mrf.mxu0
        %v3528 = vadd.f32 0.0, %v3527
        %v3529 = vpop.f32.mrf.mxu0
        %v3530 = vpop.f32.mrf.mxu0
        %v3531 = vadd.f32 0.0, %v3530
        %v3532 = vpop.f32.mrf.mxu0
        %3533 = vmatprep.mubr.bf16.mxu0 0
        %3534 = vmatmul.mubr.bf16.gmra.mxu0 %v3396
        %v3535 = vpop.f32.mrf.mxu0
        %v3536 = vadd.f32 0.0, %v3535
        %v3537 = vpop.f32.mrf.mxu0
        %v3538 = vpop.f32.mrf.mxu0
        %v3539 = vadd.f32 0.0, %v3538
        %v3540 = vpop.f32.mrf.mxu0
        %3541 = vmatprep.mubr.bf16.mxu0 0
        %3542 = vmatmul.mubr.bf16.gmra.mxu0 %v3399
        %v3543 = vpop.f32.mrf.mxu0
        %v3544 = vadd.f32 0.0, %v3543
        %v3545 = vpop.f32.mrf.mxu0
        %v3546 = vpop.f32.mrf.mxu0
        %v3547 = vadd.f32 0.0, %v3546
        %v3548 = vpop.f32.mrf.mxu0
        %3549 = vmatprep.mubr.bf16.mxu0 0
        %3550 = vmatmul.mubr.bf16.gmra.mxu0 %v3402
        %v3551 = vpop.f32.mrf.mxu0
        %v3552 = vadd.f32 0.0, %v3551
        %v3553 = vpop.f32.mrf.mxu0
        %v3554 = vpop.f32.mrf.mxu0
        %v3555 = vadd.f32 0.0, %v3554
        %v3556 = vpop.f32.mrf.mxu0
        %3557 = vmatprep.mubr.bf16.mxu0 0
        %3558 = vmatmul.mubr.bf16.gmra.mxu0 %v3405
        %v3559 = vpop.f32.mrf.mxu0
        %v3560 = vadd.f32 0.0, %v3559
        %v3561 = vpop.f32.mrf.mxu0
        %v3562 = vpop.f32.mrf.mxu0
        %v3563 = vadd.f32 0.0, %v3562
        %v3564 = vpop.f32.mrf.mxu0
        %3565 = vmatprep.mubr.bf16.mxu0 0
        %3566 = vmatmul.mubr.bf16.gmra.mxu0 %v3408
        %v3567 = vpop.f32.mrf.mxu0
        %v3568 = vadd.f32 0.0, %v3567
        %v3569 = vpop.f32.mrf.mxu0
        %v3570 = vpop.f32.mrf.mxu0
        %v3571 = vadd.f32 0.0, %v3570
        %v3572 = vpop.f32.mrf.mxu0
        %3573 = vdwg.mxu0
        %v3574 = vadd.f32 %v3212, %v3448
        %v3575 = vadd.f32 %v3213, %v3451
        %v3576 = vadd.f32 %v3214, %v3456
        %v3577 = vadd.f32 %v3215, %v3459
        %v3578 = vadd.f32 %v3216, %v3464
        %v3579 = vadd.f32 %v3217, %v3467
        %v3580 = vadd.f32 %v3218, %v3472
        %v3581 = vadd.f32 %v3219, %v3475
        %v3582 = vadd.f32 %v3220, %v3480
        %v3583 = vadd.f32 %v3221, %v3483
        %v3584 = vadd.f32 %v3222, %v3488
        %v3585 = vadd.f32 %v3223, %v3491
        %v3586 = vadd.f32 %v3224, %v3496
        %v3587 = vadd.f32 %v3225, %v3499
        %v3588 = vadd.f32 %v3226, %v3504
        %v3589 = vadd.f32 %v3227, %v3507
        %v3590 = vadd.f32 %v3228, %v3512
        %v3591 = vadd.f32 %v3229, %v3515
        %v3592 = vadd.f32 %v3230, %v3520
        %v3593 = vadd.f32 %v3231, %v3523
        %v3594 = vadd.f32 %v3232, %v3528
        %v3595 = vadd.f32 %v3233, %v3531
        %v3596 = vadd.f32 %v3234, %v3536
        %v3597 = vadd.f32 %v3235, %v3539
        %v3598 = vadd.f32 %v3236, %v3544
        %v3599 = vadd.f32 %v3237, %v3547
        %v3600 = vadd.f32 %v3238, %v3552
        %v3601 = vadd.f32 %v3239, %v3555
        %v3602 = vadd.f32 %v3240, %v3560
        %v3603 = vadd.f32 %v3241, %v3563
        %v3604 = vadd.f32 %v3242, %v3568
        %v3605 = vadd.f32 %v3243, %v3571
        %v3606 = vld [vmem:[%s3247] sm:$0xf]
        %v3607 = vld [vmem:[%s3247 + $0x4] sm:$0xf]
        %v3608 = vld [vmem:[%s3247 + $0x8] sm:$0x1]
        %v3609 = vld [vmem:[%s3247 + $0xc] sm:$0xf]
        %v3610 = vld [vmem:[%s3247 + $0x10] sm:$0xf]
        %v3611 = vld [vmem:[%s3247 + $0x14] sm:$0x1]
        %v3612 = vld [vmem:[%s3247 + $0x18] sm:$0xf]
        %v3613 = vld [vmem:[%s3247 + $0x1c] sm:$0xf]
        %v3614 = vld [vmem:[%s3247 + $0x20] sm:$0x1]
        %v3615 = vld [vmem:[%s3247 + $0x24] sm:$0xf]
        %v3616 = vld [vmem:[%s3247 + $0x28] sm:$0xf]
        %v3617 = vld [vmem:[%s3247 + $0x2c] sm:$0x1]
        %v3618 = vld [vmem:[%s3247 + $0x30] sm:$0xf]
        %v3619 = vld [vmem:[%s3247 + $0x34] sm:$0xf]
        %v3620 = vld [vmem:[%s3247 + $0x38] sm:$0x1]
        %v3621 = vld [vmem:[%s3247 + $0x3c] sm:$0xf]
        %v3622 = vld [vmem:[%s3247 + $0x40] sm:$0xf]
        %v3623 = vld [vmem:[%s3247 + $0x44] sm:$0x1]
        %v3624 = vld [vmem:[%s3247 + $0x48] sm:$0xf]
        %v3625 = vld [vmem:[%s3247 + $0x4c] sm:$0xf]
        %v3626 = vld [vmem:[%s3247 + $0x50] sm:$0x1]
        %v3627 = vld [vmem:[%s3247 + $0x54] sm:$0xf]
        %v3628 = vld [vmem:[%s3247 + $0x58] sm:$0xf]
        %v3629 = vld [vmem:[%s3247 + $0x5c] sm:$0x1]
        %v3630 = vld [vmem:[%s3247 + $0x60] sm:$0xf]
        %v3631 = vld [vmem:[%s3247 + $0x64] sm:$0xf]
        %v3632 = vld [vmem:[%s3247 + $0x68] sm:$0x1]
        %v3633 = vld [vmem:[%s3247 + $0x6c] sm:$0xf]
        %v3634 = vld [vmem:[%s3247 + $0x70] sm:$0xf]
        %v3635 = vld [vmem:[%s3247 + $0x74] sm:$0x1]
        %v3636 = vld [vmem:[%s3247 + $0x78] sm:$0xf]
        %v3637 = vld [vmem:[%s3247 + $0x7c] sm:$0xf]
        %v3638 = vld [vmem:[%s3247 + $0x80] sm:$0x1]
        %v3639 = vld [vmem:[%s3247 + $0x84] sm:$0xf]
        %v3640 = vld [vmem:[%s3247 + $0x88] sm:$0xf]
        %v3641 = vld [vmem:[%s3247 + $0x8c] sm:$0x1]
        %v3642 = vld [vmem:[%s3247 + $0x90] sm:$0xf]
        %v3643 = vld [vmem:[%s3247 + $0x94] sm:$0xf]
        %v3644 = vld [vmem:[%s3247 + $0x98] sm:$0x1]
        %v3645 = vld [vmem:[%s3247 + $0x9c] sm:$0xf]
        %v3646 = vld [vmem:[%s3247 + $0xa0] sm:$0xf]
        %v3647 = vld [vmem:[%s3247 + $0xa4] sm:$0x1]
        %v3648 = vld [vmem:[%s3247 + $0xa8] sm:$0xf]
        %v3649 = vld [vmem:[%s3247 + $0xac] sm:$0xf]
        %v3650 = vld [vmem:[%s3247 + $0xb0] sm:$0x1]
        %v3651 = vld [vmem:[%s3247 + $0xb4] sm:$0xf]
        %v3652 = vld [vmem:[%s3247 + $0xb8] sm:$0xf]
        %v3653 = vld [vmem:[%s3247 + $0xbc] sm:$0x1]
        %v3655 = vshrl.u32 %v3606, 16
        %v3657 = vrot.slane %v3655, 4
        %v3658 = vshll.u32 %v3606, 16
        %v3660 = vrot.slane %v3658, 5
        %v3661 = vor.u32 %v3657, %v3660
        %v3662 = vrot.slane %v3661, 4
        %v3664 = vshll.u32 %v3607, 16
        %v3666 = vrot.slane %v3664, 5
        %v3667 = vsel %vm288, %v3662, %v3666
        %v3668 = vshrl.u32 %v3607, 16
        %v3670 = vrot.slane %v3668, 4
        %v3671 = vor.u32 %v3670, %v3666
        %v3672 = vrot.slane %v3671, 4
        %v3674 = vshll.u32 %v3608, 16
        %v3676 = vrot.slane %v3674, 5
        %v3677 = vsel %vm288, %v3672, %v3676
        %v3679 = vshrl.u32 %v3609, 16
        %v3681 = vrot.slane %v3679, 4
        %v3682 = vshll.u32 %v3609, 16
        %v3684 = vrot.slane %v3682, 5
        %v3685 = vor.u32 %v3681, %v3684
        %v3686 = vrot.slane %v3685, 4
        %v3688 = vshll.u32 %v3610, 16
        %v3690 = vrot.slane %v3688, 5
        %v3691 = vsel %vm288, %v3686, %v3690
        %v3692 = vshrl.u32 %v3610, 16
        %v3694 = vrot.slane %v3692, 4
        %v3695 = vor.u32 %v3694, %v3690
        %v3696 = vrot.slane %v3695, 4
        %v3698 = vshll.u32 %v3611, 16
        %v3700 = vrot.slane %v3698, 5
        %v3701 = vsel %vm288, %v3696, %v3700
        %v3703 = vshrl.u32 %v3612, 16
        %v3705 = vrot.slane %v3703, 4
        %v3706 = vshll.u32 %v3612, 16
        %v3708 = vrot.slane %v3706, 5
        %v3709 = vor.u32 %v3705, %v3708
        %v3710 = vrot.slane %v3709, 4
        %v3712 = vshll.u32 %v3613, 16
        %v3714 = vrot.slane %v3712, 5
        %v3715 = vsel %vm288, %v3710, %v3714
        %v3716 = vshrl.u32 %v3613, 16
        %v3718 = vrot.slane %v3716, 4
        %v3719 = vor.u32 %v3718, %v3714
        %v3720 = vrot.slane %v3719, 4
        %v3722 = vshll.u32 %v3614, 16
        %v3724 = vrot.slane %v3722, 5
        %v3725 = vsel %vm288, %v3720, %v3724
        %v3727 = vshrl.u32 %v3615, 16
        %v3729 = vrot.slane %v3727, 4
        %v3730 = vshll.u32 %v3615, 16
        %v3732 = vrot.slane %v3730, 5
        %v3733 = vor.u32 %v3729, %v3732
        %v3734 = vrot.slane %v3733, 4
        %v3736 = vshll.u32 %v3616, 16
        %v3738 = vrot.slane %v3736, 5
        %v3739 = vsel %vm288, %v3734, %v3738
        %v3740 = vshrl.u32 %v3616, 16
        %v3742 = vrot.slane %v3740, 4
        %v3743 = vor.u32 %v3742, %v3738
        %v3744 = vrot.slane %v3743, 4
        %v3746 = vshll.u32 %v3617, 16
        %v3748 = vrot.slane %v3746, 5
        %v3749 = vsel %vm288, %v3744, %v3748
        %v3751 = vshrl.u32 %v3618, 16
        %v3753 = vrot.slane %v3751, 4
        %v3754 = vshll.u32 %v3618, 16
        %v3756 = vrot.slane %v3754, 5
        %v3757 = vor.u32 %v3753, %v3756
        %v3758 = vrot.slane %v3757, 4
        %v3760 = vshll.u32 %v3619, 16
        %v3762 = vrot.slane %v3760, 5
        %v3763 = vsel %vm288, %v3758, %v3762
        %v3764 = vshrl.u32 %v3619, 16
        %v3766 = vrot.slane %v3764, 4
        %v3767 = vor.u32 %v3766, %v3762
        %v3768 = vrot.slane %v3767, 4
        %v3770 = vshll.u32 %v3620, 16
        %v3772 = vrot.slane %v3770, 5
        %v3773 = vsel %vm288, %v3768, %v3772
        %v3775 = vshrl.u32 %v3621, 16
        %v3777 = vrot.slane %v3775, 4
        %v3778 = vshll.u32 %v3621, 16
        %v3780 = vrot.slane %v3778, 5
        %v3781 = vor.u32 %v3777, %v3780
        %v3782 = vrot.slane %v3781, 4
        %v3784 = vshll.u32 %v3622, 16
        %v3786 = vrot.slane %v3784, 5
        %v3787 = vsel %vm288, %v3782, %v3786
        %v3788 = vshrl.u32 %v3622, 16
        %v3790 = vrot.slane %v3788, 4
        %v3791 = vor.u32 %v3790, %v3786
        %v3792 = vrot.slane %v3791, 4
        %v3794 = vshll.u32 %v3623, 16
        %v3796 = vrot.slane %v3794, 5
        %v3797 = vsel %vm288, %v3792, %v3796
        %v3799 = vshrl.u32 %v3624, 16
        %v3801 = vrot.slane %v3799, 4
        %v3802 = vshll.u32 %v3624, 16
        %v3804 = vrot.slane %v3802, 5
        %v3805 = vor.u32 %v3801, %v3804
        %v3806 = vrot.slane %v3805, 4
        %v3808 = vshll.u32 %v3625, 16
        %v3810 = vrot.slane %v3808, 5
        %v3811 = vsel %vm288, %v3806, %v3810
        %v3812 = vshrl.u32 %v3625, 16
        %v3814 = vrot.slane %v3812, 4
        %v3815 = vor.u32 %v3814, %v3810
        %v3816 = vrot.slane %v3815, 4
        %v3818 = vshll.u32 %v3626, 16
        %v3820 = vrot.slane %v3818, 5
        %v3821 = vsel %vm288, %v3816, %v3820
        %v3823 = vshrl.u32 %v3627, 16
        %v3825 = vrot.slane %v3823, 4
        %v3826 = vshll.u32 %v3627, 16
        %v3828 = vrot.slane %v3826, 5
        %v3829 = vor.u32 %v3825, %v3828
        %v3830 = vrot.slane %v3829, 4
        %v3832 = vshll.u32 %v3628, 16
        %v3834 = vrot.slane %v3832, 5
        %v3835 = vsel %vm288, %v3830, %v3834
        %v3836 = vshrl.u32 %v3628, 16
        %v3838 = vrot.slane %v3836, 4
        %v3839 = vor.u32 %v3838, %v3834
        %v3840 = vrot.slane %v3839, 4
        %v3842 = vshll.u32 %v3629, 16
        %v3844 = vrot.slane %v3842, 5
        %v3845 = vsel %vm288, %v3840, %v3844
        %v3847 = vshrl.u32 %v3630, 16
        %v3849 = vrot.slane %v3847, 4
        %v3850 = vshll.u32 %v3630, 16
        %v3852 = vrot.slane %v3850, 5
        %v3853 = vor.u32 %v3849, %v3852
        %v3854 = vrot.slane %v3853, 4
        %v3856 = vshll.u32 %v3631, 16
        %v3858 = vrot.slane %v3856, 5
        %v3859 = vsel %vm288, %v3854, %v3858
        %v3860 = vshrl.u32 %v3631, 16
        %v3862 = vrot.slane %v3860, 4
        %v3863 = vor.u32 %v3862, %v3858
        %v3864 = vrot.slane %v3863, 4
        %v3866 = vshll.u32 %v3632, 16
        %v3868 = vrot.slane %v3866, 5
        %v3869 = vsel %vm288, %v3864, %v3868
        %v3871 = vshrl.u32 %v3633, 16
        %v3873 = vrot.slane %v3871, 4
        %v3874 = vshll.u32 %v3633, 16
        %v3876 = vrot.slane %v3874, 5
        %v3877 = vor.u32 %v3873, %v3876
        %v3878 = vrot.slane %v3877, 4
        %v3880 = vshll.u32 %v3634, 16
        %v3882 = vrot.slane %v3880, 5
        %v3883 = vsel %vm288, %v3878, %v3882
        %v3884 = vshrl.u32 %v3634, 16
        %v3886 = vrot.slane %v3884, 4
        %v3887 = vor.u32 %v3886, %v3882
        %v3888 = vrot.slane %v3887, 4
        %v3890 = vshll.u32 %v3635, 16
        %v3892 = vrot.slane %v3890, 5
        %v3893 = vsel %vm288, %v3888, %v3892
        %v3895 = vshrl.u32 %v3636, 16
        %v3897 = vrot.slane %v3895, 4
        %v3898 = vshll.u32 %v3636, 16
        %v3900 = vrot.slane %v3898, 5
        %v3901 = vor.u32 %v3897, %v3900
        %v3902 = vrot.slane %v3901, 4
        %v3904 = vshll.u32 %v3637, 16
        %v3906 = vrot.slane %v3904, 5
        %v3907 = vsel %vm288, %v3902, %v3906
        %v3908 = vshrl.u32 %v3637, 16
        %v3910 = vrot.slane %v3908, 4
        %v3911 = vor.u32 %v3910, %v3906
        %v3912 = vrot.slane %v3911, 4
        %v3914 = vshll.u32 %v3638, 16
        %v3916 = vrot.slane %v3914, 5
        %v3917 = vsel %vm288, %v3912, %v3916
        %v3919 = vshrl.u32 %v3639, 16
        %v3921 = vrot.slane %v3919, 4
        %v3922 = vshll.u32 %v3639, 16
        %v3924 = vrot.slane %v3922, 5
        %v3925 = vor.u32 %v3921, %v3924
        %v3926 = vrot.slane %v3925, 4
        %v3928 = vshll.u32 %v3640, 16
        %v3930 = vrot.slane %v3928, 5
        %v3931 = vsel %vm288, %v3926, %v3930
        %v3932 = vshrl.u32 %v3640, 16
        %v3934 = vrot.slane %v3932, 4
        %v3935 = vor.u32 %v3934, %v3930
        %v3936 = vrot.slane %v3935, 4
        %v3938 = vshll.u32 %v3641, 16
        %v3940 = vrot.slane %v3938, 5
        %v3941 = vsel %vm288, %v3936, %v3940
        %v3943 = vshrl.u32 %v3642, 16
        %v3945 = vrot.slane %v3943, 4
        %v3946 = vshll.u32 %v3642, 16
        %v3948 = vrot.slane %v3946, 5
        %v3949 = vor.u32 %v3945, %v3948
        %v3950 = vrot.slane %v3949, 4
        %v3952 = vshll.u32 %v3643, 16
        %v3954 = vrot.slane %v3952, 5
        %v3955 = vsel %vm288, %v3950, %v3954
        %v3956 = vshrl.u32 %v3643, 16
        %v3958 = vrot.slane %v3956, 4
        %v3959 = vor.u32 %v3958, %v3954
        %v3960 = vrot.slane %v3959, 4
        %v3962 = vshll.u32 %v3644, 16
        %v3964 = vrot.slane %v3962, 5
        %v3965 = vsel %vm288, %v3960, %v3964
        %v3967 = vshrl.u32 %v3645, 16
        %v3969 = vrot.slane %v3967, 4
        %v3970 = vshll.u32 %v3645, 16
        %v3972 = vrot.slane %v3970, 5
        %v3973 = vor.u32 %v3969, %v3972
        %v3974 = vrot.slane %v3973, 4
        %v3976 = vshll.u32 %v3646, 16
        %v3978 = vrot.slane %v3976, 5
        %v3979 = vsel %vm288, %v3974, %v3978
        %v3980 = vshrl.u32 %v3646, 16
        %v3982 = vrot.slane %v3980, 4
        %v3983 = vor.u32 %v3982, %v3978
        %v3984 = vrot.slane %v3983, 4
        %v3986 = vshll.u32 %v3647, 16
        %v3988 = vrot.slane %v3986, 5
        %v3989 = vsel %vm288, %v3984, %v3988
        %v3991 = vshrl.u32 %v3648, 16
        %v3993 = vrot.slane %v3991, 4
        %v3994 = vshll.u32 %v3648, 16
        %v3996 = vrot.slane %v3994, 5
        %v3997 = vor.u32 %v3993, %v3996
        %v3998 = vrot.slane %v3997, 4
        %v4000 = vshll.u32 %v3649, 16
        %v4002 = vrot.slane %v4000, 5
        %v4003 = vsel %vm288, %v3998, %v4002
        %v4004 = vshrl.u32 %v3649, 16
        %v4006 = vrot.slane %v4004, 4
        %v4007 = vor.u32 %v4006, %v4002
        %v4008 = vrot.slane %v4007, 4
        %v4010 = vshll.u32 %v3650, 16
        %v4012 = vrot.slane %v4010, 5
        %v4013 = vsel %vm288, %v4008, %v4012
        %v4015 = vshrl.u32 %v3651, 16
        %v4017 = vrot.slane %v4015, 4
        %v4018 = vshll.u32 %v3651, 16
        %v4020 = vrot.slane %v4018, 5
        %v4021 = vor.u32 %v4017, %v4020
        %v4022 = vrot.slane %v4021, 4
        %v4024 = vshll.u32 %v3652, 16
        %v4026 = vrot.slane %v4024, 5
        %v4027 = vsel %vm288, %v4022, %v4026
        %v4028 = vshrl.u32 %v3652, 16
        %v4030 = vrot.slane %v4028, 4
        %v4031 = vor.u32 %v4030, %v4026
        %v4032 = vrot.slane %v4031, 4
        %v4034 = vshll.u32 %v3653, 16
        %v4036 = vrot.slane %v4034, 5
        %v4037 = vsel %vm288, %v4032, %v4036
        %s4038 = scalar_lea.vmem %s1, 14
        %v4039 = vld [vmem:[%s4038] sm:$0x3]
        %v4040 = vunpack.c.l.b16 %v3667
        %v4041 = vunpack.c.l.b16 %v3677
        %v4042 = vunpack.c.l.b16 %v3691
        %v4043 = vunpack.c.l.b16 %v3701
        %v4044 = vunpack.c.l.b16 %v3715
        %v4045 = vunpack.c.l.b16 %v3725
        %v4046 = vunpack.c.l.b16 %v3739
        %v4047 = vunpack.c.l.b16 %v3749
        %v4048 = vunpack.c.l.b16 %v3763
        %v4049 = vunpack.c.l.b16 %v3773
        %v4050 = vunpack.c.l.b16 %v3787
        %v4051 = vunpack.c.l.b16 %v3797
        %v4052 = vunpack.c.l.b16 %v3811
        %v4053 = vunpack.c.l.b16 %v3821
        %v4054 = vunpack.c.l.b16 %v3835
        %v4055 = vunpack.c.l.b16 %v3845
        %v4056 = vunpack.c.l.b16 %v3859
        %v4057 = vunpack.c.l.b16 %v3869
        %v4058 = vunpack.c.l.b16 %v3883
        %v4059 = vunpack.c.l.b16 %v3893
        %v4060 = vunpack.c.l.b16 %v3907
        %v4061 = vunpack.c.l.b16 %v3917
        %v4062 = vunpack.c.l.b16 %v3931
        %v4063 = vunpack.c.l.b16 %v3941
        %v4064 = vunpack.c.l.b16 %v3955
        %v4065 = vunpack.c.l.b16 %v3965
        %v4066 = vunpack.c.l.b16 %v3979
        %v4067 = vunpack.c.l.b16 %v3989
        %v4068 = vunpack.c.l.b16 %v4003
        %v4069 = vunpack.c.l.b16 %v4013
        %v4070 = vunpack.c.l.b16 %v4027
        %v4071 = vunpack.c.l.b16 %v4037
        %v4072 = vpack.c.b16 %v4041, %v4040
        %v4073 = vpack.c.b16 %v4043, %v4042
        %v4074 = vpack.c.b16 %v4045, %v4044
        %v4075 = vpack.c.b16 %v4047, %v4046
        %v4076 = vpack.c.b16 %v4049, %v4048
        %v4077 = vpack.c.b16 %v4051, %v4050
        %v4078 = vpack.c.b16 %v4053, %v4052
        %v4079 = vpack.c.b16 %v4055, %v4054
        %v4080 = vpack.c.b16 %v4057, %v4056
        %v4081 = vpack.c.b16 %v4059, %v4058
        %v4082 = vpack.c.b16 %v4061, %v4060
        %v4083 = vpack.c.b16 %v4063, %v4062
        %v4084 = vpack.c.b16 %v4065, %v4064
        %v4085 = vpack.c.b16 %v4067, %v4066
        %v4086 = vpack.c.b16 %v4069, %v4068
        %v4087 = vpack.c.b16 %v4071, %v4070
        %v4089 = vsel %vm723, %v4072, 0
        %v4092 = vsel %vm723, %v4073, 0
        %v4095 = vsel %vm723, %v4074, 0
        %v4098 = vsel %vm723, %v4075, 0
        %v4101 = vsel %vm723, %v4076, 0
        %v4104 = vsel %vm723, %v4077, 0
        %v4107 = vsel %vm723, %v4078, 0
        %v4110 = vsel %vm723, %v4079, 0
        %v4113 = vsel %vm723, %v4080, 0
        %v4116 = vsel %vm723, %v4081, 0
        %v4119 = vsel %vm723, %v4082, 0
        %v4122 = vsel %vm723, %v4083, 0
        %v4125 = vsel %vm723, %v4084, 0
        %v4128 = vsel %vm723, %v4085, 0
        %v4131 = vsel %vm723, %v4086, 0
        %v4134 = vsel %vm723, %v4087, 0
        %v4137 = vsel %vm772, %v4039, 0
        %4139 = vmatprep.subr.bf16.mxu0 0
        %4140 = vmatpush1.bf16.msra.mxu0 0
        %4141 = vmatprep.subr.bf16.mxu0 0
        %4142 = vmatpush1.bf16.msra.mxu0 0
        %4143 = vmatprep.subr.bf16.mxu0 0
        %4144 = vmatpush1.bf16.msra.mxu0 0
        %4145 = vmatprep.subr.bf16.mxu0 0
        %4146 = vmatpush1.bf16.msra.mxu0 0
        %4147 = vmatprep.subr.bf16.mxu0 0
        %4148 = vmatpush1.bf16.msra.mxu0 0
        %4149 = vmatprep.subr.bf16.mxu0 0
        %4150 = vmatpush1.bf16.msra.mxu0 0
        %4151 = vmatprep.subr.bf16.mxu0 0
        %4152 = vmatpush1.bf16.msra.mxu0 0
        %4153 = vmatprep.subr.bf16.mxu0 0
        %4154 = vmatpush1.bf16.msra.mxu0 %v4137
        %4155 = vmatprep.subr.bf16.mxu0 0
        %4156 = vmatpush2.bf16.msra.mxu0 0
        %4157 = vmatprep.subr.bf16.mxu0 0
        %4158 = vmatpush2.bf16.msra.mxu0 0
        %4159 = vmatprep.subr.bf16.mxu0 0
        %4160 = vmatpush2.bf16.msra.mxu0 0
        %4161 = vmatprep.subr.bf16.mxu0 0
        %4162 = vmatpush2.bf16.msra.mxu0 0
        %4163 = vmatprep.subr.bf16.mxu0 0
        %4164 = vmatpush2.bf16.msra.mxu0 0
        %4165 = vmatprep.subr.bf16.mxu0 0
        %4166 = vmatpush2.bf16.msra.mxu0 0
        %4167 = vmatprep.subr.bf16.mxu0 0
        %4168 = vmatpush2.bf16.msra.mxu0 0
        %4169 = vmatprep.subr.bf16.mxu0 0
        %4170 = vmatpush2.bf16.msra.mxu0 0
        %4171 = vmatprep.mubr.bf16.mxu0 0
        %4172 = vmatmul.mubr.bf16.gmra.mxu0 %v4089
        %v4173 = vpop.f32.mrf.mxu0
        %v4174 = vadd.f32 0.0, %v4173
        %v4175 = vpop.f32.mrf.mxu0
        %v4176 = vpop.f32.mrf.mxu0
        %v4177 = vadd.f32 0.0, %v4176
        %v4178 = vpop.f32.mrf.mxu0
        %4179 = vmatprep.mubr.bf16.mxu0 0
        %4180 = vmatmul.mubr.bf16.gmra.mxu0 %v4092
        %v4181 = vpop.f32.mrf.mxu0
        %v4182 = vadd.f32 0.0, %v4181
        %v4183 = vpop.f32.mrf.mxu0
        %v4184 = vpop.f32.mrf.mxu0
        %v4185 = vadd.f32 0.0, %v4184
        %v4186 = vpop.f32.mrf.mxu0
        %4187 = vmatprep.mubr.bf16.mxu0 0
        %4188 = vmatmul.mubr.bf16.gmra.mxu0 %v4095
        %v4189 = vpop.f32.mrf.mxu0
        %v4190 = vadd.f32 0.0, %v4189
        %v4191 = vpop.f32.mrf.mxu0
        %v4192 = vpop.f32.mrf.mxu0
        %v4193 = vadd.f32 0.0, %v4192
        %v4194 = vpop.f32.mrf.mxu0
        %4195 = vmatprep.mubr.bf16.mxu0 0
        %4196 = vmatmul.mubr.bf16.gmra.mxu0 %v4098
        %v4197 = vpop.f32.mrf.mxu0
        %v4198 = vadd.f32 0.0, %v4197
        %v4199 = vpop.f32.mrf.mxu0
        %v4200 = vpop.f32.mrf.mxu0
        %v4201 = vadd.f32 0.0, %v4200
        %v4202 = vpop.f32.mrf.mxu0
        %4203 = vmatprep.mubr.bf16.mxu0 0
        %4204 = vmatmul.mubr.bf16.gmra.mxu0 %v4101
        %v4205 = vpop.f32.mrf.mxu0
        %v4206 = vadd.f32 0.0, %v4205
        %v4207 = vpop.f32.mrf.mxu0
        %v4208 = vpop.f32.mrf.mxu0
        %v4209 = vadd.f32 0.0, %v4208
        %v4210 = vpop.f32.mrf.mxu0
        %4211 = vmatprep.mubr.bf16.mxu0 0
        %4212 = vmatmul.mubr.bf16.gmra.mxu0 %v4104
        %v4213 = vpop.f32.mrf.mxu0
        %v4214 = vadd.f32 0.0, %v4213
        %v4215 = vpop.f32.mrf.mxu0
        %v4216 = vpop.f32.mrf.mxu0
        %v4217 = vadd.f32 0.0, %v4216
        %v4218 = vpop.f32.mrf.mxu0
        %4219 = vmatprep.mubr.bf16.mxu0 0
        %4220 = vmatmul.mubr.bf16.gmra.mxu0 %v4107
        %v4221 = vpop.f32.mrf.mxu0
        %v4222 = vadd.f32 0.0, %v4221
        %v4223 = vpop.f32.mrf.mxu0
        %v4224 = vpop.f32.mrf.mxu0
        %v4225 = vadd.f32 0.0, %v4224
        %v4226 = vpop.f32.mrf.mxu0
        %4227 = vmatprep.mubr.bf16.mxu0 0
        %4228 = vmatmul.mubr.bf16.gmra.mxu0 %v4110
        %v4229 = vpop.f32.mrf.mxu0
        %v4230 = vadd.f32 0.0, %v4229
        %v4231 = vpop.f32.mrf.mxu0
        %v4232 = vpop.f32.mrf.mxu0
        %v4233 = vadd.f32 0.0, %v4232
        %v4234 = vpop.f32.mrf.mxu0
        %4235 = vmatprep.mubr.bf16.mxu0 0
        %4236 = vmatmul.mubr.bf16.gmra.mxu0 %v4113
        %v4237 = vpop.f32.mrf.mxu0
        %v4238 = vadd.f32 0.0, %v4237
        %v4239 = vpop.f32.mrf.mxu0
        %v4240 = vpop.f32.mrf.mxu0
        %v4241 = vadd.f32 0.0, %v4240
        %v4242 = vpop.f32.mrf.mxu0
        %4243 = vmatprep.mubr.bf16.mxu0 0
        %4244 = vmatmul.mubr.bf16.gmra.mxu0 %v4116
        %v4245 = vpop.f32.mrf.mxu0
        %v4246 = vadd.f32 0.0, %v4245
        %v4247 = vpop.f32.mrf.mxu0
        %v4248 = vpop.f32.mrf.mxu0
        %v4249 = vadd.f32 0.0, %v4248
        %v4250 = vpop.f32.mrf.mxu0
        %4251 = vmatprep.mubr.bf16.mxu0 0
        %4252 = vmatmul.mubr.bf16.gmra.mxu0 %v4119
        %v4253 = vpop.f32.mrf.mxu0
        %v4254 = vadd.f32 0.0, %v4253
        %v4255 = vpop.f32.mrf.mxu0
        %v4256 = vpop.f32.mrf.mxu0
        %v4257 = vadd.f32 0.0, %v4256
        %v4258 = vpop.f32.mrf.mxu0
        %4259 = vmatprep.mubr.bf16.mxu0 0
        %4260 = vmatmul.mubr.bf16.gmra.mxu0 %v4122
        %v4261 = vpop.f32.mrf.mxu0
        %v4262 = vadd.f32 0.0, %v4261
        %v4263 = vpop.f32.mrf.mxu0
        %v4264 = vpop.f32.mrf.mxu0
        %v4265 = vadd.f32 0.0, %v4264
        %v4266 = vpop.f32.mrf.mxu0
        %4267 = vmatprep.mubr.bf16.mxu0 0
        %4268 = vmatmul.mubr.bf16.gmra.mxu0 %v4125
        %v4269 = vpop.f32.mrf.mxu0
        %v4270 = vadd.f32 0.0, %v4269
        %v4271 = vpop.f32.mrf.mxu0
        %v4272 = vpop.f32.mrf.mxu0
        %v4273 = vadd.f32 0.0, %v4272
        %v4274 = vpop.f32.mrf.mxu0
        %4275 = vmatprep.mubr.bf16.mxu0 0
        %4276 = vmatmul.mubr.bf16.gmra.mxu0 %v4128
        %v4277 = vpop.f32.mrf.mxu0
        %v4278 = vadd.f32 0.0, %v4277
        %v4279 = vpop.f32.mrf.mxu0
        %v4280 = vpop.f32.mrf.mxu0
        %v4281 = vadd.f32 0.0, %v4280
        %v4282 = vpop.f32.mrf.mxu0
        %4283 = vmatprep.mubr.bf16.mxu0 0
        %4284 = vmatmul.mubr.bf16.gmra.mxu0 %v4131
        %v4285 = vpop.f32.mrf.mxu0
        %v4286 = vadd.f32 0.0, %v4285
        %v4287 = vpop.f32.mrf.mxu0
        %v4288 = vpop.f32.mrf.mxu0
        %v4289 = vadd.f32 0.0, %v4288
        %v4290 = vpop.f32.mrf.mxu0
        %4291 = vmatprep.mubr.bf16.mxu0 0
        %4292 = vmatmul.mubr.bf16.gmra.mxu0 %v4134
        %v4293 = vpop.f32.mrf.mxu0
        %v4294 = vadd.f32 0.0, %v4293
        %v4295 = vpop.f32.mrf.mxu0
        %v4296 = vpop.f32.mrf.mxu0
        %v4297 = vadd.f32 0.0, %v4296
        %v4298 = vpop.f32.mrf.mxu0
        %4299 = vdwg.mxu0
        %v4300 = vadd.f32 %v3574, %v4174
        %v4301 = vadd.f32 %v3575, %v4177
        %v4302 = vadd.f32 %v3576, %v4182
        %v4303 = vadd.f32 %v3577, %v4185
        %v4304 = vadd.f32 %v3578, %v4190
        %v4305 = vadd.f32 %v3579, %v4193
        %v4306 = vadd.f32 %v3580, %v4198
        %v4307 = vadd.f32 %v3581, %v4201
        %v4308 = vadd.f32 %v3582, %v4206
        %v4309 = vadd.f32 %v3583, %v4209
        %v4310 = vadd.f32 %v3584, %v4214
        %v4311 = vadd.f32 %v3585, %v4217
        %v4312 = vadd.f32 %v3586, %v4222
        %v4313 = vadd.f32 %v3587, %v4225
        %v4314 = vadd.f32 %v3588, %v4230
        %v4315 = vadd.f32 %v3589, %v4233
        %v4316 = vadd.f32 %v3590, %v4238
        %v4317 = vadd.f32 %v3591, %v4241
        %v4318 = vadd.f32 %v3592, %v4246
        %v4319 = vadd.f32 %v3593, %v4249
        %v4320 = vadd.f32 %v3594, %v4254
        %v4321 = vadd.f32 %v3595, %v4257
        %v4322 = vadd.f32 %v3596, %v4262
        %v4323 = vadd.f32 %v3597, %v4265
        %v4324 = vadd.f32 %v3598, %v4270
        %v4325 = vadd.f32 %v3599, %v4273
        %v4326 = vadd.f32 %v3600, %v4278
        %v4327 = vadd.f32 %v3601, %v4281
        %v4328 = vadd.f32 %v3602, %v4286
        %v4329 = vadd.f32 %v3603, %v4289
        %v4330 = vadd.f32 %v3604, %v4294
        %v4331 = vadd.f32 %v3605, %v4297
        %v4332 = vld [vmem:[%s3247] sm:$0xe]
        %v4333 = vld [vmem:[%s3247 + $0xc] sm:$0xe]
        %v4334 = vld [vmem:[%s3247 + $0x18] sm:$0xe]
        %v4335 = vld [vmem:[%s3247 + $0x24] sm:$0xe]
        %v4336 = vld [vmem:[%s3247 + $0x30] sm:$0xe]
        %v4337 = vld [vmem:[%s3247 + $0x3c] sm:$0xe]
        %v4338 = vld [vmem:[%s3247 + $0x48] sm:$0xe]
        %v4339 = vld [vmem:[%s3247 + $0x54] sm:$0xe]
        %v4340 = vld [vmem:[%s3247 + $0x60] sm:$0xe]
        %v4341 = vld [vmem:[%s3247 + $0x6c] sm:$0xe]
        %v4342 = vld [vmem:[%s3247 + $0x78] sm:$0xe]
        %v4343 = vld [vmem:[%s3247 + $0x84] sm:$0xe]
        %v4344 = vld [vmem:[%s3247 + $0x90] sm:$0xe]
        %v4345 = vld [vmem:[%s3247 + $0x9c] sm:$0xe]
        %v4346 = vld [vmem:[%s3247 + $0xa8] sm:$0xe]
        %v4347 = vld [vmem:[%s3247 + $0xb4] sm:$0xe]
        %v4396 = vrot.slane %v4332, 5
        %v4397 = vrot.slane %v4396, 4
        %v4398 = vrot.slane %v3607, 5
        %v4399 = vsel %vm1279, %v4397, %v4398
        %v4400 = vrot.slane %v4398, 4
        %v4401 = vrot.slane %v3608, 5
        %v4402 = vsel %vm1279, %v4400, %v4401
        %v4403 = vrot.slane %v4333, 5
        %v4404 = vrot.slane %v4403, 4
        %v4405 = vrot.slane %v3610, 5
        %v4406 = vsel %vm1279, %v4404, %v4405
        %v4407 = vrot.slane %v4405, 4
        %v4408 = vrot.slane %v3611, 5
        %v4409 = vsel %vm1279, %v4407, %v4408
        %v4410 = vrot.slane %v4334, 5
        %v4411 = vrot.slane %v4410, 4
        %v4412 = vrot.slane %v3613, 5
        %v4413 = vsel %vm1279, %v4411, %v4412
        %v4414 = vrot.slane %v4412, 4
        %v4415 = vrot.slane %v3614, 5
        %v4416 = vsel %vm1279, %v4414, %v4415
        %v4417 = vrot.slane %v4335, 5
        %v4418 = vrot.slane %v4417, 4
        %v4419 = vrot.slane %v3616, 5
        %v4420 = vsel %vm1279, %v4418, %v4419
        %v4421 = vrot.slane %v4419, 4
        %v4422 = vrot.slane %v3617, 5
        %v4423 = vsel %vm1279, %v4421, %v4422
        %v4424 = vrot.slane %v4336, 5
        %v4425 = vrot.slane %v4424, 4
        %v4426 = vrot.slane %v3619, 5
        %v4427 = vsel %vm1279, %v4425, %v4426
        %v4428 = vrot.slane %v4426, 4
        %v4429 = vrot.slane %v3620, 5
        %v4430 = vsel %vm1279, %v4428, %v4429
        %v4431 = vrot.slane %v4337, 5
        %v4432 = vrot.slane %v4431, 4
        %v4433 = vrot.slane %v3622, 5
        %v4434 = vsel %vm1279, %v4432, %v4433
        %v4435 = vrot.slane %v4433, 4
        %v4436 = vrot.slane %v3623, 5
        %v4437 = vsel %vm1279, %v4435, %v4436
        %v4438 = vrot.slane %v4338, 5
        %v4439 = vrot.slane %v4438, 4
        %v4440 = vrot.slane %v3625, 5
        %v4441 = vsel %vm1279, %v4439, %v4440
        %v4442 = vrot.slane %v4440, 4
        %v4443 = vrot.slane %v3626, 5
        %v4444 = vsel %vm1279, %v4442, %v4443
        %v4445 = vrot.slane %v4339, 5
        %v4446 = vrot.slane %v4445, 4
        %v4447 = vrot.slane %v3628, 5
        %v4448 = vsel %vm1279, %v4446, %v4447
        %v4449 = vrot.slane %v4447, 4
        %v4450 = vrot.slane %v3629, 5
        %v4451 = vsel %vm1279, %v4449, %v4450
        %v4452 = vrot.slane %v4340, 5
        %v4453 = vrot.slane %v4452, 4
        %v4454 = vrot.slane %v3631, 5
        %v4455 = vsel %vm1279, %v4453, %v4454
        %v4456 = vrot.slane %v4454, 4
        %v4457 = vrot.slane %v3632, 5
        %v4458 = vsel %vm1279, %v4456, %v4457
        %v4459 = vrot.slane %v4341, 5
        %v4460 = vrot.slane %v4459, 4
        %v4461 = vrot.slane %v3634, 5
        %v4462 = vsel %vm1279, %v4460, %v4461
        %v4463 = vrot.slane %v4461, 4
        %v4464 = vrot.slane %v3635, 5
        %v4465 = vsel %vm1279, %v4463, %v4464
        %v4466 = vrot.slane %v4342, 5
        %v4467 = vrot.slane %v4466, 4
        %v4468 = vrot.slane %v3637, 5
        %v4469 = vsel %vm1279, %v4467, %v4468
        %v4470 = vrot.slane %v4468, 4
        %v4471 = vrot.slane %v3638, 5
        %v4472 = vsel %vm1279, %v4470, %v4471
        %v4473 = vrot.slane %v4343, 5
        %v4474 = vrot.slane %v4473, 4
        %v4475 = vrot.slane %v3640, 5
        %v4476 = vsel %vm1279, %v4474, %v4475
        %v4477 = vrot.slane %v4475, 4
        %v4478 = vrot.slane %v3641, 5
        %v4479 = vsel %vm1279, %v4477, %v4478
        %v4480 = vrot.slane %v4344, 5
        %v4481 = vrot.slane %v4480, 4
        %v4482 = vrot.slane %v3643, 5
        %v4483 = vsel %vm1279, %v4481, %v4482
        %v4484 = vrot.slane %v4482, 4
        %v4485 = vrot.slane %v3644, 5
        %v4486 = vsel %vm1279, %v4484, %v4485
        %v4487 = vrot.slane %v4345, 5
        %v4488 = vrot.slane %v4487, 4
        %v4489 = vrot.slane %v3646, 5
        %v4490 = vsel %vm1279, %v4488, %v4489
        %v4491 = vrot.slane %v4489, 4
        %v4492 = vrot.slane %v3647, 5
        %v4493 = vsel %vm1279, %v4491, %v4492
        %v4494 = vrot.slane %v4346, 5
        %v4495 = vrot.slane %v4494, 4
        %v4496 = vrot.slane %v3649, 5
        %v4497 = vsel %vm1279, %v4495, %v4496
        %v4498 = vrot.slane %v4496, 4
        %v4499 = vrot.slane %v3650, 5
        %v4500 = vsel %vm1279, %v4498, %v4499
        %v4501 = vrot.slane %v4347, 5
        %v4502 = vrot.slane %v4501, 4
        %v4503 = vrot.slane %v3652, 5
        %v4504 = vsel %vm1279, %v4502, %v4503
        %v4505 = vrot.slane %v4503, 4
        %v4506 = vrot.slane %v3653, 5
        %v4507 = vsel %vm1279, %v4505, %v4506
        %s4508 = scalar_lea.vmem %s1, 16
        %v4509 = vld [vmem:[%s4508] sm:$0x3]
        %v4510 = vunpack.c.l.b16 %v4399
        %v4511 = vunpack.c.l.b16 %v4402
        %v4512 = vunpack.c.l.b16 %v4406
        %v4513 = vunpack.c.l.b16 %v4409
        %v4514 = vunpack.c.l.b16 %v4413
        %v4515 = vunpack.c.l.b16 %v4416
        %v4516 = vunpack.c.l.b16 %v4420
        %v4517 = vunpack.c.l.b16 %v4423
        %v4518 = vunpack.c.l.b16 %v4427
        %v4519 = vunpack.c.l.b16 %v4430
        %v4520 = vunpack.c.l.b16 %v4434
        %v4521 = vunpack.c.l.b16 %v4437
        %v4522 = vunpack.c.l.b16 %v4441
        %v4523 = vunpack.c.l.b16 %v4444
        %v4524 = vunpack.c.l.b16 %v4448
        %v4525 = vunpack.c.l.b16 %v4451
        %v4526 = vunpack.c.l.b16 %v4455
        %v4527 = vunpack.c.l.b16 %v4458
        %v4528 = vunpack.c.l.b16 %v4462
        %v4529 = vunpack.c.l.b16 %v4465
        %v4530 = vunpack.c.l.b16 %v4469
        %v4531 = vunpack.c.l.b16 %v4472
        %v4532 = vunpack.c.l.b16 %v4476
        %v4533 = vunpack.c.l.b16 %v4479
        %v4534 = vunpack.c.l.b16 %v4483
        %v4535 = vunpack.c.l.b16 %v4486
        %v4536 = vunpack.c.l.b16 %v4490
        %v4537 = vunpack.c.l.b16 %v4493
        %v4538 = vunpack.c.l.b16 %v4497
        %v4539 = vunpack.c.l.b16 %v4500
        %v4540 = vunpack.c.l.b16 %v4504
        %v4541 = vunpack.c.l.b16 %v4507
        %v4542 = vpack.c.b16 %v4511, %v4510
        %v4543 = vpack.c.b16 %v4513, %v4512
        %v4544 = vpack.c.b16 %v4515, %v4514
        %v4545 = vpack.c.b16 %v4517, %v4516
        %v4546 = vpack.c.b16 %v4519, %v4518
        %v4547 = vpack.c.b16 %v4521, %v4520
        %v4548 = vpack.c.b16 %v4523, %v4522
        %v4549 = vpack.c.b16 %v4525, %v4524
        %v4550 = vpack.c.b16 %v4527, %v4526
        %v4551 = vpack.c.b16 %v4529, %v4528
        %v4552 = vpack.c.b16 %v4531, %v4530
        %v4553 = vpack.c.b16 %v4533, %v4532
        %v4554 = vpack.c.b16 %v4535, %v4534
        %v4555 = vpack.c.b16 %v4537, %v4536
        %v4556 = vpack.c.b16 %v4539, %v4538
        %v4557 = vpack.c.b16 %v4541, %v4540
        %v4559 = vsel %vm723, %v4542, 0
        %v4562 = vsel %vm723, %v4543, 0
        %v4565 = vsel %vm723, %v4544, 0
        %v4568 = vsel %vm723, %v4545, 0
        %v4571 = vsel %vm723, %v4546, 0
        %v4574 = vsel %vm723, %v4547, 0
        %v4577 = vsel %vm723, %v4548, 0
        %v4580 = vsel %vm723, %v4549, 0
        %v4583 = vsel %vm723, %v4550, 0
        %v4586 = vsel %vm723, %v4551, 0
        %v4589 = vsel %vm723, %v4552, 0
        %v4592 = vsel %vm723, %v4553, 0
        %v4595 = vsel %vm723, %v4554, 0
        %v4598 = vsel %vm723, %v4555, 0
        %v4601 = vsel %vm723, %v4556, 0
        %v4604 = vsel %vm723, %v4557, 0
        %v4607 = vsel %vm772, %v4509, 0
        %4609 = vmatprep.subr.bf16.mxu0 0
        %4610 = vmatpush1.bf16.msra.mxu0 0
        %4611 = vmatprep.subr.bf16.mxu0 0
        %4612 = vmatpush1.bf16.msra.mxu0 0
        %4613 = vmatprep.subr.bf16.mxu0 0
        %4614 = vmatpush1.bf16.msra.mxu0 0
        %4615 = vmatprep.subr.bf16.mxu0 0
        %4616 = vmatpush1.bf16.msra.mxu0 0
        %4617 = vmatprep.subr.bf16.mxu0 0
        %4618 = vmatpush1.bf16.msra.mxu0 0
        %4619 = vmatprep.subr.bf16.mxu0 0
        %4620 = vmatpush1.bf16.msra.mxu0 0
        %4621 = vmatprep.subr.bf16.mxu0 0
        %4622 = vmatpush1.bf16.msra.mxu0 0
        %4623 = vmatprep.subr.bf16.mxu0 0
        %4624 = vmatpush1.bf16.msra.mxu0 %v4607
        %4625 = vmatprep.subr.bf16.mxu0 0
        %4626 = vmatpush2.bf16.msra.mxu0 0
        %4627 = vmatprep.subr.bf16.mxu0 0
        %4628 = vmatpush2.bf16.msra.mxu0 0
        %4629 = vmatprep.subr.bf16.mxu0 0
        %4630 = vmatpush2.bf16.msra.mxu0 0
        %4631 = vmatprep.subr.bf16.mxu0 0
        %4632 = vmatpush2.bf16.msra.mxu0 0
        %4633 = vmatprep.subr.bf16.mxu0 0
        %4634 = vmatpush2.bf16.msra.mxu0 0
        %4635 = vmatprep.subr.bf16.mxu0 0
        %4636 = vmatpush2.bf16.msra.mxu0 0
        %4637 = vmatprep.subr.bf16.mxu0 0
        %4638 = vmatpush2.bf16.msra.mxu0 0
        %4639 = vmatprep.subr.bf16.mxu0 0
        %4640 = vmatpush2.bf16.msra.mxu0 0
        %4641 = vmatprep.mubr.bf16.mxu0 0
        %4642 = vmatmul.mubr.bf16.gmra.mxu0 %v4559
        %v4643 = vpop.f32.mrf.mxu0
        %v4644 = vadd.f32 0.0, %v4643
        %v4645 = vpop.f32.mrf.mxu0
        %v4646 = vpop.f32.mrf.mxu0
        %v4647 = vadd.f32 0.0, %v4646
        %v4648 = vpop.f32.mrf.mxu0
        %4649 = vmatprep.mubr.bf16.mxu0 0
        %4650 = vmatmul.mubr.bf16.gmra.mxu0 %v4562
        %v4651 = vpop.f32.mrf.mxu0
        %v4652 = vadd.f32 0.0, %v4651
        %v4653 = vpop.f32.mrf.mxu0
        %v4654 = vpop.f32.mrf.mxu0
        %v4655 = vadd.f32 0.0, %v4654
        %v4656 = vpop.f32.mrf.mxu0
        %4657 = vmatprep.mubr.bf16.mxu0 0
        %4658 = vmatmul.mubr.bf16.gmra.mxu0 %v4565
        %v4659 = vpop.f32.mrf.mxu0
        %v4660 = vadd.f32 0.0, %v4659
        %v4661 = vpop.f32.mrf.mxu0
        %v4662 = vpop.f32.mrf.mxu0
        %v4663 = vadd.f32 0.0, %v4662
        %v4664 = vpop.f32.mrf.mxu0
        %4665 = vmatprep.mubr.bf16.mxu0 0
        %4666 = vmatmul.mubr.bf16.gmra.mxu0 %v4568
        %v4667 = vpop.f32.mrf.mxu0
        %v4668 = vadd.f32 0.0, %v4667
        %v4669 = vpop.f32.mrf.mxu0
        %v4670 = vpop.f32.mrf.mxu0
        %v4671 = vadd.f32 0.0, %v4670
        %v4672 = vpop.f32.mrf.mxu0
        %4673 = vmatprep.mubr.bf16.mxu0 0
        %4674 = vmatmul.mubr.bf16.gmra.mxu0 %v4571
        %v4675 = vpop.f32.mrf.mxu0
        %v4676 = vadd.f32 0.0, %v4675
        %v4677 = vpop.f32.mrf.mxu0
        %v4678 = vpop.f32.mrf.mxu0
        %v4679 = vadd.f32 0.0, %v4678
        %v4680 = vpop.f32.mrf.mxu0
        %4681 = vmatprep.mubr.bf16.mxu0 0
        %4682 = vmatmul.mubr.bf16.gmra.mxu0 %v4574
        %v4683 = vpop.f32.mrf.mxu0
        %v4684 = vadd.f32 0.0, %v4683
        %v4685 = vpop.f32.mrf.mxu0
        %v4686 = vpop.f32.mrf.mxu0
        %v4687 = vadd.f32 0.0, %v4686
        %v4688 = vpop.f32.mrf.mxu0
        %4689 = vmatprep.mubr.bf16.mxu0 0
        %4690 = vmatmul.mubr.bf16.gmra.mxu0 %v4577
        %v4691 = vpop.f32.mrf.mxu0
        %v4692 = vadd.f32 0.0, %v4691
        %v4693 = vpop.f32.mrf.mxu0
        %v4694 = vpop.f32.mrf.mxu0
        %v4695 = vadd.f32 0.0, %v4694
        %v4696 = vpop.f32.mrf.mxu0
        %4697 = vmatprep.mubr.bf16.mxu0 0
        %4698 = vmatmul.mubr.bf16.gmra.mxu0 %v4580
        %v4699 = vpop.f32.mrf.mxu0
        %v4700 = vadd.f32 0.0, %v4699
        %v4701 = vpop.f32.mrf.mxu0
        %v4702 = vpop.f32.mrf.mxu0
        %v4703 = vadd.f32 0.0, %v4702
        %v4704 = vpop.f32.mrf.mxu0
        %4705 = vmatprep.mubr.bf16.mxu0 0
        %4706 = vmatmul.mubr.bf16.gmra.mxu0 %v4583
        %v4707 = vpop.f32.mrf.mxu0
        %v4708 = vadd.f32 0.0, %v4707
        %v4709 = vpop.f32.mrf.mxu0
        %v4710 = vpop.f32.mrf.mxu0
        %v4711 = vadd.f32 0.0, %v4710
        %v4712 = vpop.f32.mrf.mxu0
        %4713 = vmatprep.mubr.bf16.mxu0 0
        %4714 = vmatmul.mubr.bf16.gmra.mxu0 %v4586
        %v4715 = vpop.f32.mrf.mxu0
        %v4716 = vadd.f32 0.0, %v4715
        %v4717 = vpop.f32.mrf.mxu0
        %v4718 = vpop.f32.mrf.mxu0
        %v4719 = vadd.f32 0.0, %v4718
        %v4720 = vpop.f32.mrf.mxu0
        %4721 = vmatprep.mubr.bf16.mxu0 0
        %4722 = vmatmul.mubr.bf16.gmra.mxu0 %v4589
        %v4723 = vpop.f32.mrf.mxu0
        %v4724 = vadd.f32 0.0, %v4723
        %v4725 = vpop.f32.mrf.mxu0
        %v4726 = vpop.f32.mrf.mxu0
        %v4727 = vadd.f32 0.0, %v4726
        %v4728 = vpop.f32.mrf.mxu0
        %4729 = vmatprep.mubr.bf16.mxu0 0
        %4730 = vmatmul.mubr.bf16.gmra.mxu0 %v4592
        %v4731 = vpop.f32.mrf.mxu0
        %v4732 = vadd.f32 0.0, %v4731
        %v4733 = vpop.f32.mrf.mxu0
        %v4734 = vpop.f32.mrf.mxu0
        %v4735 = vadd.f32 0.0, %v4734
        %v4736 = vpop.f32.mrf.mxu0
        %4737 = vmatprep.mubr.bf16.mxu0 0
        %4738 = vmatmul.mubr.bf16.gmra.mxu0 %v4595
        %v4739 = vpop.f32.mrf.mxu0
        %v4740 = vadd.f32 0.0, %v4739
        %v4741 = vpop.f32.mrf.mxu0
        %v4742 = vpop.f32.mrf.mxu0
        %v4743 = vadd.f32 0.0, %v4742
        %v4744 = vpop.f32.mrf.mxu0
        %4745 = vmatprep.mubr.bf16.mxu0 0
        %4746 = vmatmul.mubr.bf16.gmra.mxu0 %v4598
        %v4747 = vpop.f32.mrf.mxu0
        %v4748 = vadd.f32 0.0, %v4747
        %v4749 = vpop.f32.mrf.mxu0
        %v4750 = vpop.f32.mrf.mxu0
        %v4751 = vadd.f32 0.0, %v4750
        %v4752 = vpop.f32.mrf.mxu0
        %4753 = vmatprep.mubr.bf16.mxu0 0
        %4754 = vmatmul.mubr.bf16.gmra.mxu0 %v4601
        %v4755 = vpop.f32.mrf.mxu0
        %v4756 = vadd.f32 0.0, %v4755
        %v4757 = vpop.f32.mrf.mxu0
        %v4758 = vpop.f32.mrf.mxu0
        %v4759 = vadd.f32 0.0, %v4758
        %v4760 = vpop.f32.mrf.mxu0
        %4761 = vmatprep.mubr.bf16.mxu0 0
        %4762 = vmatmul.mubr.bf16.gmra.mxu0 %v4604
        %v4763 = vpop.f32.mrf.mxu0
        %v4764 = vadd.f32 0.0, %v4763
        %v4765 = vpop.f32.mrf.mxu0
        %v4766 = vpop.f32.mrf.mxu0
        %v4767 = vadd.f32 0.0, %v4766
        %v4768 = vpop.f32.mrf.mxu0
        %4769 = vdwg.mxu0
        %v4770 = vadd.f32 %v4300, %v4644
        %v4771 = vadd.f32 %v4301, %v4647
        %v4772 = vadd.f32 %v4302, %v4652
        %v4773 = vadd.f32 %v4303, %v4655
        %v4774 = vadd.f32 %v4304, %v4660
        %v4775 = vadd.f32 %v4305, %v4663
        %v4776 = vadd.f32 %v4306, %v4668
        %v4777 = vadd.f32 %v4307, %v4671
        %v4778 = vadd.f32 %v4308, %v4676
        %v4779 = vadd.f32 %v4309, %v4679
        %v4780 = vadd.f32 %v4310, %v4684
        %v4781 = vadd.f32 %v4311, %v4687
        %v4782 = vadd.f32 %v4312, %v4692
        %v4783 = vadd.f32 %v4313, %v4695
        %v4784 = vadd.f32 %v4314, %v4700
        %v4785 = vadd.f32 %v4315, %v4703
        %v4786 = vadd.f32 %v4316, %v4708
        %v4787 = vadd.f32 %v4317, %v4711
        %v4788 = vadd.f32 %v4318, %v4716
        %v4789 = vadd.f32 %v4319, %v4719
        %v4790 = vadd.f32 %v4320, %v4724
        %v4791 = vadd.f32 %v4321, %v4727
        %v4792 = vadd.f32 %v4322, %v4732
        %v4793 = vadd.f32 %v4323, %v4735
        %v4794 = vadd.f32 %v4324, %v4740
        %v4795 = vadd.f32 %v4325, %v4743
        %v4796 = vadd.f32 %v4326, %v4748
        %v4797 = vadd.f32 %v4327, %v4751
        %v4798 = vadd.f32 %v4328, %v4756
        %v4799 = vadd.f32 %v4329, %v4759
        %v4800 = vadd.f32 %v4330, %v4764
        %v4801 = vadd.f32 %v4331, %v4767
        %v4802 = vpack.c.bf16 %v4771, %v4770
        %v4803 = vpack.c.bf16 %v4773, %v4772
        %v4804 = vpack.c.bf16 %v4775, %v4774
        %v4805 = vpack.c.bf16 %v4777, %v4776
        %v4806 = vpack.c.bf16 %v4779, %v4778
        %v4807 = vpack.c.bf16 %v4781, %v4780
        %v4808 = vpack.c.bf16 %v4783, %v4782
        %v4809 = vpack.c.bf16 %v4785, %v4784
        %v4810 = vpack.c.bf16 %v4787, %v4786
        %v4811 = vpack.c.bf16 %v4789, %v4788
        %v4812 = vpack.c.bf16 %v4791, %v4790
        %v4813 = vpack.c.bf16 %v4793, %v4792
        %v4814 = vpack.c.bf16 %v4795, %v4794
        %v4815 = vpack.c.bf16 %v4797, %v4796
        %v4816 = vpack.c.bf16 %v4799, %v4798
        %v4817 = vpack.c.bf16 %v4801, %v4800
        %v4834 = vunpack.c.l.b16 %v4802
        %v4835 = vunpack.c.h.b16 %v4802
        %v4836 = vunpack.c.l.b16 %v4803
        %v4837 = vunpack.c.h.b16 %v4803
        %v4838 = vunpack.c.l.b16 %v4804
        %v4839 = vunpack.c.h.b16 %v4804
        %v4840 = vunpack.c.l.b16 %v4805
        %v4841 = vunpack.c.h.b16 %v4805
        %v4842 = vunpack.c.l.b16 %v4806
        %v4843 = vunpack.c.h.b16 %v4806
        %v4844 = vunpack.c.l.b16 %v4807
        %v4845 = vunpack.c.h.b16 %v4807
        %v4846 = vunpack.c.l.b16 %v4808
        %v4847 = vunpack.c.h.b16 %v4808
        %v4848 = vunpack.c.l.b16 %v4809
        %v4849 = vunpack.c.h.b16 %v4809
        %v4850 = vunpack.c.l.b16 %v4810
        %v4851 = vunpack.c.h.b16 %v4810
        %v4852 = vunpack.c.l.b16 %v4811
        %v4853 = vunpack.c.h.b16 %v4811
        %v4854 = vunpack.c.l.b16 %v4812
        %v4855 = vunpack.c.h.b16 %v4812
        %v4856 = vunpack.c.l.b16 %v4813
        %v4857 = vunpack.c.h.b16 %v4813
        %v4858 = vunpack.c.l.b16 %v4814
        %v4859 = vunpack.c.h.b16 %v4814
        %v4860 = vunpack.c.l.b16 %v4815
        %v4861 = vunpack.c.h.b16 %v4815
        %v4862 = vunpack.c.l.b16 %v4816
        %v4863 = vunpack.c.h.b16 %v4816
        %v4864 = vunpack.c.l.b16 %v4817
        %v4865 = vunpack.c.h.b16 %v4817
        %v4866 = vpack.c.b16 %v4834, %v4834
        %v4867 = vpack.c.b16 %v4835, %v4835
        %v4868 = vpack.c.b16 %v4836, %v4836
        %v4869 = vpack.c.b16 %v4837, %v4837
        %v4870 = vpack.c.b16 %v4838, %v4838
        %v4871 = vpack.c.b16 %v4839, %v4839
        %v4872 = vpack.c.b16 %v4840, %v4840
        %v4873 = vpack.c.b16 %v4841, %v4841
        %v4874 = vpack.c.b16 %v4842, %v4842
        %v4875 = vpack.c.b16 %v4843, %v4843
        %v4876 = vpack.c.b16 %v4844, %v4844
        %v4877 = vpack.c.b16 %v4845, %v4845
        %v4878 = vpack.c.b16 %v4846, %v4846
        %v4879 = vpack.c.b16 %v4847, %v4847
        %v4880 = vpack.c.b16 %v4848, %v4848
        %v4881 = vpack.c.b16 %v4849, %v4849
        %v4882 = vpack.c.b16 %v4850, %v4850
        %v4883 = vpack.c.b16 %v4851, %v4851
        %v4884 = vpack.c.b16 %v4852, %v4852
        %v4885 = vpack.c.b16 %v4853, %v4853
        %v4886 = vpack.c.b16 %v4854, %v4854
        %v4887 = vpack.c.b16 %v4855, %v4855
        %v4888 = vpack.c.b16 %v4856, %v4856
        %v4889 = vpack.c.b16 %v4857, %v4857
        %v4890 = vpack.c.b16 %v4858, %v4858
        %v4891 = vpack.c.b16 %v4859, %v4859
        %v4892 = vpack.c.b16 %v4860, %v4860
        %v4893 = vpack.c.b16 %v4861, %v4861
        %v4894 = vpack.c.b16 %v4862, %v4862
        %v4895 = vpack.c.b16 %v4863, %v4863
        %v4896 = vpack.c.b16 %v4864, %v4864
        %v4897 = vpack.c.b16 %v4865, %v4865
        %4930 = vst [vmem:[%s219] sm:$0xf] %v4866
        %4931 = vst [vmem:[%s219 + $0x4] sm:$0xf] %v4867
        %4932 = vst [vmem:[%s219 + $0x8] sm:$0xf] %v4868
        %4933 = vst [vmem:[%s219 + $0xc] sm:$0xf] %v4869
        %4934 = vst [vmem:[%s219 + $0x10] sm:$0xf] %v4870
        %4935 = vst [vmem:[%s219 + $0x14] sm:$0xf] %v4871
        %4936 = vst [vmem:[%s219 + $0x18] sm:$0xf] %v4872
        %4937 = vst [vmem:[%s219 + $0x1c] sm:$0xf] %v4873
        %4938 = vst [vmem:[%s219 + $0x20] sm:$0xf] %v4874
        %4939 = vst [vmem:[%s219 + $0x24] sm:$0xf] %v4875
        %4940 = vst [vmem:[%s219 + $0x28] sm:$0xf] %v4876
        %4941 = vst [vmem:[%s219 + $0x2c] sm:$0xf] %v4877
        %4942 = vst [vmem:[%s219 + $0x30] sm:$0xf] %v4878
        %4943 = vst [vmem:[%s219 + $0x34] sm:$0xf] %v4879
        %4944 = vst [vmem:[%s219 + $0x38] sm:$0xf] %v4880
        %4945 = vst [vmem:[%s219 + $0x3c] sm:$0xf] %v4881
        %4946 = vst [vmem:[%s219 + $0x40] sm:$0xf] %v4882
        %4947 = vst [vmem:[%s219 + $0x44] sm:$0xf] %v4883
        %4948 = vst [vmem:[%s219 + $0x48] sm:$0xf] %v4884
        %4949 = vst [vmem:[%s219 + $0x4c] sm:$0xf] %v4885
        %4950 = vst [vmem:[%s219 + $0x50] sm:$0xf] %v4886
        %4951 = vst [vmem:[%s219 + $0x54] sm:$0xf] %v4887
        %4952 = vst [vmem:[%s219 + $0x58] sm:$0xf] %v4888
        %4953 = vst [vmem:[%s219 + $0x5c] sm:$0xf] %v4889
        %4954 = vst [vmem:[%s219 + $0x60] sm:$0xf] %v4890
        %4955 = vst [vmem:[%s219 + $0x64] sm:$0xf] %v4891
        %4956 = vst [vmem:[%s219 + $0x68] sm:$0xf] %v4892
        %4957 = vst [vmem:[%s219 + $0x6c] sm:$0xf] %v4893
        %4958 = vst [vmem:[%s219 + $0x70] sm:$0xf] %v4894
        %4959 = vst [vmem:[%s219 + $0x74] sm:$0xf] %v4895
        %4960 = vst [vmem:[%s219 + $0x78] sm:$0xf] %v4896
        %4961 = vst [vmem:[%s219 + $0x7c] sm:$0xf] %v4897
        %p4962 = scmp.eq.s32.totalorder %s26, 0
        %p4963 = scmp.eq.s32.totalorder %s27, 0
        %p4964 = pnand %p4962, %p4963
        %p4965 = pneg %p4964
        // Predicated region
        $region29: #{tpu_custom_call.1} parent=27 // pred_check
          _
        $region30: #{tpu_custom_call.1} parent=27 // pred_check_branch
          %4967 = sbr.rel (%p4964) target = $region32
        $region31: #{tpu_custom_call.1} parent=27 // pred_region
          %v4968 = vadd.f32 %v4770, %v4771
          %v4969 = vadd.f32 %v4968, %v4772
          %v4970 = vadd.f32 %v4969, %v4773
          %v4971 = vadd.f32 %v4970, %v4774
          %v4972 = vadd.f32 %v4971, %v4775
          %v4973 = vadd.f32 %v4972, %v4776
          %v4974 = vadd.f32 %v4973, %v4777
          %v4975 = vadd.f32 %v4974, %v4778
          %v4976 = vadd.f32 %v4975, %v4779
          %v4977 = vadd.f32 %v4976, %v4780
          %v4978 = vadd.f32 %v4977, %v4781
          %v4979 = vadd.f32 %v4978, %v4782
          %v4980 = vadd.f32 %v4979, %v4783
          %v4981 = vadd.f32 %v4980, %v4784
          %v4982 = vadd.f32 %v4981, %v4785
          %v4983 = vadd.f32 %v4982, %v4786
          %v4984 = vadd.f32 %v4983, %v4787
          %v4985 = vadd.f32 %v4984, %v4788
          %v4986 = vadd.f32 %v4985, %v4789
          %v4987 = vadd.f32 %v4986, %v4790
          %v4988 = vadd.f32 %v4987, %v4791
          %v4989 = vadd.f32 %v4988, %v4792
          %v4990 = vadd.f32 %v4989, %v4793
          %v4991 = vadd.f32 %v4990, %v4794
          %v4992 = vadd.f32 %v4991, %v4795
          %v4993 = vadd.f32 %v4992, %v4796
          %v4994 = vadd.f32 %v4993, %v4797
          %v4995 = vadd.f32 %v4994, %v4798
          %v4996 = vadd.f32 %v4995, %v4799
          %v4997 = vadd.f32 %v4996, %v4800
          %v4998 = vadd.f32 %v4997, %v4801
          %v4999 = vrot.slane %v4998, 4
          %v5000 = vadd.f32 %v4998, %v4999
          %v5001 = vrot.slane %v5000, 2
          %v5002 = vadd.f32 %v5000, %v5001
          %v5003 = vrot.slane %v5002, 1
          %v5004 = vadd.f32 %v5002, %v5003
          %v5005 = vmul.f32 %v5004, 0.00390625
          %5006 = vst [vmem:[#allocation7] sm:$0x1] %v5005
          %5007 = vst [vmem:[#allocation4] sm:$0x1] 0.0
          %5008 = vst [vmem:[#allocation6] sm:$0x1] 0.0
        $region32: #{tpu_custom_call.1} parent=27 // pred_fallthru
          _
        %v5009 = vld [vmem:[#allocation7] sm:$0x1]
        %v5011 = vlaneseq
        %v5012 = vshrl.u32 %v5011, 7
        %v5013 = vsub.s32 0, %v5012
        %v5014 = vrot.slane %v5009, %v5013
        %v5016 = vsub.f32 %v4770, %v5014
        %v5017 = vsub.f32 %v4771, %v5014
        %v5018 = vsub.f32 %v4772, %v5014
        %v5019 = vsub.f32 %v4773, %v5014
        %v5020 = vsub.f32 %v4774, %v5014
        %v5021 = vsub.f32 %v4775, %v5014
        %v5022 = vsub.f32 %v4776, %v5014
        %v5023 = vsub.f32 %v4777, %v5014
        %v5024 = vsub.f32 %v4778, %v5014
        %v5025 = vsub.f32 %v4779, %v5014
        %v5026 = vsub.f32 %v4780, %v5014
        %v5027 = vsub.f32 %v4781, %v5014
        %v5028 = vsub.f32 %v4782, %v5014
        %v5029 = vsub.f32 %v4783, %v5014
        %v5030 = vsub.f32 %v4784, %v5014
        %v5031 = vsub.f32 %v4785, %v5014
        %v5032 = vsub.f32 %v4786, %v5014
        %v5033 = vsub.f32 %v4787, %v5014
        %v5034 = vsub.f32 %v4788, %v5014
        %v5035 = vsub.f32 %v4789, %v5014
        %v5036 = vsub.f32 %v4790, %v5014
        %v5037 = vsub.f32 %v4791, %v5014
        %v5038 = vsub.f32 %v4792, %v5014
        %v5039 = vsub.f32 %v4793, %v5014
        %v5040 = vsub.f32 %v4794, %v5014
        %v5041 = vsub.f32 %v4795, %v5014
        %v5042 = vsub.f32 %v4796, %v5014
        %v5043 = vsub.f32 %v4797, %v5014
        %v5044 = vsub.f32 %v4798, %v5014
        %v5045 = vsub.f32 %v4799, %v5014
        %v5046 = vsub.f32 %v4800, %v5014
        %v5047 = vsub.f32 %v4801, %v5014
        %v5048 = vld [vmem:[#allocation4] sm:$0x1]
        %v5049 = vadd.f32 %v5016, %v5017
        %v5050 = vadd.f32 %v5049, %v5018
        %v5051 = vadd.f32 %v5050, %v5019
        %v5052 = vadd.f32 %v5051, %v5020
        %v5053 = vadd.f32 %v5052, %v5021
        %v5054 = vadd.f32 %v5053, %v5022
        %v5055 = vadd.f32 %v5054, %v5023
        %v5056 = vadd.f32 %v5055, %v5024
        %v5057 = vadd.f32 %v5056, %v5025
        %v5058 = vadd.f32 %v5057, %v5026
        %v5059 = vadd.f32 %v5058, %v5027
        %v5060 = vadd.f32 %v5059, %v5028
        %v5061 = vadd.f32 %v5060, %v5029
        %v5062 = vadd.f32 %v5061, %v5030
        %v5063 = vadd.f32 %v5062, %v5031
        %v5064 = vadd.f32 %v5063, %v5032
        %v5065 = vadd.f32 %v5064, %v5033
        %v5066 = vadd.f32 %v5065, %v5034
        %v5067 = vadd.f32 %v5066, %v5035
        %v5068 = vadd.f32 %v5067, %v5036
        %v5069 = vadd.f32 %v5068, %v5037
        %v5070 = vadd.f32 %v5069, %v5038
        %v5071 = vadd.f32 %v5070, %v5039
        %v5072 = vadd.f32 %v5071, %v5040
        %v5073 = vadd.f32 %v5072, %v5041
        %v5074 = vadd.f32 %v5073, %v5042
        %v5075 = vadd.f32 %v5074, %v5043
        %v5076 = vadd.f32 %v5075, %v5044
        %v5077 = vadd.f32 %v5076, %v5045
        %v5078 = vadd.f32 %v5077, %v5046
        %v5079 = vadd.f32 %v5078, %v5047
        %v5080 = vrot.slane %v5079, 4
        %v5081 = vadd.f32 %v5079, %v5080
        %v5082 = vrot.slane %v5081, 2
        %v5083 = vadd.f32 %v5081, %v5082
        %v5084 = vrot.slane %v5083, 1
        %v5085 = vadd.f32 %v5083, %v5084
        %v5086 = vadd.f32 %v5048, %v5085
        %5087 = vst [vmem:[#allocation4] sm:$0x1] %v5086
        %v5088 = vld [vmem:[#allocation6] sm:$0x1]
        %v5089 = vmul.f32 %v5016, %v5016
        %v5090 = vmul.f32 %v5017, %v5017
        %v5091 = vmul.f32 %v5018, %v5018
        %v5092 = vmul.f32 %v5019, %v5019
        %v5093 = vmul.f32 %v5020, %v5020
        %v5094 = vmul.f32 %v5021, %v5021
        %v5095 = vmul.f32 %v5022, %v5022
        %v5096 = vmul.f32 %v5023, %v5023
        %v5097 = vmul.f32 %v5024, %v5024
        %v5098 = vmul.f32 %v5025, %v5025
        %v5099 = vmul.f32 %v5026, %v5026
        %v5100 = vmul.f32 %v5027, %v5027
        %v5101 = vmul.f32 %v5028, %v5028
        %v5102 = vmul.f32 %v5029, %v5029
        %v5103 = vmul.f32 %v5030, %v5030
        %v5104 = vmul.f32 %v5031, %v5031
        %v5105 = vmul.f32 %v5032, %v5032
        %v5106 = vmul.f32 %v5033, %v5033
        %v5107 = vmul.f32 %v5034, %v5034
        %v5108 = vmul.f32 %v5035, %v5035
        %v5109 = vmul.f32 %v5036, %v5036
        %v5110 = vmul.f32 %v5037, %v5037
        %v5111 = vmul.f32 %v5038, %v5038
        %v5112 = vmul.f32 %v5039, %v5039
        %v5113 = vmul.f32 %v5040, %v5040
        %v5114 = vmul.f32 %v5041, %v5041
        %v5115 = vmul.f32 %v5042, %v5042
        %v5116 = vmul.f32 %v5043, %v5043
        %v5117 = vmul.f32 %v5044, %v5044
        %v5118 = vmul.f32 %v5045, %v5045
        %v5119 = vmul.f32 %v5046, %v5046
        %v5120 = vmul.f32 %v5047, %v5047
        %v5121 = vadd.f32 %v5089, %v5090
        %v5122 = vadd.f32 %v5121, %v5091
        %v5123 = vadd.f32 %v5122, %v5092
        %v5124 = vadd.f32 %v5123, %v5093
        %v5125 = vadd.f32 %v5124, %v5094
        %v5126 = vadd.f32 %v5125, %v5095
        %v5127 = vadd.f32 %v5126, %v5096
        %v5128 = vadd.f32 %v5127, %v5097
        %v5129 = vadd.f32 %v5128, %v5098
        %v5130 = vadd.f32 %v5129, %v5099
        %v5131 = vadd.f32 %v5130, %v5100
        %v5132 = vadd.f32 %v5131, %v5101
        %v5133 = vadd.f32 %v5132, %v5102
        %v5134 = vadd.f32 %v5133, %v5103
        %v5135 = vadd.f32 %v5134, %v5104
        %v5136 = vadd.f32 %v5135, %v5105
        %v5137 = vadd.f32 %v5136, %v5106
        %v5138 = vadd.f32 %v5137, %v5107
        %v5139 = vadd.f32 %v5138, %v5108
        %v5140 = vadd.f32 %v5139, %v5109
        %v5141 = vadd.f32 %v5140, %v5110
        %v5142 = vadd.f32 %v5141, %v5111
        %v5143 = vadd.f32 %v5142, %v5112
        %v5144 = vadd.f32 %v5143, %v5113
        %v5145 = vadd.f32 %v5144, %v5114
        %v5146 = vadd.f32 %v5145, %v5115
        %v5147 = vadd.f32 %v5146, %v5116
        %v5148 = vadd.f32 %v5147, %v5117
        %v5149 = vadd.f32 %v5148, %v5118
        %v5150 = vadd.f32 %v5149, %v5119
        %v5151 = vadd.f32 %v5150, %v5120
        %v5152 = vrot.slane %v5151, 4
        %v5153 = vadd.f32 %v5151, %v5152
        %v5154 = vrot.slane %v5153, 2
        %v5155 = vadd.f32 %v5153, %v5154
        %v5156 = vrot.slane %v5155, 1
        %v5157 = vadd.f32 %v5155, %v5156
        %v5158 = vadd.f32 %v5088, %v5157
        %5159 = vst [vmem:[#allocation6] sm:$0x1] %v5158
        %s5160 = sand.u32 %s91, 1
        %s5161 = scalar_lea.sflag [#allocation3], %s5160
        %s5162 = sand.u32 %s91, 1
        %s5163 = smul.addr %s5162, 128
        %s5164 = scalar_lea.vmem [#allocation2], %s5163
        // Predicated region
        $region33: #{tpu_custom_call.1} parent=27 // pred_check
          %p5165 = pneg %p101
        $region34: #{tpu_custom_call.1} parent=27 // pred_check_branch
          %5167 = sbr.rel (%p5165) target = $region36
        $region35: #{tpu_custom_call.1} parent=27 // pred_region
          %s5168 = smul.u32 16, %s27
          %s5170 = ssub.s32 2048, 2048
          %5171 = vsyncadd %s5161, %s5170
          %s5172 = smul.addr %s5168, 2
          %s5173 = smul.addr %s26, 32
          %s5174 = sadd.s32 %s5172, %s5173
          %s5175 = smul.addr %s5174, 64
          %s5176 = scalar_lea.hbm %s2, %s5175
          %s5177 = sshll.u32 %s5164, 4
          %s5178 = int_to_ptr.vmem [resolvable:$true] %s5177
          %5183 = dma.vmem_to_hbm [thread:$0]  %s5178, 2048, %s5176, %s5161, 64, 64, 4
        $region36: #{tpu_custom_call.1} parent=27 // pred_fallthru
          _
        // Predicated region
        $region37: #{tpu_custom_call.1} parent=27 // pred_check
          %p5184 = pneg %p122
        $region38: #{tpu_custom_call.1} parent=27 // pred_check_branch
          %5186 = sbr.rel (%p5184) target = $region40
        $region39: #{tpu_custom_call.1} parent=27 // pred_region
          %s5188 = ssub.s32 16, 16
          %5189 = vsyncadd [#allocation5], %s5188
          %s5191 = sshll.u32 [#allocation4], 4
          %s5192 = int_to_ptr.vmem [resolvable:$true] %s5191
          %5194 = dma.vmem_to_hbm [thread:$0]  %s5192, 16, %s3, [#allocation5]
        $region40: #{tpu_custom_call.1} parent=27 // pred_fallthru
          _
        // Predicated region
        $region41: #{tpu_custom_call.1} parent=27 // pred_check
          %p5195 = pneg %p143
        $region42: #{tpu_custom_call.1} parent=27 // pred_check_branch
          %5197 = sbr.rel (%p5195) target = $region44
        $region43: #{tpu_custom_call.1} parent=27 // pred_region
          %s5199 = ssub.s32 16, 16
          %5200 = vsyncadd [#allocation5], %s5199
          %s5202 = sshll.u32 [#allocation6], 4
          %s5203 = int_to_ptr.vmem [resolvable:$true] %s5202
          %5205 = dma.vmem_to_hbm [thread:$0]  %s5203, 16, %s4, [#allocation5]
        $region44: #{tpu_custom_call.1} parent=27 // pred_fallthru
          _
        // Predicated region
        $region45: #{tpu_custom_call.1} parent=27 // pred_check
          %p5206 = pneg %p164
        $region46: #{tpu_custom_call.1} parent=27 // pred_check_branch
          %5208 = sbr.rel (%p5206) target = $region48
        $region47: #{tpu_custom_call.1} parent=27 // pred_region
          %s5210 = ssub.s32 16, 16
          %5211 = vsyncadd [#allocation8], %s5210
          %s5213 = sshll.u32 [#allocation7], 4
          %s5214 = int_to_ptr.vmem [resolvable:$true] %s5213
          %5216 = dma.vmem_to_hbm [thread:$0]  %s5214, 16, %s5, [#allocation8]
        $region48: #{tpu_custom_call.1} parent=27 // pred_fallthru
          _
        // Predicated region
        $region49: #{tpu_custom_call.1} parent=27 // pred_check
          %p5217 = pneg %p122
        $region50: #{tpu_custom_call.1} parent=27 // pred_check_branch
          %5219 = sbr.rel (%p5217) target = $region52
        $region51: #{tpu_custom_call.1} parent=27 // pred_region
          %5220 = dma.done [#allocation5], 16
        $region52: #{tpu_custom_call.1} parent=27 // pred_fallthru
          _
        // Predicated region
        $region53: #{tpu_custom_call.1} parent=27 // pred_check
          %p5221 = pneg %p143
        $region54: #{tpu_custom_call.1} parent=27 // pred_check_branch
          %5223 = sbr.rel (%p5221) target = $region56
        $region55: #{tpu_custom_call.1} parent=27 // pred_region
          %5224 = dma.done [#allocation5], 16
        $region56: #{tpu_custom_call.1} parent=27 // pred_fallthru
          _
        // Predicated region
        $region57: #{tpu_custom_call.1} parent=27 // pred_check
          %p5225 = pneg %p164
        $region58: #{tpu_custom_call.1} parent=27 // pred_check_branch
          %5227 = sbr.rel (%p5225) target = $region60
        $region59: #{tpu_custom_call.1} parent=27 // pred_region
          %5228 = dma.done [#allocation8], 16
        $region60: #{tpu_custom_call.1} parent=27 // pred_fallthru
          _
      $region28: #{tpu_custom_call.1} parent=5 // pred_fallthru
        _
      %p5229 = scmp.le.s32.totalorder 2, %s17
      // Predicated region
      $region61: #{tpu_custom_call.1} parent=5 // pred_check
        %p5230 = pneg %p5229
      $region62: #{tpu_custom_call.1} parent=5 // pred_check_branch
        %5232 = sbr.rel (%p5230) target = $region64
      $region63: #{tpu_custom_call.1} parent=5 // pred_region
        %s5233 = ssub.s32 %s17, 2
        // Predicated region
        $region65: #{tpu_custom_call.1} parent=63 // pred_check
          %p5234 = pneg %p107
        $region66: #{tpu_custom_call.1} parent=63 // pred_check_branch
          %5236 = sbr.rel (%p5234) target = $region68
        $region67: #{tpu_custom_call.1} parent=63 // pred_region
          %s5237 = sand.u32 %s92, 1
          %s5238 = scalar_lea.sflag [#allocation3], %s5237
          %s5239 = sand.u32 %s92, 1
          %s5240 = smul.addr %s5239, 128
          %s5241 = scalar_lea.vmem [#allocation2], %s5240
          %5242 = dma.done %s5238, 2048
        $region68: #{tpu_custom_call.1} parent=63 // pred_fallthru
          _
      $region64: #{tpu_custom_call.1} parent=5 // pred_fallthru
        _
    $region6: #{tpu_custom_call.1} parent=1 // loop_footer
      %s21 = sadd.s32 1, %s17
    $region7: #{tpu_custom_call.1} parent=1 // loop_footer_branch
      %16 = sbr.rel target = $region3
    $region8: #{tpu_custom_call.1} parent=1 // loop_exit
      _
    %5243 = vsyncpa [#allocation3], 1
    %s5244 = scalar_lea.sflag [#allocation3], 1
    %5245 = vsyncpa %s5244, 1
    %5246 = vsyncpa [#allocation5], 1
    %5247 = vsyncpa [#allocation8], 1

</llo_original>
